<compile_context>
chip_gen: v7x
topology: tpu7x:2x2x1
jax: 0.10.0
libtpu: 0.0.40
codegen_flags: <defaults>
</compile_context>

<pallas_src>
import numpy as np
import jax
import jax.numpy as jnp
from jax.experimental import pallas as pl
from jax.experimental.pallas import tpu as pltpu

EPS = 1e-5

# Fixed problem sizes (from the PyTorch module).
H = W = 14
CIN = 576
G, CG = 63, 24            # groups, channels per group
GP, CGP = 64, 32          # padded groups / channels per group (lane alignment)
CTOT = GP * CGP           # 2048 padded channels
CHUNK = 128               # 4 groups x 32 ch  -> one lane tile
CH_PER_STEP = 2           # chunks per grid step -> grid = (8,)
CW = CHUNK * CH_PER_STEP  # 256 channels per grid step
N_PIX = H * W             # 196 real pixels   (stage-1 BN divisor)
OH = OW = 7
N_OUT = OH * OW           # 49 output pixels  (stage-2 BN divisor)


def _build_row_index_and_mask():
    """Gather indices / interior mask for the parity-split padded 16x16 layout.

    Row r = plane*64 + a*8 + b with plane = (row parity)*2 + (col parity) of the
    zero-padded image; it holds input pixel (i, j) = (2a+p-1, 2b+q-1).  Border
    rows point at an appended all-zero pixel and get mask 0.
    """
    idx = np.full((256,), N_PIX, np.int32)
    mask = np.zeros((256, 1), np.float32)
    for plane in range(4):
        p, q = plane // 2, plane % 2
        for a in range(8):
            for b in range(8):
                i, j = 2 * a + p - 1, 2 * b + q - 1
                r = plane * 64 + a * 8 + b
                if 0 <= i < H and 0 <= j < W:
                    idx[r] = i * W + j
                    mask[r, 0] = 1.0
    return idx, mask


_ROW_IDX, _ROW_MASK = _build_row_index_and_mask()

# Taps with kw in {0,1} feed acc0; taps with kw == 2 feed acc1 (one output-column shift).
_TAPS0 = [(0, 0), (0, 1), (1, 0), (1, 1), (2, 0), (2, 1)]
_TAPS1 = [(0, 2), (1, 2), (2, 2)]


def _tap_start(kh, kw):
    # Row offset of the (56, C) patch for tap (kh, kw) inside the (256, C) scratch.
    return ((kh % 2) * 2 + (kw % 2)) * 64 + (kh // 2) * 8


# ---------------------------------------------------------------------------
# Fused kernel: 1x1 conv + BN + ReLU + grouped 3x3/s2 conv + BN
# ---------------------------------------------------------------------------
def _fused_kernel(xp_ref, w1_ref, g1_ref, b1_ref, mask_ref,
                  w20_ref, w21_ref, g2_ref, b2_ref, o_ref, yscr):
    # ---- stage 1: 1x1 conv (MXU) + BatchNorm(batch stats) + ReLU ----
    y = jnp.dot(xp_ref[...], w1_ref[...], preferred_element_type=jnp.float32)  # (256, CW)
    mean = jnp.sum(y, axis=0, keepdims=True) * (1.0 / N_PIX)        # borders are exact zeros
    var = jnp.sum(y * y, axis=0, keepdims=True) * (1.0 / N_PIX) - mean * mean
    scale = jax.lax.rsqrt(var + EPS) * g1_ref[...]
    shift = b1_ref[...] - mean * scale
    # re-zero the padded border rows after the affine shift, keep f32 in scratch
    yscr[...] = jnp.maximum(y * scale + shift, 0.0) * mask_ref[...]

    # ---- stage 2: grouped 3x3 stride-2 conv (block-diag matmuls) + BatchNorm ----
    patches = {}
    for kh, kw in _TAPS0 + _TAPS1:
        s = _tap_start(kh, kw)
        if s not in patches:
            patches[s] = yscr[s:s + 56, :]                          # (56, CW), 8-row aligned

    for j in range(CH_PER_STEP):
        sel = slice(j * CHUNK, (j + 1) * CHUNK)
        lhs0 = jnp.concatenate(
            [patches[_tap_start(kh, kw)][:, sel] for kh, kw in _TAPS0], axis=1
        ).astype(jnp.bfloat16)                                      # (56, 768)
        lhs1 = jnp.concatenate(
            [patches[_tap_start(kh, kw)][:, sel] for kh, kw in _TAPS1], axis=1
        ).astype(jnp.bfloat16)                                      # (56, 384)
        acc0 = jnp.dot(lhs0, w20_ref[j], preferred_element_type=jnp.float32)  # (56, 128)
        acc1 = jnp.dot(lhs1, w21_ref[j], preferred_element_type=jnp.float32)  # (56, 128)
        a0 = acc0.reshape(OH, 8, CHUNK)                             # tile-preserving reshape
        a1 = acc1.reshape(OH, 8, CHUNK)
        comb = a0[:, 0:OW, :] + a1[:, 1:OW + 1, :]                  # (7, 7, 128) conv result
        m = jnp.sum(comb, axis=(0, 1), keepdims=True) * (1.0 / N_OUT)
        v = jnp.sum(comb * comb, axis=(0, 1), keepdims=True) * (1.0 / N_OUT) - m * m
        scale2 = jax.lax.rsqrt(v + EPS) * g2_ref[:, sel]
        shift2 = b2_ref[:, sel] - m * scale2
        o_ref[:, :, sel] = comb * scale2 + shift2


def _fused_pallas(xp, w1m, g1p, b1p, mask, w20, w21, g2p, b2p):
    n_steps = CTOT // CW
    return pl.pallas_call(
        _fused_kernel,
        out_shape=jax.ShapeDtypeStruct((OH, OW, CTOT), jnp.float32),
        grid=(n_steps,),
        in_specs=[
            pl.BlockSpec((256, CIN), lambda c: (0, 0)),                    # xp (constant)
            pl.BlockSpec((CIN, CW), lambda c: (0, c)),                     # w1 column chunk
            pl.BlockSpec((1, CW), lambda c: (0, c)),                       # gamma1
            pl.BlockSpec((1, CW), lambda c: (0, c)),                       # beta1
            pl.BlockSpec((256, 1), lambda c: (0, 0)),                      # border mask
            pl.BlockSpec((CH_PER_STEP, 6 * CHUNK, CHUNK), lambda c: (c, 0, 0)),  # W taps kw<2
            pl.BlockSpec((CH_PER_STEP, 3 * CHUNK, CHUNK), lambda c: (c, 0, 0)),  # W taps kw=2
            pl.BlockSpec((1, CW), lambda c: (0, c)),                       # gamma2
            pl.BlockSpec((1, CW), lambda c: (0, c)),                       # beta2
        ],
        out_specs=pl.BlockSpec((OH, OW, CW), lambda c: (0, 0, c)),
        scratch_shapes=[pltpu.VMEM((256, CW), jnp.float32)],
        compiler_params=pltpu.CompilerParams(
            dimension_semantics=("parallel",),
        ),
    )(xp, w1m, g1p, b1p, mask, w20, w21, g2p, b2p)


# ---------------------------------------------------------------------------
# Full forward (operand prep in plain, lane-dense XLA; hot path in the kernel)
# ---------------------------------------------------------------------------
@jax.jit
def forward(x, w1, g1, b1, w2, g2, b2):
    # ---- stage-1 operands ----
    x2d = jnp.transpose(x[0], (1, 2, 0)).reshape(N_PIX, CIN)               # (196, 576)
    x_ext = jnp.concatenate([x2d, jnp.zeros((1, CIN), x2d.dtype)], axis=0)
    xp = x_ext[jnp.asarray(_ROW_IDX)].astype(jnp.bfloat16)                 # (256, 576)
    mask = jnp.asarray(_ROW_MASK)                                          # (256, 1)

    w1m = jnp.pad(w1.reshape(G, CG, CIN), ((0, 1), (0, CGP - CG), (0, 0)))  # (64, 32, 576)
    w1m = jnp.transpose(w1m.reshape(CTOT, CIN), (1, 0)).astype(jnp.bfloat16)  # (576, 2048)

    def padvec(v):
        return jnp.pad(v.reshape(G, CG), ((0, 1), (0, CGP - CG))).reshape(1, CTOT)

    g1p, b1p, g2p, b2p = padvec(g1), padvec(b1), padvec(g2), padvec(b2)

    # ---- stage-2 block-diagonal (4 groups x 32 ch = 128-lane chunk) weights ----
    w2r = jnp.pad(w2.reshape(G, CG, CG, 3, 3),
                  ((0, 1), (0, CGP - CG), (0, CGP - CG), (0, 0), (0, 0)))   # (64,32,32,3,3)
    w2t = jnp.transpose(w2r, (3, 4, 0, 2, 1))                              # (kh,kw,g,ci,co)
    w2c = w2t.reshape(3, 3, CTOT // CHUNK, 4, CGP, CGP)                    # (kh,kw,chunk,gl,ci,co)
    wbd = jnp.einsum('hwcgij,gk->chwgikj', w2c, jnp.eye(4, dtype=w2.dtype))
    wbd = wbd.reshape(CTOT // CHUNK, 3, 3, CHUNK, CHUNK)                   # (16,3,3,128,128)
    w20 = jnp.concatenate([wbd[:, kh, kw] for kh, kw in _TAPS0], axis=1).astype(jnp.bfloat16)
    w21 = jnp.concatenate([wbd[:, kh, kw] for kh, kw in _TAPS1], axis=1).astype(jnp.bfloat16)

    out = _fused_pallas(xp, w1m, g1p, b1p, mask, w20, w21, g2p, b2p)       # (7, 7, 2048)
    out = jnp.transpose(out.reshape(OH, OW, GP, CGP), (2, 3, 0, 1))[:G, :CG]
    return out.reshape(1, G * CG, OH, OW)


# ---------------------------------------------------------------------------
# Pure-JAX reference (f32, for the correctness check)
# ---------------------------------------------------------------------------
def _bn_train(y, gamma, beta):
    mean = jnp.mean(y, axis=(0, 2, 3), keepdims=True)
    var = jnp.mean(jnp.square(y - mean), axis=(0, 2, 3), keepdims=True)
    return ((y - mean) * jax.lax.rsqrt(var + EPS)
            * gamma.reshape(1, -1, 1, 1) + beta.reshape(1, -1, 1, 1))


def reference(x, w1, g1, b1, w2, g2, b2, groups=G):
    dn = ("NCHW", "OIHW", "NCHW")
    y = jax.lax.conv_general_dilated(x, w1, (1, 1), "VALID", dimension_numbers=dn)
    y = _bn_train(y, g1, b1)
    y = jnp.maximum(y, 0.0)
    y = jax.lax.conv_general_dilated(y, w2, (2, 2), ((1, 1), (1, 1)),
                                     dimension_numbers=dn,
                                     feature_group_count=groups)
    return _bn_train(y, g2, b2)


if __name__ == "__main__":
    # TODO(synk): BatchNorm running-stat (momentum) buffer updates are a training-mode
    # side effect that does not influence the returned tensor; they are not modeled.
    key = jax.random.PRNGKey(0)
    k0, k1, k2, k3, k4, k5, k6 = jax.random.split(key, 7)

    x = jax.random.normal(k0, (1, CIN, H, W), jnp.float32)
    w1 = 0.05 * jax.random.normal(k1, (G * CG, CIN, 1, 1), jnp.float32)
    g1 = 1.0 + 0.1 * jax.random.normal(k2, (G * CG,), jnp.float32)
    b1 = 0.1 * jax.random.normal(k3, (G * CG,), jnp.float32)
    w2 = 0.05 * jax.random.normal(k4, (G * CG, CG, 3, 3), jnp.float32)
    g2 = 1.0 + 0.1 * jax.random.normal(k5, (G * CG,), jnp.float32)
    b2 = 0.1 * jax.random.normal(k6, (G * CG,), jnp.float32)

    out = jax.block_until_ready(forward(x, w1, g1, b1, w2, g2, b2))
    assert out.shape == (1, G * CG, OH, OW), out.shape

    ref = jax.block_until_ready(reference(x, w1, g1, b1, w2, g2, b2))
    if not bool(jnp.allclose(out, ref, atol=5e-2, rtol=5e-2)):
        max_err = float(jnp.max(jnp.abs(out - ref)))
        raise AssertionError(f"mismatch vs reference, max abs err = {max_err}")

    print("KERNEL_OK")
</pallas_src>

<mosaic_0001>
module attributes {stable_mosaic.version = 11 : i64} {
  func.func @_fused_kernel(%arg0: i32, %arg1: memref<256x576xbf16, #tpu.memory_space<vmem>>, %arg2: memref<576x256xbf16, #tpu.memory_space<vmem>>, %arg3: memref<1x256xf32, #tpu.memory_space<vmem>>, %arg4: memref<1x256xf32, #tpu.memory_space<vmem>>, %arg5: memref<256x1xf32, #tpu.memory_space<vmem>>, %arg6: memref<2x768x128xbf16, #tpu.memory_space<vmem>>, %arg7: memref<2x384x128xbf16, #tpu.memory_space<vmem>>, %arg8: memref<1x256xf32, #tpu.memory_space<vmem>>, %arg9: memref<1x256xf32, #tpu.memory_space<vmem>>, %arg10: memref<7x7x256xf32, #tpu.memory_space<vmem>>, %arg11: memref<256x256xf32, #tpu.memory_space<vmem>>) attributes {dimension_semantics = [#tpu.dimension_semantics<parallel>], iteration_bounds = array<i64: 8>, scalar_prefetch = 0 : i64, scratch_operands = 1 : i64, tpu.core_type = #tpu.core_type<tc>, window_params = [{pipeline_mode = #tpu.pipeline_mode<synchronous>, transform_indices = @transform_0, window_bounds = array<i64: 256, 576>}, {transform_indices = @transform_1, window_bounds = array<i64: 576, 256>}, {transform_indices = @transform_2, window_bounds = array<i64: 1, 256>}, {transform_indices = @transform_3, window_bounds = array<i64: 1, 256>}, {pipeline_mode = #tpu.pipeline_mode<synchronous>, transform_indices = @transform_4, window_bounds = array<i64: 256, 1>}, {transform_indices = @transform_5, window_bounds = array<i64: 2, 768, 128>}, {transform_indices = @transform_6, window_bounds = array<i64: 2, 384, 128>}, {transform_indices = @transform_7, window_bounds = array<i64: 1, 256>}, {transform_indices = @transform_8, window_bounds = array<i64: 1, 256>}, {transform_indices = @transform_9, window_bounds = array<i64: 7, 7, 256>}]} {
    %c0 = arith.constant 0 : index
    %c0_0 = arith.constant 0 : index
    %0 = vector.load %arg1[%c0, %c0_0] : memref<256x576xbf16, #tpu.memory_space<vmem>>, vector<256x576xbf16>
    %c0_1 = arith.constant 0 : index
    %c0_2 = arith.constant 0 : index
    %1 = vector.load %arg2[%c0_1, %c0_2] : memref<576x256xbf16, #tpu.memory_space<vmem>>, vector<576x256xbf16>
    %cst = arith.constant dense<0.000000e+00> : vector<256x256xf32>
    %2 = tpu.matmul %0, %1, %cst {dimension_numbers = #tpu.dot_dimension_numbers<[1], [0], [0], [1], [0, 0, 1, 1], [], []>} : vector<256x576xbf16>, vector<576x256xbf16>, vector<256x256xf32> -> vector<256x256xf32>
    %cst_3 = arith.constant dense<0.000000e+00> : vector<256xf32>
    %3 = vector.multi_reduction <add>, %2, %cst_3 [0] : vector<256x256xf32> to vector<256xf32>
    %4 = vector.shape_cast %3 : vector<256xf32> to vector<1x256xf32>
    %cst_4 = arith.constant 0.00510204071 : f32
    %5 = vector.broadcast %cst_4 : f32 to vector<1x256xf32>
    %6 = arith.mulf %4, %5 : vector<1x256xf32>
    %7 = arith.mulf %2, %2 : vector<256x256xf32>
    %cst_5 = arith.constant dense<0.000000e+00> : vector<256xf32>
    %8 = vector.multi_reduction <add>, %7, %cst_5 [0] : vector<256x256xf32> to vector<256xf32>
    %9 = vector.shape_cast %8 : vector<256xf32> to vector<1x256xf32>
    %cst_6 = arith.constant 0.00510204071 : f32
    %10 = vector.broadcast %cst_6 : f32 to vector<1x256xf32>
    %11 = arith.mulf %9, %10 : vector<1x256xf32>
    %12 = arith.mulf %6, %6 : vector<1x256xf32>
    %13 = arith.subf %11, %12 : vector<1x256xf32>
    %cst_7 = arith.constant 9.99999974E-6 : f32
    %14 = vector.broadcast %cst_7 : f32 to vector<1x256xf32>
    %15 = arith.addf %13, %14 : vector<1x256xf32>
    %16 = math.rsqrt %15 : vector<1x256xf32>
    %c0_8 = arith.constant 0 : index
    %c0_9 = arith.constant 0 : index
    %17 = vector.load %arg3[%c0_8, %c0_9] : memref<1x256xf32, #tpu.memory_space<vmem>>, vector<1x256xf32>
    %18 = arith.mulf %16, %17 : vector<1x256xf32>
    %c0_10 = arith.constant 0 : index
    %c0_11 = arith.constant 0 : index
    %19 = vector.load %arg4[%c0_10, %c0_11] : memref<1x256xf32, #tpu.memory_space<vmem>>, vector<1x256xf32>
    %20 = arith.mulf %6, %18 : vector<1x256xf32>
    %21 = arith.subf %19, %20 : vector<1x256xf32>
    %22 = vector.broadcast %18 : vector<1x256xf32> to vector<256x256xf32>
    %23 = arith.mulf %2, %22 : vector<256x256xf32>
    %24 = vector.broadcast %21 : vector<1x256xf32> to vector<256x256xf32>
    %25 = arith.addf %23, %24 : vector<256x256xf32>
    %cst_12 = arith.constant 0.000000e+00 : f32
    %26 = vector.broadcast %cst_12 : f32 to vector<256x256xf32>
    %27 = arith.maximumf %25, %26 : vector<256x256xf32>
    %c0_13 = arith.constant 0 : index
    %c0_14 = arith.constant 0 : index
    %28 = vector.load %arg5[%c0_13, %c0_14] : memref<256x1xf32, #tpu.memory_space<vmem>>, vector<256x1xf32>
    %29 = vector.broadcast %28 : vector<256x1xf32> to vector<256x256xf32>
    %30 = arith.mulf %27, %29 : vector<256x256xf32>
    %c0_15 = arith.constant 0 : index
    %c0_16 = arith.constant 0 : index
    %31 = vector.load %arg11[%c0_15, %c0_16] : memref<256x256xf32, #tpu.memory_space<vmem>>, vector<256x256xf32>
    tpu.vector_store %arg11[%c0_15, %c0_16], %30 {strides = array<i32>} : memref<256x256xf32, #tpu.memory_space<vmem>>, vector<256x256xf32>,
    %c0_17 = arith.constant 0 : index
    %c0_18 = arith.constant 0 : index
    %32 = vector.load %arg11[%c0_17, %c0_18] : memref<256x256xf32, #tpu.memory_space<vmem>>, vector<56x256xf32>
    %c64 = arith.constant 64 : index
    %c0_19 = arith.constant 0 : index
    %33 = vector.load %arg11[%c64, %c0_19] : memref<256x256xf32, #tpu.memory_space<vmem>>, vector<56x256xf32>
    %c128 = arith.constant 128 : index
    %c0_20 = arith.constant 0 : index
    %34 = vector.load %arg11[%c128, %c0_20] : memref<256x256xf32, #tpu.memory_space<vmem>>, vector<56x256xf32>
    %c192 = arith.constant 192 : index
    %c0_21 = arith.constant 0 : index
    %35 = vector.load %arg11[%c192, %c0_21] : memref<256x256xf32, #tpu.memory_space<vmem>>, vector<56x256xf32>
    %c8 = arith.constant 8 : index
    %c0_22 = arith.constant 0 : index
    %36 = vector.load %arg11[%c8, %c0_22] : memref<256x256xf32, #tpu.memory_space<vmem>>, vector<56x256xf32>
    %c72 = arith.constant 72 : index
    %c0_23 = arith.constant 0 : index
    %37 = vector.load %arg11[%c72, %c0_23] : memref<256x256xf32, #tpu.memory_space<vmem>>, vector<56x256xf32>
    %38 = vector.extract_strided_slice %32 {offsets = [0, 0], sizes = [56, 128], strides = [1, 1]} : vector<56x256xf32> to vector<56x128xf32>
    %39 = vector.extract_strided_slice %33 {offsets = [0, 0], sizes = [56, 128], strides = [1, 1]} : vector<56x256xf32> to vector<56x128xf32>
    %40 = vector.extract_strided_slice %34 {offsets = [0, 0], sizes = [56, 128], strides = [1, 1]} : vector<56x256xf32> to vector<56x128xf32>
    %41 = vector.extract_strided_slice %35 {offsets = [0, 0], sizes = [56, 128], strides = [1, 1]} : vector<56x256xf32> to vector<56x128xf32>
    %42 = vector.extract_strided_slice %36 {offsets = [0, 0], sizes = [56, 128], strides = [1, 1]} : vector<56x256xf32> to vector<56x128xf32>
    %43 = vector.extract_strided_slice %37 {offsets = [0, 0], sizes = [56, 128], strides = [1, 1]} : vector<56x256xf32> to vector<56x128xf32>
    %44 = tpu.concatenate %38, %39, %40, %41, %42, %43 in 1 : vector<56x128xf32>, vector<56x128xf32>, vector<56x128xf32>, vector<56x128xf32>, vector<56x128xf32>, vector<56x128xf32> -> vector<56x768xf32>
    %45 = arith.truncf %44 : vector<56x768xf32> to vector<56x768xbf16>
    %46 = vector.extract_strided_slice %32 {offsets = [0, 0], sizes = [56, 128], strides = [1, 1]} : vector<56x256xf32> to vector<56x128xf32>
    %47 = vector.extract_strided_slice %34 {offsets = [0, 0], sizes = [56, 128], strides = [1, 1]} : vector<56x256xf32> to vector<56x128xf32>
    %48 = vector.extract_strided_slice %36 {offsets = [0, 0], sizes = [56, 128], strides = [1, 1]} : vector<56x256xf32> to vector<56x128xf32>
    %49 = tpu.concatenate %46, %47, %48 in 1 : vector<56x128xf32>, vector<56x128xf32>, vector<56x128xf32> -> vector<56x384xf32>
    %50 = arith.truncf %49 : vector<56x384xf32> to vector<56x384xbf16>
    %c0_24 = arith.constant 0 : index
    %c0_25 = arith.constant 0 : index
    %c0_26 = arith.constant 0 : index
    %51 = vector.load %arg6[%c0_24, %c0_25, %c0_26] : memref<2x768x128xbf16, #tpu.memory_space<vmem>>, vector<1x768x128xbf16>
    %52 = vector.shape_cast %51 : vector<1x768x128xbf16> to vector<768x128xbf16>
    %cst_27 = arith.constant dense<0.000000e+00> : vector<56x128xf32>
    %53 = tpu.matmul %45, %52, %cst_27 {dimension_numbers = #tpu.dot_dimension_numbers<[1], [0], [0], [1], [0, 0, 1, 1], [], []>} : vector<56x768xbf16>, vector<768x128xbf16>, vector<56x128xf32> -> vector<56x128xf32>
    %c0_28 = arith.constant 0 : index
    %c0_29 = arith.constant 0 : index
    %c0_30 = arith.constant 0 : index
    %54 = vector.load %arg7[%c0_28, %c0_29, %c0_30] : memref<2x384x128xbf16, #tpu.memory_space<vmem>>, vector<1x384x128xbf16>
    %55 = vector.shape_cast %54 : vector<1x384x128xbf16> to vector<384x128xbf16>
    %cst_31 = arith.constant dense<0.000000e+00> : vector<56x128xf32>
    %56 = tpu.matmul %50, %55, %cst_31 {dimension_numbers = #tpu.dot_dimension_numbers<[1], [0], [0], [1], [0, 0, 1, 1], [], []>} : vector<56x384xbf16>, vector<384x128xbf16>, vector<56x128xf32> -> vector<56x128xf32>
    %57 = vector.shape_cast %53 : vector<56x128xf32> to vector<7x8x128xf32>
    %58 = vector.shape_cast %56 : vector<56x128xf32> to vector<7x8x128xf32>
    %59 = vector.extract_strided_slice %57 {offsets = [0, 0, 0], sizes = [7, 7, 128], strides = [1, 1, 1]} : vector<7x8x128xf32> to vector<7x7x128xf32>
    %60 = vector.extract_strided_slice %58 {offsets = [0, 1, 0], sizes = [7, 7, 128], strides = [1, 1, 1]} : vector<7x8x128xf32> to vector<7x7x128xf32>
    %61 = arith.addf %59, %60 : vector<7x7x128xf32>
    %cst_32 = arith.constant dense<0.000000e+00> : vector<128xf32>
    %62 = vector.multi_reduction <add>, %61, %cst_32 [0, 1] : vector<7x7x128xf32> to vector<128xf32>
    %63 = vector.shape_cast %62 : vector<128xf32> to vector<1x1x128xf32>
    %cst_33 = arith.constant 0.0204081628 : f32
    %64 = vector.broadcast %cst_33 : f32 to vector<1x1x128xf32>
    %65 = arith.mulf %63, %64 : vector<1x1x128xf32>
    %66 = arith.mulf %61, %61 : vector<7x7x128xf32>
    %cst_34 = arith.constant dense<0.000000e+00> : vector<128xf32>
    %67 = vector.multi_reduction <add>, %66, %cst_34 [0, 1] : vector<7x7x128xf32> to vector<128xf32>
    %68 = vector.shape_cast %67 : vector<128xf32> to vector<1x1x128xf32>
    %cst_35 = arith.constant 0.0204081628 : f32
    %69 = vector.broadcast %cst_35 : f32 to vector<1x1x128xf32>
    %70 = arith.mulf %68, %69 : vector<1x1x128xf32>
    %71 = arith.mulf %65, %65 : vector<1x1x128xf32>
    %72 = arith.subf %70, %71 : vector<1x1x128xf32>
    %cst_36 = arith.constant 9.99999974E-6 : f32
    %73 = vector.broadcast %cst_36 : f32 to vector<1x1x128xf32>
    %74 = arith.addf %72, %73 : vector<1x1x128xf32>
    %75 = math.rsqrt %74 : vector<1x1x128xf32>
    %c0_37 = arith.constant 0 : index
    %c0_38 = arith.constant 0 : index
    %76 = vector.load %arg8[%c0_37, %c0_38] : memref<1x256xf32, #tpu.memory_space<vmem>>, vector<1x128xf32>
    %77 = vector.shape_cast %76 : vector<1x128xf32> to vector<1x1x128xf32>
    %78 = arith.mulf %75, %77 : vector<1x1x128xf32>
    %c0_39 = arith.constant 0 : index
    %c0_40 = arith.constant 0 : index
    %79 = vector.load %arg9[%c0_39, %c0_40] : memref<1x256xf32, #tpu.memory_space<vmem>>, vector<1x128xf32>
    %80 = arith.mulf %65, %78 : vector<1x1x128xf32>
    %81 = vector.shape_cast %79 : vector<1x128xf32> to vector<1x1x128xf32>
    %82 = arith.subf %81, %80 : vector<1x1x128xf32>
    %83 = vector.broadcast %78 : vector<1x1x128xf32> to vector<7x7x128xf32>
    %84 = arith.mulf %61, %83 : vector<7x7x128xf32>
    %85 = vector.broadcast %82 : vector<1x1x128xf32> to vector<7x7x128xf32>
    %86 = arith.addf %84, %85 : vector<7x7x128xf32>
    %c0_41 = arith.constant 0 : index
    %c0_42 = arith.constant 0 : index
    %c0_43 = arith.constant 0 : index
    %87 = vector.load %arg10[%c0_41, %c0_42, %c0_43] : memref<7x7x256xf32, #tpu.memory_space<vmem>>, vector<7x7x128xf32>
    tpu.vector_store %arg10[%c0_41, %c0_42, %c0_43], %86 {strides = array<i32>} : memref<7x7x256xf32, #tpu.memory_space<vmem>>, vector<7x7x128xf32>,
    %88 = vector.extract_strided_slice %32 {offsets = [0, 128], sizes = [56, 128], strides = [1, 1]} : vector<56x256xf32> to vector<56x128xf32>
    %89 = vector.extract_strided_slice %33 {offsets = [0, 128], sizes = [56, 128], strides = [1, 1]} : vector<56x256xf32> to vector<56x128xf32>
    %90 = vector.extract_strided_slice %34 {offsets = [0, 128], sizes = [56, 128], strides = [1, 1]} : vector<56x256xf32> to vector<56x128xf32>
    %91 = vector.extract_strided_slice %35 {offsets = [0, 128], sizes = [56, 128], strides = [1, 1]} : vector<56x256xf32> to vector<56x128xf32>
    %92 = vector.extract_strided_slice %36 {offsets = [0, 128], sizes = [56, 128], strides = [1, 1]} : vector<56x256xf32> to vector<56x128xf32>
    %93 = vector.extract_strided_slice %37 {offsets = [0, 128], sizes = [56, 128], strides = [1, 1]} : vector<56x256xf32> to vector<56x128xf32>
    %94 = tpu.concatenate %88, %89, %90, %91, %92, %93 in 1 : vector<56x128xf32>, vector<56x128xf32>, vector<56x128xf32>, vector<56x128xf32>, vector<56x128xf32>, vector<56x128xf32> -> vector<56x768xf32>
    %95 = arith.truncf %94 : vector<56x768xf32> to vector<56x768xbf16>
    %96 = vector.extract_strided_slice %32 {offsets = [0, 128], sizes = [56, 128], strides = [1, 1]} : vector<56x256xf32> to vector<56x128xf32>
    %97 = vector.extract_strided_slice %34 {offsets = [0, 128], sizes = [56, 128], strides = [1, 1]} : vector<56x256xf32> to vector<56x128xf32>
    %98 = vector.extract_strided_slice %36 {offsets = [0, 128], sizes = [56, 128], strides = [1, 1]} : vector<56x256xf32> to vector<56x128xf32>
    %99 = tpu.concatenate %96, %97, %98 in 1 : vector<56x128xf32>, vector<56x128xf32>, vector<56x128xf32> -> vector<56x384xf32>
    %100 = arith.truncf %99 : vector<56x384xf32> to vector<56x384xbf16>
    %c1 = arith.constant 1 : index
    %c0_44 = arith.constant 0 : index
    %c0_45 = arith.constant 0 : index
    %101 = vector.load %arg6[%c1, %c0_44, %c0_45] : memref<2x768x128xbf16, #tpu.memory_space<vmem>>, vector<1x768x128xbf16>
    %102 = vector.shape_cast %101 : vector<1x768x128xbf16> to vector<768x128xbf16>
    %cst_46 = arith.constant dense<0.000000e+00> : vector<56x128xf32>
    %103 = tpu.matmul %95, %102, %cst_46 {dimension_numbers = #tpu.dot_dimension_numbers<[1], [0], [0], [1], [0, 0, 1, 1], [], []>} : vector<56x768xbf16>, vector<768x128xbf16>, vector<56x128xf32> -> vector<56x128xf32>
    %c1_47 = arith.constant 1 : index
    %c0_48 = arith.constant 0 : index
    %c0_49 = arith.constant 0 : index
    %104 = vector.load %arg7[%c1_47, %c0_48, %c0_49] : memref<2x384x128xbf16, #tpu.memory_space<vmem>>, vector<1x384x128xbf16>
    %105 = vector.shape_cast %104 : vector<1x384x128xbf16> to vector<384x128xbf16>
    %cst_50 = arith.constant dense<0.000000e+00> : vector<56x128xf32>
    %106 = tpu.matmul %100, %105, %cst_50 {dimension_numbers = #tpu.dot_dimension_numbers<[1], [0], [0], [1], [0, 0, 1, 1], [], []>} : vector<56x384xbf16>, vector<384x128xbf16>, vector<56x128xf32> -> vector<56x128xf32>
    %107 = vector.shape_cast %103 : vector<56x128xf32> to vector<7x8x128xf32>
    %108 = vector.shape_cast %106 : vector<56x128xf32> to vector<7x8x128xf32>
    %109 = vector.extract_strided_slice %107 {offsets = [0, 0, 0], sizes = [7, 7, 128], strides = [1, 1, 1]} : vector<7x8x128xf32> to vector<7x7x128xf32>
    %110 = vector.extract_strided_slice %108 {offsets = [0, 1, 0], sizes = [7, 7, 128], strides = [1, 1, 1]} : vector<7x8x128xf32> to vector<7x7x128xf32>
    %111 = arith.addf %109, %110 : vector<7x7x128xf32>
    %cst_51 = arith.constant dense<0.000000e+00> : vector<128xf32>
    %112 = vector.multi_reduction <add>, %111, %cst_51 [0, 1] : vector<7x7x128xf32> to vector<128xf32>
    %113 = vector.shape_cast %112 : vector<128xf32> to vector<1x1x128xf32>
    %cst_52 = arith.constant 0.0204081628 : f32
    %114 = vector.broadcast %cst_52 : f32 to vector<1x1x128xf32>
    %115 = arith.mulf %113, %114 : vector<1x1x128xf32>
    %116 = arith.mulf %111, %111 : vector<7x7x128xf32>
    %cst_53 = arith.constant dense<0.000000e+00> : vector<128xf32>
    %117 = vector.multi_reduction <add>, %116, %cst_53 [0, 1] : vector<7x7x128xf32> to vector<128xf32>
    %118 = vector.shape_cast %117 : vector<128xf32> to vector<1x1x128xf32>
    %cst_54 = arith.constant 0.0204081628 : f32
    %119 = vector.broadcast %cst_54 : f32 to vector<1x1x128xf32>
    %120 = arith.mulf %118, %119 : vector<1x1x128xf32>
    %121 = arith.mulf %115, %115 : vector<1x1x128xf32>
    %122 = arith.subf %120, %121 : vector<1x1x128xf32>
    %cst_55 = arith.constant 9.99999974E-6 : f32
    %123 = vector.broadcast %cst_55 : f32 to vector<1x1x128xf32>
    %124 = arith.addf %122, %123 : vector<1x1x128xf32>
    %125 = math.rsqrt %124 : vector<1x1x128xf32>
    %c0_56 = arith.constant 0 : index
    %c128_57 = arith.constant 128 : index
    %126 = vector.load %arg8[%c0_56, %c128_57] : memref<1x256xf32, #tpu.memory_space<vmem>>, vector<1x128xf32>
    %127 = vector.shape_cast %126 : vector<1x128xf32> to vector<1x1x128xf32>
    %128 = arith.mulf %125, %127 : vector<1x1x128xf32>
    %c0_58 = arith.constant 0 : index
    %c128_59 = arith.constant 128 : index
    %129 = vector.load %arg9[%c0_58, %c128_59] : memref<1x256xf32, #tpu.memory_space<vmem>>, vector<1x128xf32>
    %130 = arith.mulf %115, %128 : vector<1x1x128xf32>
    %131 = vector.shape_cast %129 : vector<1x128xf32> to vector<1x1x128xf32>
    %132 = arith.subf %131, %130 : vector<1x1x128xf32>
    %133 = vector.broadcast %128 : vector<1x1x128xf32> to vector<7x7x128xf32>
    %134 = arith.mulf %111, %133 : vector<7x7x128xf32>
    %135 = vector.broadcast %132 : vector<1x1x128xf32> to vector<7x7x128xf32>
    %136 = arith.addf %134, %135 : vector<7x7x128xf32>
    %c0_60 = arith.constant 0 : index
    %c0_61 = arith.constant 0 : index
    %c128_62 = arith.constant 128 : index
    %137 = vector.load %arg10[%c0_60, %c0_61, %c128_62] : memref<7x7x256xf32, #tpu.memory_space<vmem>>, vector<7x7x128xf32>
    tpu.vector_store %arg10[%c0_60, %c0_61, %c128_62], %136 {strides = array<i32>} : memref<7x7x256xf32, #tpu.memory_space<vmem>>, vector<7x7x128xf32>,
    return
  }
  func.func @transform_0(%arg0: i32) -> (i32, i32) {
    %c0_i32 = arith.constant 0 : i32
    %c0_i32_0 = arith.constant 0 : i32
    %c0_i32_1 = arith.constant 0 : i32
    return %c0_i32, %c0_i32_0 : i32, i32
  }
  func.func @transform_1(%arg0: i32) -> (i32, i32) {
    %c0_i32 = arith.constant 0 : i32
    %c0_i32_0 = arith.constant 0 : i32
    return %c0_i32, %arg0 : i32, i32
  }
  func.func @transform_2(%arg0: i32) -> (i32, i32) {
    %c0_i32 = arith.constant 0 : i32
    %c0_i32_0 = arith.constant 0 : i32
    return %c0_i32, %arg0 : i32, i32
  }
  func.func @transform_3(%arg0: i32) -> (i32, i32) {
    %c0_i32 = arith.constant 0 : i32
    %c0_i32_0 = arith.constant 0 : i32
    return %c0_i32, %arg0 : i32, i32
  }
  func.func @transform_4(%arg0: i32) -> (i32, i32) {
    %c0_i32 = arith.constant 0 : i32
    %c0_i32_0 = arith.constant 0 : i32
    %c0_i32_1 = arith.constant 0 : i32
    return %c0_i32, %c0_i32_0 : i32, i32
  }
  func.func @transform_5(%arg0: i32) -> (i32, i32, i32) {
    %c0_i32 = arith.constant 0 : i32
    %c0_i32_0 = arith.constant 0 : i32
    %c0_i32_1 = arith.constant 0 : i32
    return %arg0, %c0_i32, %c0_i32_0 : i32, i32, i32
  }
  func.func @transform_6(%arg0: i32) -> (i32, i32, i32) {
    %c0_i32 = arith.constant 0 : i32
    %c0_i32_0 = arith.constant 0 : i32
    %c0_i32_1 = arith.constant 0 : i32
    return %arg0, %c0_i32, %c0_i32_0 : i32, i32, i32
  }
  func.func @transform_7(%arg0: i32) -> (i32, i32) {
    %c0_i32 = arith.constant 0 : i32
    %c0_i32_0 = arith.constant 0 : i32
    return %c0_i32, %arg0 : i32, i32
  }
  func.func @transform_8(%arg0: i32) -> (i32, i32) {
    %c0_i32 = arith.constant 0 : i32
    %c0_i32_0 = arith.constant 0 : i32
    return %c0_i32, %arg0 : i32, i32
  }
  func.func @transform_9(%arg0: i32) -> (i32, i32, i32) {
    %c0_i32 = arith.constant 0 : i32
    %c0_i32_0 = arith.constant 0 : i32
    %c0_i32_1 = arith.constant 0 : i32
    return %c0_i32, %c0_i32_0, %arg0 : i32, i32, i32
  }
}

</mosaic_0001>

<llo_original>
// kernel: forward.1
$region0: #{forward.1}
  #allocation0 [shape = 'u32[]', space=smem, size = 0x4, offset = 0x4, fixed_abs, tag = 'smem constant byte address 0x4 - core index']
  #allocation1 [shape = 'u32[144,128]{1,0:T(1,128)}', space=vmem, size = 0x12000, scoped, tag = 'internal scratch']
  #allocation2 [shape = 'f32[256,256]{1,0:T(8,128)}', space=vmem, size = 0x40000, scoped, tag = 'scratch operand']
  %s0 = inlined_call_operand.vmem [shape: bf16[256,576], index: 0, kind: input, shape index: {}]
  %s1 = inlined_call_operand.vmem [shape: bf16[576,2048], index: 1, kind: input, shape index: {}]
  %s2 = inlined_call_operand.vmem [shape: f32[1,2048], index: 2, kind: input, shape index: {}]
  %s3 = inlined_call_operand.vmem [shape: f32[1,2048], index: 3, kind: input, shape index: {}]
  %s4 = inlined_call_operand.vmem [shape: f32[256,1], index: 4, kind: input, shape index: {}]
  %s5 = inlined_call_operand.vmem [shape: bf16[16,768,128], index: 5, kind: input, shape index: {}]
  %s6 = inlined_call_operand.vmem [shape: bf16[16,384,128], index: 6, kind: input, shape index: {}]
  %s7 = inlined_call_operand.vmem [shape: f32[1,2048], index: 7, kind: input, shape index: {}]
  %s8 = inlined_call_operand.vmem [shape: f32[1,2048], index: 8, kind: input, shape index: {}]
  %s9 = inlined_call_operand.vmem [shape: f32[7,7,2048], index: 9, kind: output, shape index: {}]
  %s10 = sld [smem:[#allocation0]]
  $region126: #{forward.1} parent=0
    _
  %s12 = ssub.s32 1, %s10
  %s13 = scalar_select 0, %s12, %s10
  $region1: #{forward.1} parent=0
    #allocation3 [shape = 'u8[589824]{0}', space=vmem, size = 0x90000, scoped, tag = 'input window, operand 1']
    #allocation4 [shape = 'u8[114688]{0}', space=vmem, size = 0x1c000, scoped, tag = 'output window, operand 0']
    loop: start=0, step=1, limit=10
    $region2: #{forward.1} parent=1 // loop_pre_header
      _
    $region3: #{forward.1} parent=1 // loop_header
      %s15 = sphi 0, %s19
      %p16 = scmp.ge.s32.totalorder %s15, 10
      %s23 = sphi 0, %s23
      %s25 = sphi 0, %s23
      %s26 = sphi 0, %s25
      %s40 = sphi 0, %s26
      %s46 = sphi 0, %s48
      %s49 = sphi 0, %s46
      %s50 = sphi 0, %s49
      %s66 = sphi 0, %s50
      %s72 = sphi 0, %s74
      %s75 = sphi 0, %s72
      %s76 = sphi 0, %s75
      %s92 = sphi 0, %s76
      %s98 = sphi 0, %s100
      %s101 = sphi 0, %s98
      %s102 = sphi 0, %s101
      %s118 = sphi 0, %s102
      %s122 = sphi 0, %s122
      %s124 = sphi 0, %s122
      %s125 = sphi 0, %s124
      %s139 = sphi 0, %s125
      %s145 = sphi 0, %s147
      %s148 = sphi 0, %s145
      %s149 = sphi 0, %s148
      %s165 = sphi 0, %s149
      %s171 = sphi 0, %s173
      %s174 = sphi 0, %s171
      %s175 = sphi 0, %s174
      %s191 = sphi 0, %s175
      %s197 = sphi 0, %s199
      %s200 = sphi 0, %s197
      %s201 = sphi 0, %s200
      %s217 = sphi 0, %s201
      %s223 = sphi 0, %s225
      %s226 = sphi 0, %s223
      %s227 = sphi 0, %s226
      %s243 = sphi 0, %s227
      %s249 = sphi 0, %s251
      %s252 = sphi 0, %s249
      %s253 = sphi 0, %s252
      %s269 = sphi 0, %s253
    $region4: #{forward.1} parent=1 // loop_header_branch
      %18 = sbr.rel (%p16) target = $region8
    $region5: #{forward.1} parent=1 // loop_body
      %s20 = ssub.s32 %s15, 1
      %s21 = ssub.s32 %s15, 2
      %s22 = sadd.s32 %s15, 1
      %s24 = sadd.s32 %s23, 1
      %p27 = scmp.eq.s32.totalorder %s15, 7
      %p28 = scmp.ne.s32.totalorder %s23, %s25
      %p29 = scmp.eq.s32.totalorder %s15, 0
      %p30 = por %p28, %p29
      %p31 = scmp.ne.s32.totalorder %s23, %s25
      %p32 = scmp.eq.s32.totalorder %s20, 7
      %p33 = por %p31, %p32
      %p34 = scmp.ne.s32.totalorder %s25, %s26
      %p35 = scmp.eq.s32.totalorder %s20, 0
      %p36 = por %p34, %p35
      %p37 = scmp.ne.s32.totalorder %s25, %s26
      %p38 = scmp.eq.s32.totalorder %s21, 7
      %p39 = por %p37, %p38
      %p41 = scmp.ne.s32.totalorder %s26, %s40
      %p42 = scmp.eq.s32.totalorder %s21, 0
      %p43 = por %p41, %p42
      %s44 = ssub.s32 %s15, %s22
      %p45 = scmp.eq.s32.totalorder %s44, 0
      %s47 = sadd.s32 %s46, 1
      %s48 = scalar_select %p45, %s46, %s47
      %p51 = pneg %p45
      %p52 = scmp.eq.s32.totalorder %s15, 7
      %p53 = por %p51, %p52
      %p54 = scmp.ne.s32.totalorder %s46, %s49
      %p55 = scmp.eq.s32.totalorder %s15, 0
      %p56 = por %p54, %p55
      %p57 = scmp.ne.s32.totalorder %s46, %s49
      %p58 = scmp.eq.s32.totalorder %s20, 7
      %p59 = por %p57, %p58
      %p60 = scmp.ne.s32.totalorder %s49, %s50
      %p61 = scmp.eq.s32.totalorder %s20, 0
      %p62 = por %p60, %p61
      %p63 = scmp.ne.s32.totalorder %s49, %s50
      %p64 = scmp.eq.s32.totalorder %s21, 7
      %p65 = por %p63, %p64
      %p67 = scmp.ne.s32.totalorder %s50, %s66
      %p68 = scmp.eq.s32.totalorder %s21, 0
      %p69 = por %p67, %p68
      %s70 = ssub.s32 %s15, %s22
      %p71 = scmp.eq.s32.totalorder %s70, 0
      %s73 = sadd.s32 %s72, 1
      %s74 = scalar_select %p71, %s72, %s73
      %p77 = pneg %p71
      %p78 = scmp.eq.s32.totalorder %s15, 7
      %p79 = por %p77, %p78
      %p80 = scmp.ne.s32.totalorder %s72, %s75
      %p81 = scmp.eq.s32.totalorder %s15, 0
      %p82 = por %p80, %p81
      %p83 = scmp.ne.s32.totalorder %s72, %s75
      %p84 = scmp.eq.s32.totalorder %s20, 7
      %p85 = por %p83, %p84
      %p86 = scmp.ne.s32.totalorder %s75, %s76
      %p87 = scmp.eq.s32.totalorder %s20, 0
      %p88 = por %p86, %p87
      %p89 = scmp.ne.s32.totalorder %s75, %s76
      %p90 = scmp.eq.s32.totalorder %s21, 7
      %p91 = por %p89, %p90
      %p93 = scmp.ne.s32.totalorder %s76, %s92
      %p94 = scmp.eq.s32.totalorder %s21, 0
      %p95 = por %p93, %p94
      %s96 = ssub.s32 %s15, %s22
      %p97 = scmp.eq.s32.totalorder %s96, 0
      %s99 = sadd.s32 %s98, 1
      %s100 = scalar_select %p97, %s98, %s99
      %p103 = pneg %p97
      %p104 = scmp.eq.s32.totalorder %s15, 7
      %p105 = por %p103, %p104
      %p106 = scmp.ne.s32.totalorder %s98, %s101
      %p107 = scmp.eq.s32.totalorder %s15, 0
      %p108 = por %p106, %p107
      %p109 = scmp.ne.s32.totalorder %s98, %s101
      %p110 = scmp.eq.s32.totalorder %s20, 7
      %p111 = por %p109, %p110
      %p112 = scmp.ne.s32.totalorder %s101, %s102
      %p113 = scmp.eq.s32.totalorder %s20, 0
      %p114 = por %p112, %p113
      %p115 = scmp.ne.s32.totalorder %s101, %s102
      %p116 = scmp.eq.s32.totalorder %s21, 7
      %p117 = por %p115, %p116
      %p119 = scmp.ne.s32.totalorder %s102, %s118
      %p120 = scmp.eq.s32.totalorder %s21, 0
      %p121 = por %p119, %p120
      %s123 = sadd.s32 %s122, 1
      %p126 = scmp.eq.s32.totalorder %s15, 7
      %p127 = scmp.ne.s32.totalorder %s122, %s124
      %p128 = scmp.eq.s32.totalorder %s15, 0
      %p129 = por %p127, %p128
      %p130 = scmp.ne.s32.totalorder %s122, %s124
      %p131 = scmp.eq.s32.totalorder %s20, 7
      %p132 = por %p130, %p131
      %p133 = scmp.ne.s32.totalorder %s124, %s125
      %p134 = scmp.eq.s32.totalorder %s20, 0
      %p135 = por %p133, %p134
      %p136 = scmp.ne.s32.totalorder %s124, %s125
      %p137 = scmp.eq.s32.totalorder %s21, 7
      %p138 = por %p136, %p137
      %p140 = scmp.ne.s32.totalorder %s125, %s139
      %p141 = scmp.eq.s32.totalorder %s21, 0
      %p142 = por %p140, %p141
      %s143 = ssub.s32 %s15, %s22
      %p144 = scmp.eq.s32.totalorder %s143, 0
      %s146 = sadd.s32 %s145, 1
      %s147 = scalar_select %p144, %s145, %s146
      %p150 = pneg %p144
      %p151 = scmp.eq.s32.totalorder %s15, 7
      %p152 = por %p150, %p151
      %p153 = scmp.ne.s32.totalorder %s145, %s148
      %p154 = scmp.eq.s32.totalorder %s15, 0
      %p155 = por %p153, %p154
      %p156 = scmp.ne.s32.totalorder %s145, %s148
      %p157 = scmp.eq.s32.totalorder %s20, 7
      %p158 = por %p156, %p157
      %p159 = scmp.ne.s32.totalorder %s148, %s149
      %p160 = scmp.eq.s32.totalorder %s20, 0
      %p161 = por %p159, %p160
      %p162 = scmp.ne.s32.totalorder %s148, %s149
      %p163 = scmp.eq.s32.totalorder %s21, 7
      %p164 = por %p162, %p163
      %p166 = scmp.ne.s32.totalorder %s149, %s165
      %p167 = scmp.eq.s32.totalorder %s21, 0
      %p168 = por %p166, %p167
      %s169 = ssub.s32 %s15, %s22
      %p170 = scmp.eq.s32.totalorder %s169, 0
      %s172 = sadd.s32 %s171, 1
      %s173 = scalar_select %p170, %s171, %s172
      %p176 = pneg %p170
      %p177 = scmp.eq.s32.totalorder %s15, 7
      %p178 = por %p176, %p177
      %p179 = scmp.ne.s32.totalorder %s171, %s174
      %p180 = scmp.eq.s32.totalorder %s15, 0
      %p181 = por %p179, %p180
      %p182 = scmp.ne.s32.totalorder %s171, %s174
      %p183 = scmp.eq.s32.totalorder %s20, 7
      %p184 = por %p182, %p183
      %p185 = scmp.ne.s32.totalorder %s174, %s175
      %p186 = scmp.eq.s32.totalorder %s20, 0
      %p187 = por %p185, %p186
      %p188 = scmp.ne.s32.totalorder %s174, %s175
      %p189 = scmp.eq.s32.totalorder %s21, 7
      %p190 = por %p188, %p189
      %p192 = scmp.ne.s32.totalorder %s175, %s191
      %p193 = scmp.eq.s32.totalorder %s21, 0
      %p194 = por %p192, %p193
      %s195 = ssub.s32 %s15, %s22
      %p196 = scmp.eq.s32.totalorder %s195, 0
      %s198 = sadd.s32 %s197, 1
      %s199 = scalar_select %p196, %s197, %s198
      %p202 = pneg %p196
      %p203 = scmp.eq.s32.totalorder %s15, 7
      %p204 = por %p202, %p203
      %p205 = scmp.ne.s32.totalorder %s197, %s200
      %p206 = scmp.eq.s32.totalorder %s15, 0
      %p207 = por %p205, %p206
      %p208 = scmp.ne.s32.totalorder %s197, %s200
      %p209 = scmp.eq.s32.totalorder %s20, 7
      %p210 = por %p208, %p209
      %p211 = scmp.ne.s32.totalorder %s200, %s201
      %p212 = scmp.eq.s32.totalorder %s20, 0
      %p213 = por %p211, %p212
      %p214 = scmp.ne.s32.totalorder %s200, %s201
      %p215 = scmp.eq.s32.totalorder %s21, 7
      %p216 = por %p214, %p215
      %p218 = scmp.ne.s32.totalorder %s201, %s217
      %p219 = scmp.eq.s32.totalorder %s21, 0
      %p220 = por %p218, %p219
      %s221 = ssub.s32 %s15, %s22
      %p222 = scmp.eq.s32.totalorder %s221, 0
      %s224 = sadd.s32 %s223, 1
      %s225 = scalar_select %p222, %s223, %s224
      %p228 = pneg %p222
      %p229 = scmp.eq.s32.totalorder %s15, 7
      %p230 = por %p228, %p229
      %p231 = scmp.ne.s32.totalorder %s223, %s226
      %p232 = scmp.eq.s32.totalorder %s15, 0
      %p233 = por %p231, %p232
      %p234 = scmp.ne.s32.totalorder %s223, %s226
      %p235 = scmp.eq.s32.totalorder %s20, 7
      %p236 = por %p234, %p235
      %p237 = scmp.ne.s32.totalorder %s226, %s227
      %p238 = scmp.eq.s32.totalorder %s20, 0
      %p239 = por %p237, %p238
      %p240 = scmp.ne.s32.totalorder %s226, %s227
      %p241 = scmp.eq.s32.totalorder %s21, 7
      %p242 = por %p240, %p241
      %p244 = scmp.ne.s32.totalorder %s227, %s243
      %p245 = scmp.eq.s32.totalorder %s21, 0
      %p246 = por %p244, %p245
      %s247 = ssub.s32 %s15, %s22
      %p248 = scmp.eq.s32.totalorder %s247, 0
      %s250 = sadd.s32 %s249, 1
      %s251 = scalar_select %p248, %s249, %s250
      %p254 = pneg %p248
      %p255 = scmp.eq.s32.totalorder %s15, 7
      %p256 = por %p254, %p255
      %p257 = scmp.ne.s32.totalorder %s249, %s252
      %p258 = scmp.eq.s32.totalorder %s15, 0
      %p259 = por %p257, %p258
      %p260 = scmp.ne.s32.totalorder %s249, %s252
      %p261 = scmp.eq.s32.totalorder %s20, 7
      %p262 = por %p260, %p261
      %p263 = scmp.ne.s32.totalorder %s252, %s253
      %p264 = scmp.eq.s32.totalorder %s20, 0
      %p265 = por %p263, %p264
      %p266 = scmp.ne.s32.totalorder %s252, %s253
      %p267 = scmp.eq.s32.totalorder %s21, 7
      %p268 = por %p266, %p267
      %p270 = scmp.ne.s32.totalorder %s253, %s269
      %p271 = scmp.eq.s32.totalorder %s21, 0
      %p272 = por %p270, %p271
      %p273 = scmp.le.s32.totalorder 1, %s15
      %p274 = scmp.lt.s32.totalorder %s15, 9
      %p275 = pnand %p273, %p274
      %p276 = pneg %p275
      // Predicated region
      $region9: #{forward.1} parent=5 // pred_check
        _
      $region10: #{forward.1} parent=5 // pred_check_branch
        %278 = sbr.rel (%p275) target = $region12
      $region11: #{forward.1} parent=5 // pred_region
        %s279 = ssub.s32 %s15, 1
        // Predicated region
        $region13: #{forward.1} parent=11 // pred_check
          %p280 = pneg %p36
        $region14: #{forward.1} parent=11 // pred_check_branch
          %282 = sbr.rel (%p280) target = $region16
        $region15: #{forward.1} parent=11 // pred_region
          _
        $region16: #{forward.1} parent=11 // pred_fallthru
          _
        // Predicated region
        $region17: #{forward.1} parent=11 // pred_check
          %p283 = pneg %p135
        $region18: #{forward.1} parent=11 // pred_check_branch
          %285 = sbr.rel (%p283) target = $region20
        $region19: #{forward.1} parent=11 // pred_region
          _
        $region20: #{forward.1} parent=11 // pred_fallthru
          _
      $region12: #{forward.1} parent=5 // pred_fallthru
        _
      %p286 = scmp.lt.s32.totalorder %s15, 8
      // Predicated region
      $region21: #{forward.1} parent=5 // pred_check
        %p287 = pneg %p286
      $region22: #{forward.1} parent=5 // pred_check_branch
        %289 = sbr.rel (%p287) target = $region24
      $region23: #{forward.1} parent=5 // pred_region
        // Predicated region
        $region25: #{forward.1} parent=23 // pred_check
          %p290 = pneg %p56
        $region26: #{forward.1} parent=23 // pred_check_branch
          %292 = sbr.rel (%p290) target = $region28
        $region27: #{forward.1} parent=23 // pred_region
          %s293 = sand.u32 %s46, 1
          %s294 = sand.u32 %s46, 1
          %s295 = smul.addr %s294, 576
          %s296 = scalar_lea.vmem [#allocation3], %s295
          %s297 = smul.u32 2, %s15
          %s298 = smul.addr %s297, 4
          %s299 = scalar_lea.vmem %s1, %s298
          // Predicated region
          $region29: #{forward.1} parent=27 // pred_check
            _
          $region30: #{forward.1} parent=27 // pred_check_branch
            %301 = sbr.rel (0) target = $region32
          $region31: #{forward.1} parent=27 // pred_region
            // Predicated region
            $region33: #{forward.1} parent=31 // pred_check
              _
            $region34: #{forward.1} parent=31 // pred_check_branch
              %303 = sbr.rel (0) target = $region36
            $region35: #{forward.1} parent=31 // pred_region
              // Predicated region
              $region48: #{forward.1} parent=35 // pred_check
                _
              $region49: #{forward.1} parent=35 // pred_check_branch
                %460 = sbr.rel (0) target = $region51
              $region50: #{forward.1} parent=35 // pred_region
                loop: start=0, step=1, limit=1
                $region52: #{forward.1} parent=50 // loop_pre_header
                  _
                $region53: #{forward.1} parent=50 // loop_header
                  %s462 = sphi 0, %s466
                  %p463 = scmp.ge.s32.totalorder %s462, 1
                  %s467 = sphi %s299, %s299
                  %s468 = sphi %s296, %s296
                $region54: #{forward.1} parent=50 // loop_header_branch
                  %465 = sbr.rel (%p463) target = $region58
                $region55: #{forward.1} parent=50 // loop_body
                  %v469 = vld [vmem:[%s467] sm:$0xff]
                  %470 = vst [vmem:[%s468] sm:$0xff] %v469
                  %v471 = vld [vmem:[%s467 + $0x40] sm:$0xff]
                  %472 = vst [vmem:[%s468 + $0x8] sm:$0xff] %v471
                  %v473 = vld [vmem:[%s467 + $0x80] sm:$0xff]
                  %474 = vst [vmem:[%s468 + $0x10] sm:$0xff] %v473
                  %v475 = vld [vmem:[%s467 + $0xc0] sm:$0xff]
                  %476 = vst [vmem:[%s468 + $0x18] sm:$0xff] %v475
                  %v477 = vld [vmem:[%s467 + $0x100] sm:$0xff]
                  %478 = vst [vmem:[%s468 + $0x20] sm:$0xff] %v477
                  %v479 = vld [vmem:[%s467 + $0x140] sm:$0xff]
                  %480 = vst [vmem:[%s468 + $0x28] sm:$0xff] %v479
                  %v481 = vld [vmem:[%s467 + $0x180] sm:$0xff]
                  %482 = vst [vmem:[%s468 + $0x30] sm:$0xff] %v481
                  %v483 = vld [vmem:[%s467 + $0x1c0] sm:$0xff]
                  %484 = vst [vmem:[%s468 + $0x38] sm:$0xff] %v483
                  %v485 = vld [vmem:[%s467 + $0x200] sm:$0xff]
                  %486 = vst [vmem:[%s468 + $0x40] sm:$0xff] %v485
                  %v487 = vld [vmem:[%s467 + $0x240] sm:$0xff]
                  %488 = vst [vmem:[%s468 + $0x48] sm:$0xff] %v487
                  %v489 = vld [vmem:[%s467 + $0x280] sm:$0xff]
                  %490 = vst [vmem:[%s468 + $0x50] sm:$0xff] %v489
                  %v491 = vld [vmem:[%s467 + $0x2c0] sm:$0xff]
                  %492 = vst [vmem:[%s468 + $0x58] sm:$0xff] %v491
                  %v493 = vld [vmem:[%s467 + $0x300] sm:$0xff]
                  %494 = vst [vmem:[%s468 + $0x60] sm:$0xff] %v493
                  %v495 = vld [vmem:[%s467 + $0x340] sm:$0xff]
                  %496 = vst [vmem:[%s468 + $0x68] sm:$0xff] %v495
                  %v497 = vld [vmem:[%s467 + $0x380] sm:$0xff]
                  %498 = vst [vmem:[%s468 + $0x70] sm:$0xff] %v497
                  %v499 = vld [vmem:[%s467 + $0x3c0] sm:$0xff]
                  %500 = vst [vmem:[%s468 + $0x78] sm:$0xff] %v499
                  %v501 = vld [vmem:[%s467 + $0x400] sm:$0xff]
                  %502 = vst [vmem:[%s468 + $0x80] sm:$0xff] %v501
                  %v503 = vld [vmem:[%s467 + $0x440] sm:$0xff]
                  %504 = vst [vmem:[%s468 + $0x88] sm:$0xff] %v503
                  %v505 = vld [vmem:[%s467 + $0x480] sm:$0xff]
                  %506 = vst [vmem:[%s468 + $0x90] sm:$0xff] %v505
                  %v507 = vld [vmem:[%s467 + $0x4c0] sm:$0xff]
                  %508 = vst [vmem:[%s468 + $0x98] sm:$0xff] %v507
                  %v509 = vld [vmem:[%s467 + $0x500] sm:$0xff]
                  %510 = vst [vmem:[%s468 + $0xa0] sm:$0xff] %v509
                  %v511 = vld [vmem:[%s467 + $0x540] sm:$0xff]
                  %512 = vst [vmem:[%s468 + $0xa8] sm:$0xff] %v511
                  %v513 = vld [vmem:[%s467 + $0x580] sm:$0xff]
                  %514 = vst [vmem:[%s468 + $0xb0] sm:$0xff] %v513
                  %v515 = vld [vmem:[%s467 + $0x5c0] sm:$0xff]
                  %516 = vst [vmem:[%s468 + $0xb8] sm:$0xff] %v515
                  %v517 = vld [vmem:[%s467 + $0x600] sm:$0xff]
                  %518 = vst [vmem:[%s468 + $0xc0] sm:$0xff] %v517
                  %v519 = vld [vmem:[%s467 + $0x640] sm:$0xff]
                  %520 = vst [vmem:[%s468 + $0xc8] sm:$0xff] %v519
                  %v521 = vld [vmem:[%s467 + $0x680] sm:$0xff]
                  %522 = vst [vmem:[%s468 + $0xd0] sm:$0xff] %v521
                  %v523 = vld [vmem:[%s467 + $0x6c0] sm:$0xff]
                  %524 = vst [vmem:[%s468 + $0xd8] sm:$0xff] %v523
                  %v525 = vld [vmem:[%s467 + $0x700] sm:$0xff]
                  %526 = vst [vmem:[%s468 + $0xe0] sm:$0xff] %v525
                  %v527 = vld [vmem:[%s467 + $0x740] sm:$0xff]
                  %528 = vst [vmem:[%s468 + $0xe8] sm:$0xff] %v527
                  %v529 = vld [vmem:[%s467 + $0x780] sm:$0xff]
                  %530 = vst [vmem:[%s468 + $0xf0] sm:$0xff] %v529
                  %v531 = vld [vmem:[%s467 + $0x7c0] sm:$0xff]
                  %532 = vst [vmem:[%s468 + $0xf8] sm:$0xff] %v531
                  %v533 = vld [vmem:[%s467 + $0x800] sm:$0xff]
                  %534 = vst [vmem:[%s468 + $0x100] sm:$0xff] %v533
                  %v535 = vld [vmem:[%s467 + $0x840] sm:$0xff]
                  %536 = vst [vmem:[%s468 + $0x108] sm:$0xff] %v535
                  %v537 = vld [vmem:[%s467 + $0x880] sm:$0xff]
                  %538 = vst [vmem:[%s468 + $0x110] sm:$0xff] %v537
                  %v539 = vld [vmem:[%s467 + $0x8c0] sm:$0xff]
                  %540 = vst [vmem:[%s468 + $0x118] sm:$0xff] %v539
                  %v541 = vld [vmem:[%s467 + $0x900] sm:$0xff]
                  %542 = vst [vmem:[%s468 + $0x120] sm:$0xff] %v541
                  %v543 = vld [vmem:[%s467 + $0x940] sm:$0xff]
                  %544 = vst [vmem:[%s468 + $0x128] sm:$0xff] %v543
                  %v545 = vld [vmem:[%s467 + $0x980] sm:$0xff]
                  %546 = vst [vmem:[%s468 + $0x130] sm:$0xff] %v545
                  %v547 = vld [vmem:[%s467 + $0x9c0] sm:$0xff]
                  %548 = vst [vmem:[%s468 + $0x138] sm:$0xff] %v547
                  %v549 = vld [vmem:[%s467 + $0xa00] sm:$0xff]
                  %550 = vst [vmem:[%s468 + $0x140] sm:$0xff] %v549
                  %v551 = vld [vmem:[%s467 + $0xa40] sm:$0xff]
                  %552 = vst [vmem:[%s468 + $0x148] sm:$0xff] %v551
                  %v553 = vld [vmem:[%s467 + $0xa80] sm:$0xff]
                  %554 = vst [vmem:[%s468 + $0x150] sm:$0xff] %v553
                  %v555 = vld [vmem:[%s467 + $0xac0] sm:$0xff]
                  %556 = vst [vmem:[%s468 + $0x158] sm:$0xff] %v555
                  %v557 = vld [vmem:[%s467 + $0xb00] sm:$0xff]
                  %558 = vst [vmem:[%s468 + $0x160] sm:$0xff] %v557
                  %v559 = vld [vmem:[%s467 + $0xb40] sm:$0xff]
                  %560 = vst [vmem:[%s468 + $0x168] sm:$0xff] %v559
                  %v561 = vld [vmem:[%s467 + $0xb80] sm:$0xff]
                  %562 = vst [vmem:[%s468 + $0x170] sm:$0xff] %v561
                  %v563 = vld [vmem:[%s467 + $0xbc0] sm:$0xff]
                  %564 = vst [vmem:[%s468 + $0x178] sm:$0xff] %v563
                  %v565 = vld [vmem:[%s467 + $0xc00] sm:$0xff]
                  %566 = vst [vmem:[%s468 + $0x180] sm:$0xff] %v565
                  %v567 = vld [vmem:[%s467 + $0xc40] sm:$0xff]
                  %568 = vst [vmem:[%s468 + $0x188] sm:$0xff] %v567
                  %v569 = vld [vmem:[%s467 + $0xc80] sm:$0xff]
                  %570 = vst [vmem:[%s468 + $0x190] sm:$0xff] %v569
                  %v571 = vld [vmem:[%s467 + $0xcc0] sm:$0xff]
                  %572 = vst [vmem:[%s468 + $0x198] sm:$0xff] %v571
                  %v573 = vld [vmem:[%s467 + $0xd00] sm:$0xff]
                  %574 = vst [vmem:[%s468 + $0x1a0] sm:$0xff] %v573
                  %v575 = vld [vmem:[%s467 + $0xd40] sm:$0xff]
                  %576 = vst [vmem:[%s468 + $0x1a8] sm:$0xff] %v575
                  %v577 = vld [vmem:[%s467 + $0xd80] sm:$0xff]
                  %578 = vst [vmem:[%s468 + $0x1b0] sm:$0xff] %v577
                  %v579 = vld [vmem:[%s467 + $0xdc0] sm:$0xff]
                  %580 = vst [vmem:[%s468 + $0x1b8] sm:$0xff] %v579
                  %v581 = vld [vmem:[%s467 + $0xe00] sm:$0xff]
                  %582 = vst [vmem:[%s468 + $0x1c0] sm:$0xff] %v581
                  %v583 = vld [vmem:[%s467 + $0xe40] sm:$0xff]
                  %584 = vst [vmem:[%s468 + $0x1c8] sm:$0xff] %v583
                  %v585 = vld [vmem:[%s467 + $0xe80] sm:$0xff]
                  %586 = vst [vmem:[%s468 + $0x1d0] sm:$0xff] %v585
                  %v587 = vld [vmem:[%s467 + $0xec0] sm:$0xff]
                  %588 = vst [vmem:[%s468 + $0x1d8] sm:$0xff] %v587
                  %v589 = vld [vmem:[%s467 + $0xf00] sm:$0xff]
                  %590 = vst [vmem:[%s468 + $0x1e0] sm:$0xff] %v589
                  %v591 = vld [vmem:[%s467 + $0xf40] sm:$0xff]
                  %592 = vst [vmem:[%s468 + $0x1e8] sm:$0xff] %v591
                  %v593 = vld [vmem:[%s467 + $0xf80] sm:$0xff]
                  %594 = vst [vmem:[%s468 + $0x1f0] sm:$0xff] %v593
                  %v595 = vld [vmem:[%s467 + $0xfc0] sm:$0xff]
                  %596 = vst [vmem:[%s468 + $0x1f8] sm:$0xff] %v595
                  %v597 = vld [vmem:[%s467 + $0x1000] sm:$0xff]
                  %598 = vst [vmem:[%s468 + $0x200] sm:$0xff] %v597
                  %v599 = vld [vmem:[%s467 + $0x1040] sm:$0xff]
                  %600 = vst [vmem:[%s468 + $0x208] sm:$0xff] %v599
                  %v601 = vld [vmem:[%s467 + $0x1080] sm:$0xff]
                  %602 = vst [vmem:[%s468 + $0x210] sm:$0xff] %v601
                  %v603 = vld [vmem:[%s467 + $0x10c0] sm:$0xff]
                  %604 = vst [vmem:[%s468 + $0x218] sm:$0xff] %v603
                  %v605 = vld [vmem:[%s467 + $0x1100] sm:$0xff]
                  %606 = vst [vmem:[%s468 + $0x220] sm:$0xff] %v605
                  %v607 = vld [vmem:[%s467 + $0x1140] sm:$0xff]
                  %608 = vst [vmem:[%s468 + $0x228] sm:$0xff] %v607
                  %v609 = vld [vmem:[%s467 + $0x1180] sm:$0xff]
                  %610 = vst [vmem:[%s468 + $0x230] sm:$0xff] %v609
                  %v611 = vld [vmem:[%s467 + $0x11c0] sm:$0xff]
                  %612 = vst [vmem:[%s468 + $0x238] sm:$0xff] %v611
                $region56: #{forward.1} parent=50 // loop_footer
                  %s466 = sadd.s32 1, %s462
                $region57: #{forward.1} parent=50 // loop_footer_branch
                  %461 = sbr.rel target = $region53
                $region58: #{forward.1} parent=50 // loop_exit
                  _
              $region51: #{forward.1} parent=35 // pred_fallthru
                _
              // Predicated region
              $region59: #{forward.1} parent=35 // pred_check
                _
              $region60: #{forward.1} parent=35 // pred_check_branch
                %614 = sbr.rel target = $region62
              $region61: #{forward.1} parent=35 // pred_region
                _
              $region62: #{forward.1} parent=35 // pred_fallthru
                _
            $region36: #{forward.1} parent=31 // pred_fallthru
              _
            // Predicated region
            $region37: #{forward.1} parent=31 // pred_check
              _
            $region38: #{forward.1} parent=31 // pred_check_branch
              %305 = sbr.rel target = $region40
            $region39: #{forward.1} parent=31 // pred_region
              loop: start=0, step=1, limit=1
              $region41: #{forward.1} parent=39 // loop_pre_header
                _
              $region42: #{forward.1} parent=39 // loop_header
                %s308 = sphi 0, %s312
                %p309 = scmp.ge.s32.totalorder %s308, 1
                %s313 = sphi %s299, %s299
                %s314 = sphi %s296, %s296
              $region43: #{forward.1} parent=39 // loop_header_branch
                %311 = sbr.rel (%p309) target = $region47
              $region44: #{forward.1} parent=39 // loop_body
                %v315 = vld [vmem:[%s313] sm:$0xff]
                %316 = vst [vmem:[%s314] sm:$0xff] %v315
                %v317 = vld [vmem:[%s313 + $0x40] sm:$0xff]
                %318 = vst [vmem:[%s314 + $0x8] sm:$0xff] %v317
                %v319 = vld [vmem:[%s313 + $0x80] sm:$0xff]
                %320 = vst [vmem:[%s314 + $0x10] sm:$0xff] %v319
                %v321 = vld [vmem:[%s313 + $0xc0] sm:$0xff]
                %322 = vst [vmem:[%s314 + $0x18] sm:$0xff] %v321
                %v323 = vld [vmem:[%s313 + $0x100] sm:$0xff]
                %324 = vst [vmem:[%s314 + $0x20] sm:$0xff] %v323
                %v325 = vld [vmem:[%s313 + $0x140] sm:$0xff]
                %326 = vst [vmem:[%s314 + $0x28] sm:$0xff] %v325
                %v327 = vld [vmem:[%s313 + $0x180] sm:$0xff]
                %328 = vst [vmem:[%s314 + $0x30] sm:$0xff] %v327
                %v329 = vld [vmem:[%s313 + $0x1c0] sm:$0xff]
                %330 = vst [vmem:[%s314 + $0x38] sm:$0xff] %v329
                %v331 = vld [vmem:[%s313 + $0x200] sm:$0xff]
                %332 = vst [vmem:[%s314 + $0x40] sm:$0xff] %v331
                %v333 = vld [vmem:[%s313 + $0x240] sm:$0xff]
                %334 = vst [vmem:[%s314 + $0x48] sm:$0xff] %v333
                %v335 = vld [vmem:[%s313 + $0x280] sm:$0xff]
                %336 = vst [vmem:[%s314 + $0x50] sm:$0xff] %v335
                %v337 = vld [vmem:[%s313 + $0x2c0] sm:$0xff]
                %338 = vst [vmem:[%s314 + $0x58] sm:$0xff] %v337
                %v339 = vld [vmem:[%s313 + $0x300] sm:$0xff]
                %340 = vst [vmem:[%s314 + $0x60] sm:$0xff] %v339
                %v341 = vld [vmem:[%s313 + $0x340] sm:$0xff]
                %342 = vst [vmem:[%s314 + $0x68] sm:$0xff] %v341
                %v343 = vld [vmem:[%s313 + $0x380] sm:$0xff]
                %344 = vst [vmem:[%s314 + $0x70] sm:$0xff] %v343
                %v345 = vld [vmem:[%s313 + $0x3c0] sm:$0xff]
                %346 = vst [vmem:[%s314 + $0x78] sm:$0xff] %v345
                %v347 = vld [vmem:[%s313 + $0x400] sm:$0xff]
                %348 = vst [vmem:[%s314 + $0x80] sm:$0xff] %v347
                %v349 = vld [vmem:[%s313 + $0x440] sm:$0xff]
                %350 = vst [vmem:[%s314 + $0x88] sm:$0xff] %v349
                %v351 = vld [vmem:[%s313 + $0x480] sm:$0xff]
                %352 = vst [vmem:[%s314 + $0x90] sm:$0xff] %v351
                %v353 = vld [vmem:[%s313 + $0x4c0] sm:$0xff]
                %354 = vst [vmem:[%s314 + $0x98] sm:$0xff] %v353
                %v355 = vld [vmem:[%s313 + $0x500] sm:$0xff]
                %356 = vst [vmem:[%s314 + $0xa0] sm:$0xff] %v355
                %v357 = vld [vmem:[%s313 + $0x540] sm:$0xff]
                %358 = vst [vmem:[%s314 + $0xa8] sm:$0xff] %v357
                %v359 = vld [vmem:[%s313 + $0x580] sm:$0xff]
                %360 = vst [vmem:[%s314 + $0xb0] sm:$0xff] %v359
                %v361 = vld [vmem:[%s313 + $0x5c0] sm:$0xff]
                %362 = vst [vmem:[%s314 + $0xb8] sm:$0xff] %v361
                %v363 = vld [vmem:[%s313 + $0x600] sm:$0xff]
                %364 = vst [vmem:[%s314 + $0xc0] sm:$0xff] %v363
                %v365 = vld [vmem:[%s313 + $0x640] sm:$0xff]
                %366 = vst [vmem:[%s314 + $0xc8] sm:$0xff] %v365
                %v367 = vld [vmem:[%s313 + $0x680] sm:$0xff]
                %368 = vst [vmem:[%s314 + $0xd0] sm:$0xff] %v367
                %v369 = vld [vmem:[%s313 + $0x6c0] sm:$0xff]
                %370 = vst [vmem:[%s314 + $0xd8] sm:$0xff] %v369
                %v371 = vld [vmem:[%s313 + $0x700] sm:$0xff]
                %372 = vst [vmem:[%s314 + $0xe0] sm:$0xff] %v371
                %v373 = vld [vmem:[%s313 + $0x740] sm:$0xff]
                %374 = vst [vmem:[%s314 + $0xe8] sm:$0xff] %v373
                %v375 = vld [vmem:[%s313 + $0x780] sm:$0xff]
                %376 = vst [vmem:[%s314 + $0xf0] sm:$0xff] %v375
                %v377 = vld [vmem:[%s313 + $0x7c0] sm:$0xff]
                %378 = vst [vmem:[%s314 + $0xf8] sm:$0xff] %v377
                %v379 = vld [vmem:[%s313 + $0x800] sm:$0xff]
                %380 = vst [vmem:[%s314 + $0x100] sm:$0xff] %v379
                %v381 = vld [vmem:[%s313 + $0x840] sm:$0xff]
                %382 = vst [vmem:[%s314 + $0x108] sm:$0xff] %v381
                %v383 = vld [vmem:[%s313 + $0x880] sm:$0xff]
                %384 = vst [vmem:[%s314 + $0x110] sm:$0xff] %v383
                %v385 = vld [vmem:[%s313 + $0x8c0] sm:$0xff]
                %386 = vst [vmem:[%s314 + $0x118] sm:$0xff] %v385
                %v387 = vld [vmem:[%s313 + $0x900] sm:$0xff]
                %388 = vst [vmem:[%s314 + $0x120] sm:$0xff] %v387
                %v389 = vld [vmem:[%s313 + $0x940] sm:$0xff]
                %390 = vst [vmem:[%s314 + $0x128] sm:$0xff] %v389
                %v391 = vld [vmem:[%s313 + $0x980] sm:$0xff]
                %392 = vst [vmem:[%s314 + $0x130] sm:$0xff] %v391
                %v393 = vld [vmem:[%s313 + $0x9c0] sm:$0xff]
                %394 = vst [vmem:[%s314 + $0x138] sm:$0xff] %v393
                %v395 = vld [vmem:[%s313 + $0xa00] sm:$0xff]
                %396 = vst [vmem:[%s314 + $0x140] sm:$0xff] %v395
                %v397 = vld [vmem:[%s313 + $0xa40] sm:$0xff]
                %398 = vst [vmem:[%s314 + $0x148] sm:$0xff] %v397
                %v399 = vld [vmem:[%s313 + $0xa80] sm:$0xff]
                %400 = vst [vmem:[%s314 + $0x150] sm:$0xff] %v399
                %v401 = vld [vmem:[%s313 + $0xac0] sm:$0xff]
                %402 = vst [vmem:[%s314 + $0x158] sm:$0xff] %v401
                %v403 = vld [vmem:[%s313 + $0xb00] sm:$0xff]
                %404 = vst [vmem:[%s314 + $0x160] sm:$0xff] %v403
                %v405 = vld [vmem:[%s313 + $0xb40] sm:$0xff]
                %406 = vst [vmem:[%s314 + $0x168] sm:$0xff] %v405
                %v407 = vld [vmem:[%s313 + $0xb80] sm:$0xff]
                %408 = vst [vmem:[%s314 + $0x170] sm:$0xff] %v407
                %v409 = vld [vmem:[%s313 + $0xbc0] sm:$0xff]
                %410 = vst [vmem:[%s314 + $0x178] sm:$0xff] %v409
                %v411 = vld [vmem:[%s313 + $0xc00] sm:$0xff]
                %412 = vst [vmem:[%s314 + $0x180] sm:$0xff] %v411
                %v413 = vld [vmem:[%s313 + $0xc40] sm:$0xff]
                %414 = vst [vmem:[%s314 + $0x188] sm:$0xff] %v413
                %v415 = vld [vmem:[%s313 + $0xc80] sm:$0xff]
                %416 = vst [vmem:[%s314 + $0x190] sm:$0xff] %v415
                %v417 = vld [vmem:[%s313 + $0xcc0] sm:$0xff]
                %418 = vst [vmem:[%s314 + $0x198] sm:$0xff] %v417
                %v419 = vld [vmem:[%s313 + $0xd00] sm:$0xff]
                %420 = vst [vmem:[%s314 + $0x1a0] sm:$0xff] %v419
                %v421 = vld [vmem:[%s313 + $0xd40] sm:$0xff]
                %422 = vst [vmem:[%s314 + $0x1a8] sm:$0xff] %v421
                %v423 = vld [vmem:[%s313 + $0xd80] sm:$0xff]
                %424 = vst [vmem:[%s314 + $0x1b0] sm:$0xff] %v423
                %v425 = vld [vmem:[%s313 + $0xdc0] sm:$0xff]
                %426 = vst [vmem:[%s314 + $0x1b8] sm:$0xff] %v425
                %v427 = vld [vmem:[%s313 + $0xe00] sm:$0xff]
                %428 = vst [vmem:[%s314 + $0x1c0] sm:$0xff] %v427
                %v429 = vld [vmem:[%s313 + $0xe40] sm:$0xff]
                %430 = vst [vmem:[%s314 + $0x1c8] sm:$0xff] %v429
                %v431 = vld [vmem:[%s313 + $0xe80] sm:$0xff]
                %432 = vst [vmem:[%s314 + $0x1d0] sm:$0xff] %v431
                %v433 = vld [vmem:[%s313 + $0xec0] sm:$0xff]
                %434 = vst [vmem:[%s314 + $0x1d8] sm:$0xff] %v433
                %v435 = vld [vmem:[%s313 + $0xf00] sm:$0xff]
                %436 = vst [vmem:[%s314 + $0x1e0] sm:$0xff] %v435
                %v437 = vld [vmem:[%s313 + $0xf40] sm:$0xff]
                %438 = vst [vmem:[%s314 + $0x1e8] sm:$0xff] %v437
                %v439 = vld [vmem:[%s313 + $0xf80] sm:$0xff]
                %440 = vst [vmem:[%s314 + $0x1f0] sm:$0xff] %v439
                %v441 = vld [vmem:[%s313 + $0xfc0] sm:$0xff]
                %442 = vst [vmem:[%s314 + $0x1f8] sm:$0xff] %v441
                %v443 = vld [vmem:[%s313 + $0x1000] sm:$0xff]
                %444 = vst [vmem:[%s314 + $0x200] sm:$0xff] %v443
                %v445 = vld [vmem:[%s313 + $0x1040] sm:$0xff]
                %446 = vst [vmem:[%s314 + $0x208] sm:$0xff] %v445
                %v447 = vld [vmem:[%s313 + $0x1080] sm:$0xff]
                %448 = vst [vmem:[%s314 + $0x210] sm:$0xff] %v447
                %v449 = vld [vmem:[%s313 + $0x10c0] sm:$0xff]
                %450 = vst [vmem:[%s314 + $0x218] sm:$0xff] %v449
                %v451 = vld [vmem:[%s313 + $0x1100] sm:$0xff]
                %452 = vst [vmem:[%s314 + $0x220] sm:$0xff] %v451
                %v453 = vld [vmem:[%s313 + $0x1140] sm:$0xff]
                %454 = vst [vmem:[%s314 + $0x228] sm:$0xff] %v453
                %v455 = vld [vmem:[%s313 + $0x1180] sm:$0xff]
                %456 = vst [vmem:[%s314 + $0x230] sm:$0xff] %v455
                %v457 = vld [vmem:[%s313 + $0x11c0] sm:$0xff]
                %458 = vst [vmem:[%s314 + $0x238] sm:$0xff] %v457
              $region45: #{forward.1} parent=39 // loop_footer
                %s312 = sadd.s32 1, %s308
              $region46: #{forward.1} parent=39 // loop_footer_branch
                %307 = sbr.rel target = $region42
              $region47: #{forward.1} parent=39 // loop_exit
                _
            $region40: #{forward.1} parent=31 // pred_fallthru
              _
          $region32: #{forward.1} parent=27 // pred_fallthru
            _
          %615 = vnop
        $region28: #{forward.1} parent=23 // pred_fallthru
          _
        // Predicated region
        $region63: #{forward.1} parent=23 // pred_check
          %p616 = pneg %p82
        $region64: #{forward.1} parent=23 // pred_check_branch
          %618 = sbr.rel (%p616) target = $region66
        $region65: #{forward.1} parent=23 // pred_region
          %s619 = smul.u32 2, %s15
          %p620 = scmp.lt.s32.totalorder %s619, 15
          %s621 = scalar_select %p620, %s619, 15
          %s622 = scalar_lea.vmem %s2, %s621
          %s623 = smul.u32 2, %s15
        $region66: #{forward.1} parent=23 // pred_fallthru
          _
        // Predicated region
        $region67: #{forward.1} parent=23 // pred_check
          %p624 = pneg %p108
        $region68: #{forward.1} parent=23 // pred_check_branch
          %626 = sbr.rel (%p624) target = $region70
        $region69: #{forward.1} parent=23 // pred_region
          %s627 = smul.u32 2, %s15
          %p628 = scmp.lt.s32.totalorder %s627, 15
          %s629 = scalar_select %p628, %s627, 15
          %s630 = scalar_lea.vmem %s3, %s629
          %s631 = smul.u32 2, %s15
        $region70: #{forward.1} parent=23 // pred_fallthru
          _
        // Predicated region
        $region71: #{forward.1} parent=23 // pred_check
          %p632 = pneg %p155
        $region72: #{forward.1} parent=23 // pred_check_branch
          %634 = sbr.rel (%p632) target = $region74
        $region73: #{forward.1} parent=23 // pred_region
          %s635 = smul.u32 2, %s15
          %p636 = scmp.lt.s32.totalorder %s635, 15
          %s637 = scalar_select %p636, %s635, 15
          %s638 = smul.addr %s637, 96
          %s639 = smul.addr %s638, 4
          %s640 = scalar_lea.vmem %s5, %s639
          %s641 = smul.u32 2, %s15
        $region74: #{forward.1} parent=23 // pred_fallthru
          _
        // Predicated region
        $region75: #{forward.1} parent=23 // pred_check
          %p642 = pneg %p181
        $region76: #{forward.1} parent=23 // pred_check_branch
          %644 = sbr.rel (%p642) target = $region78
        $region77: #{forward.1} parent=23 // pred_region
          %s645 = smul.u32 2, %s15
          %p646 = scmp.lt.s32.totalorder %s645, 15
          %s647 = scalar_select %p646, %s645, 15
          %s648 = smul.addr %s647, 48
          %s649 = smul.addr %s648, 4
          %s650 = scalar_lea.vmem %s6, %s649
          %s651 = smul.u32 2, %s15
        $region78: #{forward.1} parent=23 // pred_fallthru
          _
        // Predicated region
        $region79: #{forward.1} parent=23 // pred_check
          %p652 = pneg %p207
        $region80: #{forward.1} parent=23 // pred_check_branch
          %654 = sbr.rel (%p652) target = $region82
        $region81: #{forward.1} parent=23 // pred_region
          %s655 = smul.u32 2, %s15
          %p656 = scmp.lt.s32.totalorder %s655, 15
          %s657 = scalar_select %p656, %s655, 15
          %s658 = scalar_lea.vmem %s7, %s657
          %s659 = smul.u32 2, %s15
        $region82: #{forward.1} parent=23 // pred_fallthru
          _
        // Predicated region
        $region83: #{forward.1} parent=23 // pred_check
          %p660 = pneg %p233
        $region84: #{forward.1} parent=23 // pred_check_branch
          %662 = sbr.rel (%p660) target = $region86
        $region85: #{forward.1} parent=23 // pred_region
          %s663 = smul.u32 2, %s15
          %p664 = scmp.lt.s32.totalorder %s663, 15
          %s665 = scalar_select %p664, %s663, 15
          %s666 = scalar_lea.vmem %s8, %s665
          %s667 = smul.u32 2, %s15
        $region86: #{forward.1} parent=23 // pred_fallthru
          _
      $region24: #{forward.1} parent=5 // pred_fallthru
        _
      %p668 = scmp.le.s32.totalorder 1, %s15
      %p669 = scmp.lt.s32.totalorder %s15, 9
      %p670 = pnand %p668, %p669
      %p671 = pneg %p670
      // Predicated region
      $region87: #{forward.1} parent=5 // pred_check
        _
      $region88: #{forward.1} parent=5 // pred_check_branch
        %673 = sbr.rel (%p670) target = $region90
      $region89: #{forward.1} parent=5 // pred_region
        %s674 = ssub.s32 %s15, 1
        %s675 = sand.u32 %s49, 1
        %s676 = sand.u32 %s49, 1
        %s677 = smul.addr %s676, 576
        %s678 = scalar_lea.vmem [#allocation3], %s677
        // Predicated region
        $region91: #{forward.1} parent=89 // pred_check
          %p679 = pneg %p62
        $region92: #{forward.1} parent=89 // pred_check_branch
          %681 = sbr.rel (%p679) target = $region94
        $region93: #{forward.1} parent=89 // pred_region
          _
        $region94: #{forward.1} parent=89 // pred_fallthru
          _
        %p682 = pneg %p36
        %p683 = pneg %p33
        %s684 = sand.u32 %s49, 1
        %s685 = sand.u32 %s49, 1
        %s686 = smul.addr %s685, 576
        %s687 = scalar_lea.vmem [#allocation3], %s686
        %p688 = pneg %p62
        %p689 = pneg %p59
        %s690 = smul.u32 2, %s20
        %p691 = scmp.lt.s32.totalorder %s690, 15
        %s692 = scalar_select %p691, %s690, 15
        %s693 = scalar_lea.vmem %s2, %s692
        %p694 = pneg %p88
        %p695 = pneg %p85
        %s696 = smul.u32 2, %s20
        %p697 = scmp.lt.s32.totalorder %s696, 15
        %s698 = scalar_select %p697, %s696, 15
        %s699 = scalar_lea.vmem %s3, %s698
        %p700 = pneg %p114
        %p701 = pneg %p111
        %p702 = pneg %p135
        %p703 = pneg %p132
        %s704 = smul.u32 2, %s20
        %p705 = scmp.lt.s32.totalorder %s704, 15
        %s706 = scalar_select %p705, %s704, 15
        %s707 = smul.addr %s706, 96
        %s708 = smul.addr %s707, 4
        %s709 = scalar_lea.vmem %s5, %s708
        %p710 = pneg %p161
        %p711 = pneg %p158
        %s712 = smul.u32 2, %s20
        %p713 = scmp.lt.s32.totalorder %s712, 15
        %s714 = scalar_select %p713, %s712, 15
        %s715 = smul.addr %s714, 48
        %s716 = smul.addr %s715, 4
        %s717 = scalar_lea.vmem %s6, %s716
        %p718 = pneg %p187
        %p719 = pneg %p184
        %s720 = smul.u32 2, %s20
        %p721 = scmp.lt.s32.totalorder %s720, 15
        %s722 = scalar_select %p721, %s720, 15
        %s723 = scalar_lea.vmem %s7, %s722
        %p724 = pneg %p213
        %p725 = pneg %p210
        %s726 = smul.u32 2, %s20
        %p727 = scmp.lt.s32.totalorder %s726, 15
        %s728 = scalar_select %p727, %s726, 15
        %s729 = scalar_lea.vmem %s8, %s728
        %p730 = pneg %p239
        %p731 = pneg %p236
        %p732 = pneg %p265
        %p733 = pneg %p262
        %s734 = sand.u32 %s252, 1
        %s735 = sand.u32 %s252, 1
        %s736 = smul.addr %s735, 112
        %s737 = scalar_lea.vmem [#allocation4], %s736
        %s738 = smul.u32 2, %s20
        %s739 = smul.u32 2, %s20
        %p740 = scmp.lt.s32.totalorder %s739, 15
        %s741 = scalar_select %p740, %s739, 15
        %s742 = scalar_lea.vmem %s2, %s741
        %s743 = smul.u32 2, %s20
        %s744 = smul.u32 2, %s20
        %p745 = scmp.lt.s32.totalorder %s744, 15
        %s746 = scalar_select %p745, %s744, 15
        %s747 = scalar_lea.vmem %s3, %s746
        %s748 = smul.u32 2, %s20
        %s749 = smul.u32 2, %s20
        %p750 = scmp.lt.s32.totalorder %s749, 15
        %s751 = scalar_select %p750, %s749, 15
        %s752 = smul.addr %s751, 96
        %s753 = smul.addr %s752, 4
        %s754 = scalar_lea.vmem %s5, %s753
        %s755 = smul.u32 2, %s20
        %s756 = smul.u32 2, %s20
        %p757 = scmp.lt.s32.totalorder %s756, 15
        %s758 = scalar_select %p757, %s756, 15
        %s759 = smul.addr %s758, 48
        %s760 = smul.addr %s759, 4
        %s761 = scalar_lea.vmem %s6, %s760
        %s762 = smul.u32 2, %s20
        %s763 = smul.u32 2, %s20
        %p764 = scmp.lt.s32.totalorder %s763, 15
        %s765 = scalar_select %p764, %s763, 15
        %s766 = scalar_lea.vmem %s7, %s765
        %s767 = smul.u32 2, %s20
        %s768 = smul.u32 2, %s20
        %p769 = scmp.lt.s32.totalorder %s768, 15
        %s770 = scalar_select %p769, %s768, 15
        %s771 = scalar_lea.vmem %s8, %s770
        %s772 = smul.u32 2, %s20
        %s773 = smul.u32 2, %s20
        %v775 = vld [vmem:[%s0] sm:$0xff]
        %v776 = vld [vmem:[%s0 + $0x8] sm:$0xff]
        %v777 = vld [vmem:[%s0 + $0x10] sm:$0xf]
        %v778 = vld [vmem:[%s0 + $0x14] sm:$0xff]
        %v779 = vld [vmem:[%s0 + $0x1c] sm:$0xff]
        %v780 = vld [vmem:[%s0 + $0x24] sm:$0xf]
        %v781 = vld [vmem:[%s0 + $0x28] sm:$0xff]
        %v782 = vld [vmem:[%s0 + $0x30] sm:$0xff]
        %v783 = vld [vmem:[%s0 + $0x38] sm:$0xf]
        %v784 = vld [vmem:[%s0 + $0x3c] sm:$0xff]
        %v785 = vld [vmem:[%s0 + $0x44] sm:$0xff]
        %v786 = vld [vmem:[%s0 + $0x4c] sm:$0xf]
        %v787 = vld [vmem:[%s0 + $0x50] sm:$0xff]
        %v788 = vld [vmem:[%s0 + $0x58] sm:$0xff]
        %v789 = vld [vmem:[%s0 + $0x60] sm:$0xf]
        %v790 = vld [vmem:[%s0 + $0x64] sm:$0xff]
        %v791 = vld [vmem:[%s0 + $0x6c] sm:$0xff]
        %v792 = vld [vmem:[%s0 + $0x74] sm:$0xf]
        %v793 = vld [vmem:[%s0 + $0x78] sm:$0xff]
        %v794 = vld [vmem:[%s0 + $0x80] sm:$0xff]
        %v795 = vld [vmem:[%s0 + $0x88] sm:$0xf]
        %v796 = vld [vmem:[%s0 + $0x8c] sm:$0xff]
        %v797 = vld [vmem:[%s0 + $0x94] sm:$0xff]
        %v798 = vld [vmem:[%s0 + $0x9c] sm:$0xf]
        %v799 = vld [vmem:[%s0 + $0xa0] sm:$0xff]
        %v800 = vld [vmem:[%s0 + $0xa8] sm:$0xff]
        %v801 = vld [vmem:[%s0 + $0xb0] sm:$0xf]
        %v802 = vld [vmem:[%s0 + $0xb4] sm:$0xff]
        %v803 = vld [vmem:[%s0 + $0xbc] sm:$0xff]
        %v804 = vld [vmem:[%s0 + $0xc4] sm:$0xf]
        %v805 = vld [vmem:[%s0 + $0xc8] sm:$0xff]
        %v806 = vld [vmem:[%s0 + $0xd0] sm:$0xff]
        %v807 = vld [vmem:[%s0 + $0xd8] sm:$0xf]
        %v808 = vld [vmem:[%s0 + $0xdc] sm:$0xff]
        %v809 = vld [vmem:[%s0 + $0xe4] sm:$0xff]
        %v810 = vld [vmem:[%s0 + $0xec] sm:$0xf]
        %v811 = vld [vmem:[%s0 + $0xf0] sm:$0xff]
        %v812 = vld [vmem:[%s0 + $0xf8] sm:$0xff]
        %v813 = vld [vmem:[%s0 + $0x100] sm:$0xf]
        %v814 = vld [vmem:[%s0 + $0x104] sm:$0xff]
        %v815 = vld [vmem:[%s0 + $0x10c] sm:$0xff]
        %v816 = vld [vmem:[%s0 + $0x114] sm:$0xf]
        %v817 = vld [vmem:[%s0 + $0x118] sm:$0xff]
        %v818 = vld [vmem:[%s0 + $0x120] sm:$0xff]
        %v819 = vld [vmem:[%s0 + $0x128] sm:$0xf]
        %v820 = vld [vmem:[%s0 + $0x12c] sm:$0xff]
        %v821 = vld [vmem:[%s0 + $0x134] sm:$0xff]
        %v822 = vld [vmem:[%s0 + $0x13c] sm:$0xf]
        %v823 = vld [vmem:[%s0 + $0x140] sm:$0xff]
        %v824 = vld [vmem:[%s0 + $0x148] sm:$0xff]
        %v825 = vld [vmem:[%s0 + $0x150] sm:$0xf]
        %v826 = vld [vmem:[%s0 + $0x154] sm:$0xff]
        %v827 = vld [vmem:[%s0 + $0x15c] sm:$0xff]
        %v828 = vld [vmem:[%s0 + $0x164] sm:$0xf]
        %v829 = vld [vmem:[%s0 + $0x168] sm:$0xff]
        %v830 = vld [vmem:[%s0 + $0x170] sm:$0xff]
        %v831 = vld [vmem:[%s0 + $0x178] sm:$0xf]
        %v832 = vld [vmem:[%s0 + $0x17c] sm:$0xff]
        %v833 = vld [vmem:[%s0 + $0x184] sm:$0xff]
        %v834 = vld [vmem:[%s0 + $0x18c] sm:$0xf]
        %v835 = vld [vmem:[%s0 + $0x190] sm:$0xff]
        %v836 = vld [vmem:[%s0 + $0x198] sm:$0xff]
        %v837 = vld [vmem:[%s0 + $0x1a0] sm:$0xf]
        %v838 = vld [vmem:[%s0 + $0x1a4] sm:$0xff]
        %v839 = vld [vmem:[%s0 + $0x1ac] sm:$0xff]
        %v840 = vld [vmem:[%s0 + $0x1b4] sm:$0xf]
        %v841 = vld [vmem:[%s0 + $0x1b8] sm:$0xff]
        %v842 = vld [vmem:[%s0 + $0x1c0] sm:$0xff]
        %v843 = vld [vmem:[%s0 + $0x1c8] sm:$0xf]
        %v844 = vld [vmem:[%s0 + $0x1cc] sm:$0xff]
        %v845 = vld [vmem:[%s0 + $0x1d4] sm:$0xff]
        %v846 = vld [vmem:[%s0 + $0x1dc] sm:$0xf]
        %v847 = vld [vmem:[%s0 + $0x1e0] sm:$0xff]
        %v848 = vld [vmem:[%s0 + $0x1e8] sm:$0xff]
        %v849 = vld [vmem:[%s0 + $0x1f0] sm:$0xf]
        %v850 = vld [vmem:[%s0 + $0x1f4] sm:$0xff]
        %v851 = vld [vmem:[%s0 + $0x1fc] sm:$0xff]
        %v852 = vld [vmem:[%s0 + $0x204] sm:$0xf]
        %v853 = vld [vmem:[%s0 + $0x208] sm:$0xff]
        %v854 = vld [vmem:[%s0 + $0x210] sm:$0xff]
        %v855 = vld [vmem:[%s0 + $0x218] sm:$0xf]
        %v856 = vld [vmem:[%s0 + $0x21c] sm:$0xff]
        %v857 = vld [vmem:[%s0 + $0x224] sm:$0xff]
        %v858 = vld [vmem:[%s0 + $0x22c] sm:$0xf]
        %v859 = vld [vmem:[%s0 + $0x230] sm:$0xff]
        %v860 = vld [vmem:[%s0 + $0x238] sm:$0xff]
        %v861 = vld [vmem:[%s0 + $0x240] sm:$0xf]
        %v862 = vld [vmem:[%s0 + $0x244] sm:$0xff]
        %v863 = vld [vmem:[%s0 + $0x24c] sm:$0xff]
        %v864 = vld [vmem:[%s0 + $0x254] sm:$0xf]
        %v865 = vld [vmem:[%s0 + $0x258] sm:$0xff]
        %v866 = vld [vmem:[%s0 + $0x260] sm:$0xff]
        %v867 = vld [vmem:[%s0 + $0x268] sm:$0xf]
        %v868 = vld [vmem:[%s0 + $0x26c] sm:$0xff]
        %v869 = vld [vmem:[%s0 + $0x274] sm:$0xff]
        %v870 = vld [vmem:[%s0 + $0x27c] sm:$0xf]
        %v871 = vld [vmem:[%s678] sm:$0xff]
        %v872 = vld [vmem:[%s678 + $0x8] sm:$0xff]
        %v873 = vld [vmem:[%s678 + $0x10] sm:$0xff]
        %v874 = vld [vmem:[%s678 + $0x18] sm:$0xff]
        %v875 = vld [vmem:[%s678 + $0x20] sm:$0xff]
        %v876 = vld [vmem:[%s678 + $0x28] sm:$0xff]
        %v877 = vld [vmem:[%s678 + $0x30] sm:$0xff]
        %v878 = vld [vmem:[%s678 + $0x38] sm:$0xff]
        %v879 = vld [vmem:[%s678 + $0x40] sm:$0xff]
        %v880 = vld [vmem:[%s678 + $0x48] sm:$0xff]
        %v881 = vld [vmem:[%s678 + $0x50] sm:$0xff]
        %v882 = vld [vmem:[%s678 + $0x58] sm:$0xff]
        %v883 = vld [vmem:[%s678 + $0x60] sm:$0xff]
        %v884 = vld [vmem:[%s678 + $0x68] sm:$0xff]
        %v885 = vld [vmem:[%s678 + $0x70] sm:$0xff]
        %v886 = vld [vmem:[%s678 + $0x78] sm:$0xff]
        %v887 = vld [vmem:[%s678 + $0x80] sm:$0xff]
        %v888 = vld [vmem:[%s678 + $0x88] sm:$0xff]
        %v889 = vld [vmem:[%s678 + $0x90] sm:$0xff]
        %v890 = vld [vmem:[%s678 + $0x98] sm:$0xff]
        %v891 = vld [vmem:[%s678 + $0xa0] sm:$0xff]
        %v892 = vld [vmem:[%s678 + $0xa8] sm:$0xff]
        %v893 = vld [vmem:[%s678 + $0xb0] sm:$0xff]
        %v894 = vld [vmem:[%s678 + $0xb8] sm:$0xff]
        %v895 = vld [vmem:[%s678 + $0xc0] sm:$0xff]
        %v896 = vld [vmem:[%s678 + $0xc8] sm:$0xff]
        %v897 = vld [vmem:[%s678 + $0xd0] sm:$0xff]
        %v898 = vld [vmem:[%s678 + $0xd8] sm:$0xff]
        %v899 = vld [vmem:[%s678 + $0xe0] sm:$0xff]
        %v900 = vld [vmem:[%s678 + $0xe8] sm:$0xff]
        %v901 = vld [vmem:[%s678 + $0xf0] sm:$0xff]
        %v902 = vld [vmem:[%s678 + $0xf8] sm:$0xff]
        %v903 = vld [vmem:[%s678 + $0x100] sm:$0xff]
        %v904 = vld [vmem:[%s678 + $0x108] sm:$0xff]
        %v905 = vld [vmem:[%s678 + $0x110] sm:$0xff]
        %v906 = vld [vmem:[%s678 + $0x118] sm:$0xff]
        %v907 = vld [vmem:[%s678 + $0x120] sm:$0xff]
        %v908 = vld [vmem:[%s678 + $0x128] sm:$0xff]
        %v909 = vld [vmem:[%s678 + $0x130] sm:$0xff]
        %v910 = vld [vmem:[%s678 + $0x138] sm:$0xff]
        %v911 = vld [vmem:[%s678 + $0x140] sm:$0xff]
        %v912 = vld [vmem:[%s678 + $0x148] sm:$0xff]
        %v913 = vld [vmem:[%s678 + $0x150] sm:$0xff]
        %v914 = vld [vmem:[%s678 + $0x158] sm:$0xff]
        %v915 = vld [vmem:[%s678 + $0x160] sm:$0xff]
        %v916 = vld [vmem:[%s678 + $0x168] sm:$0xff]
        %v917 = vld [vmem:[%s678 + $0x170] sm:$0xff]
        %v918 = vld [vmem:[%s678 + $0x178] sm:$0xff]
        %v919 = vld [vmem:[%s678 + $0x180] sm:$0xff]
        %v920 = vld [vmem:[%s678 + $0x188] sm:$0xff]
        %v921 = vld [vmem:[%s678 + $0x190] sm:$0xff]
        %v922 = vld [vmem:[%s678 + $0x198] sm:$0xff]
        %v923 = vld [vmem:[%s678 + $0x1a0] sm:$0xff]
        %v924 = vld [vmem:[%s678 + $0x1a8] sm:$0xff]
        %v925 = vld [vmem:[%s678 + $0x1b0] sm:$0xff]
        %v926 = vld [vmem:[%s678 + $0x1b8] sm:$0xff]
        %v927 = vld [vmem:[%s678 + $0x1c0] sm:$0xff]
        %v928 = vld [vmem:[%s678 + $0x1c8] sm:$0xff]
        %v929 = vld [vmem:[%s678 + $0x1d0] sm:$0xff]
        %v930 = vld [vmem:[%s678 + $0x1d8] sm:$0xff]
        %v931 = vld [vmem:[%s678 + $0x1e0] sm:$0xff]
        %v932 = vld [vmem:[%s678 + $0x1e8] sm:$0xff]
        %v933 = vld [vmem:[%s678 + $0x1f0] sm:$0xff]
        %v934 = vld [vmem:[%s678 + $0x1f8] sm:$0xff]
        %v935 = vld [vmem:[%s678 + $0x200] sm:$0xff]
        %v936 = vld [vmem:[%s678 + $0x208] sm:$0xff]
        %v937 = vld [vmem:[%s678 + $0x210] sm:$0xff]
        %v938 = vld [vmem:[%s678 + $0x218] sm:$0xff]
        %v939 = vld [vmem:[%s678 + $0x220] sm:$0xff]
        %v940 = vld [vmem:[%s678 + $0x228] sm:$0xff]
        %v941 = vld [vmem:[%s678 + $0x230] sm:$0xff]
        %v942 = vld [vmem:[%s678 + $0x238] sm:$0xff]
        %v1039 = vunpack.c.l.b16 %v775
        %v1040 = vunpack.c.h.b16 %v775
        %v1041 = vunpack.c.l.b16 %v776
        %v1042 = vunpack.c.h.b16 %v776
        %v1043 = vunpack.c.l.b16 %v777
        %v1044 = vunpack.c.l.b16 %v778
        %v1045 = vunpack.c.h.b16 %v778
        %v1046 = vunpack.c.l.b16 %v779
        %v1047 = vunpack.c.h.b16 %v779
        %v1048 = vunpack.c.l.b16 %v780
        %v1049 = vunpack.c.l.b16 %v781
        %v1050 = vunpack.c.h.b16 %v781
        %v1051 = vunpack.c.l.b16 %v782
        %v1052 = vunpack.c.h.b16 %v782
        %v1053 = vunpack.c.l.b16 %v783
        %v1054 = vunpack.c.l.b16 %v784
        %v1055 = vunpack.c.h.b16 %v784
        %v1056 = vunpack.c.l.b16 %v785
        %v1057 = vunpack.c.h.b16 %v785
        %v1058 = vunpack.c.l.b16 %v786
        %v1059 = vunpack.c.l.b16 %v787
        %v1060 = vunpack.c.h.b16 %v787
        %v1061 = vunpack.c.l.b16 %v788
        %v1062 = vunpack.c.h.b16 %v788
        %v1063 = vunpack.c.l.b16 %v789
        %v1064 = vunpack.c.l.b16 %v790
        %v1065 = vunpack.c.h.b16 %v790
        %v1066 = vunpack.c.l.b16 %v791
        %v1067 = vunpack.c.h.b16 %v791
        %v1068 = vunpack.c.l.b16 %v792
        %v1069 = vunpack.c.l.b16 %v793
        %v1070 = vunpack.c.h.b16 %v793
        %v1071 = vunpack.c.l.b16 %v794
        %v1072 = vunpack.c.h.b16 %v794
        %v1073 = vunpack.c.l.b16 %v795
        %v1074 = vunpack.c.l.b16 %v796
        %v1075 = vunpack.c.h.b16 %v796
        %v1076 = vunpack.c.l.b16 %v797
        %v1077 = vunpack.c.h.b16 %v797
        %v1078 = vunpack.c.l.b16 %v798
        %v1079 = vunpack.c.l.b16 %v799
        %v1080 = vunpack.c.h.b16 %v799
        %v1081 = vunpack.c.l.b16 %v800
        %v1082 = vunpack.c.h.b16 %v800
        %v1083 = vunpack.c.l.b16 %v801
        %v1084 = vunpack.c.l.b16 %v802
        %v1085 = vunpack.c.h.b16 %v802
        %v1086 = vunpack.c.l.b16 %v803
        %v1087 = vunpack.c.h.b16 %v803
        %v1088 = vunpack.c.l.b16 %v804
        %v1089 = vunpack.c.l.b16 %v805
        %v1090 = vunpack.c.h.b16 %v805
        %v1091 = vunpack.c.l.b16 %v806
        %v1092 = vunpack.c.h.b16 %v806
        %v1093 = vunpack.c.l.b16 %v807
        %v1094 = vunpack.c.l.b16 %v808
        %v1095 = vunpack.c.h.b16 %v808
        %v1096 = vunpack.c.l.b16 %v809
        %v1097 = vunpack.c.h.b16 %v809
        %v1098 = vunpack.c.l.b16 %v810
        %v1099 = vunpack.c.l.b16 %v811
        %v1100 = vunpack.c.h.b16 %v811
        %v1101 = vunpack.c.l.b16 %v812
        %v1102 = vunpack.c.h.b16 %v812
        %v1103 = vunpack.c.l.b16 %v813
        %v1104 = vunpack.c.l.b16 %v814
        %v1105 = vunpack.c.h.b16 %v814
        %v1106 = vunpack.c.l.b16 %v815
        %v1107 = vunpack.c.h.b16 %v815
        %v1108 = vunpack.c.l.b16 %v816
        %v1109 = vunpack.c.l.b16 %v817
        %v1110 = vunpack.c.h.b16 %v817
        %v1111 = vunpack.c.l.b16 %v818
        %v1112 = vunpack.c.h.b16 %v818
        %v1113 = vunpack.c.l.b16 %v819
        %v1114 = vunpack.c.l.b16 %v820
        %v1115 = vunpack.c.h.b16 %v820
        %v1116 = vunpack.c.l.b16 %v821
        %v1117 = vunpack.c.h.b16 %v821
        %v1118 = vunpack.c.l.b16 %v822
        %v1119 = vunpack.c.l.b16 %v823
        %v1120 = vunpack.c.h.b16 %v823
        %v1121 = vunpack.c.l.b16 %v824
        %v1122 = vunpack.c.h.b16 %v824
        %v1123 = vunpack.c.l.b16 %v825
        %v1124 = vunpack.c.l.b16 %v826
        %v1125 = vunpack.c.h.b16 %v826
        %v1126 = vunpack.c.l.b16 %v827
        %v1127 = vunpack.c.h.b16 %v827
        %v1128 = vunpack.c.l.b16 %v828
        %v1129 = vunpack.c.l.b16 %v829
        %v1130 = vunpack.c.h.b16 %v829
        %v1131 = vunpack.c.l.b16 %v830
        %v1132 = vunpack.c.h.b16 %v830
        %v1133 = vunpack.c.l.b16 %v831
        %v1134 = vunpack.c.l.b16 %v832
        %v1135 = vunpack.c.h.b16 %v832
        %v1136 = vunpack.c.l.b16 %v833
        %v1137 = vunpack.c.h.b16 %v833
        %v1138 = vunpack.c.l.b16 %v834
        %v1139 = vunpack.c.l.b16 %v835
        %v1140 = vunpack.c.h.b16 %v835
        %v1141 = vunpack.c.l.b16 %v836
        %v1142 = vunpack.c.h.b16 %v836
        %v1143 = vunpack.c.l.b16 %v837
        %v1144 = vunpack.c.l.b16 %v838
        %v1145 = vunpack.c.h.b16 %v838
        %v1146 = vunpack.c.l.b16 %v839
        %v1147 = vunpack.c.h.b16 %v839
        %v1148 = vunpack.c.l.b16 %v840
        %v1149 = vunpack.c.l.b16 %v841
        %v1150 = vunpack.c.h.b16 %v841
        %v1151 = vunpack.c.l.b16 %v842
        %v1152 = vunpack.c.h.b16 %v842
        %v1153 = vunpack.c.l.b16 %v843
        %v1154 = vunpack.c.l.b16 %v844
        %v1155 = vunpack.c.h.b16 %v844
        %v1156 = vunpack.c.l.b16 %v845
        %v1157 = vunpack.c.h.b16 %v845
        %v1158 = vunpack.c.l.b16 %v846
        %v1159 = vunpack.c.l.b16 %v847
        %v1160 = vunpack.c.h.b16 %v847
        %v1161 = vunpack.c.l.b16 %v848
        %v1162 = vunpack.c.h.b16 %v848
        %v1163 = vunpack.c.l.b16 %v849
        %v1164 = vunpack.c.l.b16 %v850
        %v1165 = vunpack.c.h.b16 %v850
        %v1166 = vunpack.c.l.b16 %v851
        %v1167 = vunpack.c.h.b16 %v851
        %v1168 = vunpack.c.l.b16 %v852
        %v1169 = vunpack.c.l.b16 %v853
        %v1170 = vunpack.c.h.b16 %v853
        %v1171 = vunpack.c.l.b16 %v854
        %v1172 = vunpack.c.h.b16 %v854
        %v1173 = vunpack.c.l.b16 %v855
        %v1174 = vunpack.c.l.b16 %v856
        %v1175 = vunpack.c.h.b16 %v856
        %v1176 = vunpack.c.l.b16 %v857
        %v1177 = vunpack.c.h.b16 %v857
        %v1178 = vunpack.c.l.b16 %v858
        %v1179 = vunpack.c.l.b16 %v859
        %v1180 = vunpack.c.h.b16 %v859
        %v1181 = vunpack.c.l.b16 %v860
        %v1182 = vunpack.c.h.b16 %v860
        %v1183 = vunpack.c.l.b16 %v861
        %v1184 = vunpack.c.l.b16 %v862
        %v1185 = vunpack.c.h.b16 %v862
        %v1186 = vunpack.c.l.b16 %v863
        %v1187 = vunpack.c.h.b16 %v863
        %v1188 = vunpack.c.l.b16 %v864
        %v1189 = vunpack.c.l.b16 %v865
        %v1190 = vunpack.c.h.b16 %v865
        %v1191 = vunpack.c.l.b16 %v866
        %v1192 = vunpack.c.h.b16 %v866
        %v1193 = vunpack.c.l.b16 %v867
        %v1194 = vunpack.c.l.b16 %v868
        %v1195 = vunpack.c.h.b16 %v868
        %v1196 = vunpack.c.l.b16 %v869
        %v1197 = vunpack.c.h.b16 %v869
        %v1198 = vunpack.c.l.b16 %v870
        %v1199 = vpack.c.b16 %v1044, %v1039
        %v1200 = vpack.c.b16 %v1045, %v1040
        %v1201 = vpack.c.b16 %v1046, %v1041
        %v1202 = vpack.c.b16 %v1047, %v1042
        %v1203 = vpack.c.b16 %v1048, %v1043
        %v1204 = vpack.c.b16 %v1054, %v1049
        %v1205 = vpack.c.b16 %v1055, %v1050
        %v1206 = vpack.c.b16 %v1056, %v1051
        %v1207 = vpack.c.b16 %v1057, %v1052
        %v1208 = vpack.c.b16 %v1058, %v1053
        %v1209 = vpack.c.b16 %v1064, %v1059
        %v1210 = vpack.c.b16 %v1065, %v1060
        %v1211 = vpack.c.b16 %v1066, %v1061
        %v1212 = vpack.c.b16 %v1067, %v1062
        %v1213 = vpack.c.b16 %v1068, %v1063
        %v1214 = vpack.c.b16 %v1074, %v1069
        %v1215 = vpack.c.b16 %v1075, %v1070
        %v1216 = vpack.c.b16 %v1076, %v1071
        %v1217 = vpack.c.b16 %v1077, %v1072
        %v1218 = vpack.c.b16 %v1078, %v1073
        %v1219 = vpack.c.b16 %v1084, %v1079
        %v1220 = vpack.c.b16 %v1085, %v1080
        %v1221 = vpack.c.b16 %v1086, %v1081
        %v1222 = vpack.c.b16 %v1087, %v1082
        %v1223 = vpack.c.b16 %v1088, %v1083
        %v1224 = vpack.c.b16 %v1094, %v1089
        %v1225 = vpack.c.b16 %v1095, %v1090
        %v1226 = vpack.c.b16 %v1096, %v1091
        %v1227 = vpack.c.b16 %v1097, %v1092
        %v1228 = vpack.c.b16 %v1098, %v1093
        %v1229 = vpack.c.b16 %v1104, %v1099
        %v1230 = vpack.c.b16 %v1105, %v1100
        %v1231 = vpack.c.b16 %v1106, %v1101
        %v1232 = vpack.c.b16 %v1107, %v1102
        %v1233 = vpack.c.b16 %v1108, %v1103
        %v1234 = vpack.c.b16 %v1114, %v1109
        %v1235 = vpack.c.b16 %v1115, %v1110
        %v1236 = vpack.c.b16 %v1116, %v1111
        %v1237 = vpack.c.b16 %v1117, %v1112
        %v1238 = vpack.c.b16 %v1118, %v1113
        %v1239 = vpack.c.b16 %v1124, %v1119
        %v1240 = vpack.c.b16 %v1125, %v1120
        %v1241 = vpack.c.b16 %v1126, %v1121
        %v1242 = vpack.c.b16 %v1127, %v1122
        %v1243 = vpack.c.b16 %v1128, %v1123
        %v1244 = vpack.c.b16 %v1134, %v1129
        %v1245 = vpack.c.b16 %v1135, %v1130
        %v1246 = vpack.c.b16 %v1136, %v1131
        %v1247 = vpack.c.b16 %v1137, %v1132
        %v1248 = vpack.c.b16 %v1138, %v1133
        %v1249 = vpack.c.b16 %v1144, %v1139
        %v1250 = vpack.c.b16 %v1145, %v1140
        %v1251 = vpack.c.b16 %v1146, %v1141
        %v1252 = vpack.c.b16 %v1147, %v1142
        %v1253 = vpack.c.b16 %v1148, %v1143
        %v1254 = vpack.c.b16 %v1154, %v1149
        %v1255 = vpack.c.b16 %v1155, %v1150
        %v1256 = vpack.c.b16 %v1156, %v1151
        %v1257 = vpack.c.b16 %v1157, %v1152
        %v1258 = vpack.c.b16 %v1158, %v1153
        %v1259 = vpack.c.b16 %v1164, %v1159
        %v1260 = vpack.c.b16 %v1165, %v1160
        %v1261 = vpack.c.b16 %v1166, %v1161
        %v1262 = vpack.c.b16 %v1167, %v1162
        %v1263 = vpack.c.b16 %v1168, %v1163
        %v1264 = vpack.c.b16 %v1174, %v1169
        %v1265 = vpack.c.b16 %v1175, %v1170
        %v1266 = vpack.c.b16 %v1176, %v1171
        %v1267 = vpack.c.b16 %v1177, %v1172
        %v1268 = vpack.c.b16 %v1178, %v1173
        %v1269 = vpack.c.b16 %v1184, %v1179
        %v1270 = vpack.c.b16 %v1185, %v1180
        %v1271 = vpack.c.b16 %v1186, %v1181
        %v1272 = vpack.c.b16 %v1187, %v1182
        %v1273 = vpack.c.b16 %v1188, %v1183
        %v1274 = vpack.c.b16 %v1194, %v1189
        %v1275 = vpack.c.b16 %v1195, %v1190
        %v1276 = vpack.c.b16 %v1196, %v1191
        %v1277 = vpack.c.b16 %v1197, %v1192
        %v1278 = vpack.c.b16 %v1198, %v1193
        %v1415 = vunpack.c.l.b16 %v871
        %v1416 = vunpack.c.h.b16 %v871
        %v1417 = vunpack.c.l.b16 %v872
        %v1418 = vunpack.c.h.b16 %v872
        %v1419 = vunpack.c.l.b16 %v873
        %v1420 = vunpack.c.h.b16 %v873
        %v1421 = vunpack.c.l.b16 %v874
        %v1422 = vunpack.c.h.b16 %v874
        %v1423 = vunpack.c.l.b16 %v875
        %v1424 = vunpack.c.h.b16 %v875
        %v1425 = vunpack.c.l.b16 %v876
        %v1426 = vunpack.c.h.b16 %v876
        %v1427 = vunpack.c.l.b16 %v877
        %v1428 = vunpack.c.h.b16 %v877
        %v1429 = vunpack.c.l.b16 %v878
        %v1430 = vunpack.c.h.b16 %v878
        %v1431 = vunpack.c.l.b16 %v879
        %v1432 = vunpack.c.h.b16 %v879
        %v1433 = vunpack.c.l.b16 %v880
        %v1434 = vunpack.c.h.b16 %v880
        %v1435 = vunpack.c.l.b16 %v881
        %v1436 = vunpack.c.h.b16 %v881
        %v1437 = vunpack.c.l.b16 %v882
        %v1438 = vunpack.c.h.b16 %v882
        %v1439 = vunpack.c.l.b16 %v883
        %v1440 = vunpack.c.h.b16 %v883
        %v1441 = vunpack.c.l.b16 %v884
        %v1442 = vunpack.c.h.b16 %v884
        %v1443 = vunpack.c.l.b16 %v885
        %v1444 = vunpack.c.h.b16 %v885
        %v1445 = vunpack.c.l.b16 %v886
        %v1446 = vunpack.c.h.b16 %v886
        %v1447 = vunpack.c.l.b16 %v887
        %v1448 = vunpack.c.h.b16 %v887
        %v1449 = vunpack.c.l.b16 %v888
        %v1450 = vunpack.c.h.b16 %v888
        %v1451 = vunpack.c.l.b16 %v889
        %v1452 = vunpack.c.h.b16 %v889
        %v1453 = vunpack.c.l.b16 %v890
        %v1454 = vunpack.c.h.b16 %v890
        %v1455 = vunpack.c.l.b16 %v891
        %v1456 = vunpack.c.h.b16 %v891
        %v1457 = vunpack.c.l.b16 %v892
        %v1458 = vunpack.c.h.b16 %v892
        %v1459 = vunpack.c.l.b16 %v893
        %v1460 = vunpack.c.h.b16 %v893
        %v1461 = vunpack.c.l.b16 %v894
        %v1462 = vunpack.c.h.b16 %v894
        %v1463 = vunpack.c.l.b16 %v895
        %v1464 = vunpack.c.h.b16 %v895
        %v1465 = vunpack.c.l.b16 %v896
        %v1466 = vunpack.c.h.b16 %v896
        %v1467 = vunpack.c.l.b16 %v897
        %v1468 = vunpack.c.h.b16 %v897
        %v1469 = vunpack.c.l.b16 %v898
        %v1470 = vunpack.c.h.b16 %v898
        %v1471 = vunpack.c.l.b16 %v899
        %v1472 = vunpack.c.h.b16 %v899
        %v1473 = vunpack.c.l.b16 %v900
        %v1474 = vunpack.c.h.b16 %v900
        %v1475 = vunpack.c.l.b16 %v901
        %v1476 = vunpack.c.h.b16 %v901
        %v1477 = vunpack.c.l.b16 %v902
        %v1478 = vunpack.c.h.b16 %v902
        %v1479 = vunpack.c.l.b16 %v903
        %v1480 = vunpack.c.h.b16 %v903
        %v1481 = vunpack.c.l.b16 %v904
        %v1482 = vunpack.c.h.b16 %v904
        %v1483 = vunpack.c.l.b16 %v905
        %v1484 = vunpack.c.h.b16 %v905
        %v1485 = vunpack.c.l.b16 %v906
        %v1486 = vunpack.c.h.b16 %v906
        %v1487 = vunpack.c.l.b16 %v907
        %v1488 = vunpack.c.h.b16 %v907
        %v1489 = vunpack.c.l.b16 %v908
        %v1490 = vunpack.c.h.b16 %v908
        %v1491 = vunpack.c.l.b16 %v909
        %v1492 = vunpack.c.h.b16 %v909
        %v1493 = vunpack.c.l.b16 %v910
        %v1494 = vunpack.c.h.b16 %v910
        %v1495 = vunpack.c.l.b16 %v911
        %v1496 = vunpack.c.h.b16 %v911
        %v1497 = vunpack.c.l.b16 %v912
        %v1498 = vunpack.c.h.b16 %v912
        %v1499 = vunpack.c.l.b16 %v913
        %v1500 = vunpack.c.h.b16 %v913
        %v1501 = vunpack.c.l.b16 %v914
        %v1502 = vunpack.c.h.b16 %v914
        %v1503 = vunpack.c.l.b16 %v915
        %v1504 = vunpack.c.h.b16 %v915
        %v1505 = vunpack.c.l.b16 %v916
        %v1506 = vunpack.c.h.b16 %v916
        %v1507 = vunpack.c.l.b16 %v917
        %v1508 = vunpack.c.h.b16 %v917
        %v1509 = vunpack.c.l.b16 %v918
        %v1510 = vunpack.c.h.b16 %v918
        %v1511 = vunpack.c.l.b16 %v919
        %v1512 = vunpack.c.h.b16 %v919
        %v1513 = vunpack.c.l.b16 %v920
        %v1514 = vunpack.c.h.b16 %v920
        %v1515 = vunpack.c.l.b16 %v921
        %v1516 = vunpack.c.h.b16 %v921
        %v1517 = vunpack.c.l.b16 %v922
        %v1518 = vunpack.c.h.b16 %v922
        %v1519 = vunpack.c.l.b16 %v923
        %v1520 = vunpack.c.h.b16 %v923
        %v1521 = vunpack.c.l.b16 %v924
        %v1522 = vunpack.c.h.b16 %v924
        %v1523 = vunpack.c.l.b16 %v925
        %v1524 = vunpack.c.h.b16 %v925
        %v1525 = vunpack.c.l.b16 %v926
        %v1526 = vunpack.c.h.b16 %v926
        %v1527 = vunpack.c.l.b16 %v927
        %v1528 = vunpack.c.h.b16 %v927
        %v1529 = vunpack.c.l.b16 %v928
        %v1530 = vunpack.c.h.b16 %v928
        %v1531 = vunpack.c.l.b16 %v929
        %v1532 = vunpack.c.h.b16 %v929
        %v1533 = vunpack.c.l.b16 %v930
        %v1534 = vunpack.c.h.b16 %v930
        %v1535 = vunpack.c.l.b16 %v931
        %v1536 = vunpack.c.h.b16 %v931
        %v1537 = vunpack.c.l.b16 %v932
        %v1538 = vunpack.c.h.b16 %v932
        %v1539 = vunpack.c.l.b16 %v933
        %v1540 = vunpack.c.h.b16 %v933
        %v1541 = vunpack.c.l.b16 %v934
        %v1542 = vunpack.c.h.b16 %v934
        %v1543 = vunpack.c.l.b16 %v935
        %v1544 = vunpack.c.h.b16 %v935
        %v1545 = vunpack.c.l.b16 %v936
        %v1546 = vunpack.c.h.b16 %v936
        %v1547 = vunpack.c.l.b16 %v937
        %v1548 = vunpack.c.h.b16 %v937
        %v1549 = vunpack.c.l.b16 %v938
        %v1550 = vunpack.c.h.b16 %v938
        %v1551 = vunpack.c.l.b16 %v939
        %v1552 = vunpack.c.h.b16 %v939
        %v1553 = vunpack.c.l.b16 %v940
        %v1554 = vunpack.c.h.b16 %v940
        %v1555 = vunpack.c.l.b16 %v941
        %v1556 = vunpack.c.h.b16 %v941
        %v1557 = vunpack.c.l.b16 %v942
        %v1558 = vunpack.c.h.b16 %v942
        %v1559 = vpack.c.b16 %v1417, %v1415
        %v1560 = vpack.c.b16 %v1418, %v1416
        %v1561 = vpack.c.b16 %v1421, %v1419
        %v1562 = vpack.c.b16 %v1422, %v1420
        %v1563 = vpack.c.b16 %v1425, %v1423
        %v1564 = vpack.c.b16 %v1426, %v1424
        %v1565 = vpack.c.b16 %v1429, %v1427
        %v1566 = vpack.c.b16 %v1430, %v1428
        %v1567 = vpack.c.b16 %v1433, %v1431
        %v1568 = vpack.c.b16 %v1434, %v1432
        %v1569 = vpack.c.b16 %v1437, %v1435
        %v1570 = vpack.c.b16 %v1438, %v1436
        %v1571 = vpack.c.b16 %v1441, %v1439
        %v1572 = vpack.c.b16 %v1442, %v1440
        %v1573 = vpack.c.b16 %v1445, %v1443
        %v1574 = vpack.c.b16 %v1446, %v1444
        %v1575 = vpack.c.b16 %v1449, %v1447
        %v1576 = vpack.c.b16 %v1450, %v1448
        %v1577 = vpack.c.b16 %v1453, %v1451
        %v1578 = vpack.c.b16 %v1454, %v1452
        %v1579 = vpack.c.b16 %v1457, %v1455
        %v1580 = vpack.c.b16 %v1458, %v1456
        %v1581 = vpack.c.b16 %v1461, %v1459
        %v1582 = vpack.c.b16 %v1462, %v1460
        %v1583 = vpack.c.b16 %v1465, %v1463
        %v1584 = vpack.c.b16 %v1466, %v1464
        %v1585 = vpack.c.b16 %v1469, %v1467
        %v1586 = vpack.c.b16 %v1470, %v1468
        %v1587 = vpack.c.b16 %v1473, %v1471
        %v1588 = vpack.c.b16 %v1474, %v1472
        %v1589 = vpack.c.b16 %v1477, %v1475
        %v1590 = vpack.c.b16 %v1478, %v1476
        %v1591 = vpack.c.b16 %v1481, %v1479
        %v1592 = vpack.c.b16 %v1482, %v1480
        %v1593 = vpack.c.b16 %v1485, %v1483
        %v1594 = vpack.c.b16 %v1486, %v1484
        %v1595 = vpack.c.b16 %v1489, %v1487
        %v1596 = vpack.c.b16 %v1490, %v1488
        %v1597 = vpack.c.b16 %v1493, %v1491
        %v1598 = vpack.c.b16 %v1494, %v1492
        %v1599 = vpack.c.b16 %v1497, %v1495
        %v1600 = vpack.c.b16 %v1498, %v1496
        %v1601 = vpack.c.b16 %v1501, %v1499
        %v1602 = vpack.c.b16 %v1502, %v1500
        %v1603 = vpack.c.b16 %v1505, %v1503
        %v1604 = vpack.c.b16 %v1506, %v1504
        %v1605 = vpack.c.b16 %v1509, %v1507
        %v1606 = vpack.c.b16 %v1510, %v1508
        %v1607 = vpack.c.b16 %v1513, %v1511
        %v1608 = vpack.c.b16 %v1514, %v1512
        %v1609 = vpack.c.b16 %v1517, %v1515
        %v1610 = vpack.c.b16 %v1518, %v1516
        %v1611 = vpack.c.b16 %v1521, %v1519
        %v1612 = vpack.c.b16 %v1522, %v1520
        %v1613 = vpack.c.b16 %v1525, %v1523
        %v1614 = vpack.c.b16 %v1526, %v1524
        %v1615 = vpack.c.b16 %v1529, %v1527
        %v1616 = vpack.c.b16 %v1530, %v1528
        %v1617 = vpack.c.b16 %v1533, %v1531
        %v1618 = vpack.c.b16 %v1534, %v1532
        %v1619 = vpack.c.b16 %v1537, %v1535
        %v1620 = vpack.c.b16 %v1538, %v1536
        %v1621 = vpack.c.b16 %v1541, %v1539
        %v1622 = vpack.c.b16 %v1542, %v1540
        %v1623 = vpack.c.b16 %v1545, %v1543
        %v1624 = vpack.c.b16 %v1546, %v1544
        %v1625 = vpack.c.b16 %v1549, %v1547
        %v1626 = vpack.c.b16 %v1550, %v1548
        %v1627 = vpack.c.b16 %v1553, %v1551
        %v1628 = vpack.c.b16 %v1554, %v1552
        %v1629 = vpack.c.b16 %v1557, %v1555
        %v1630 = vpack.c.b16 %v1558, %v1556
        %vm1703 = vcmask 523264
        %v1705 = vsel %vm1703, %v1203, 0
        %v1708 = vsel %vm1703, %v1208, 0
        %v1711 = vsel %vm1703, %v1213, 0
        %v1714 = vsel %vm1703, %v1218, 0
        %v1717 = vsel %vm1703, %v1223, 0
        %v1720 = vsel %vm1703, %v1228, 0
        %v1723 = vsel %vm1703, %v1233, 0
        %v1726 = vsel %vm1703, %v1238, 0
        %v1729 = vsel %vm1703, %v1243, 0
        %v1732 = vsel %vm1703, %v1248, 0
        %v1735 = vsel %vm1703, %v1253, 0
        %v1738 = vsel %vm1703, %v1258, 0
        %v1741 = vsel %vm1703, %v1263, 0
        %v1744 = vsel %vm1703, %v1268, 0
        %v1747 = vsel %vm1703, %v1273, 0
        %v1750 = vsel %vm1703, %v1278, 0
        %1752 = vmatprep.subr.bf16.mxu0 %v1560
        %1753 = vmatpush1.bf16.msra.mxu0 %v1559
        %1754 = vmatprep.subr.bf16.mxu0 %v1562
        %1755 = vmatpush1.bf16.msra.mxu0 %v1561
        %1756 = vmatprep.subr.bf16.mxu0 %v1564
        %1757 = vmatpush1.bf16.msra.mxu0 %v1563
        %1758 = vmatprep.subr.bf16.mxu0 %v1566
        %1759 = vmatpush1.bf16.msra.mxu0 %v1565
        %1760 = vmatprep.subr.bf16.mxu0 %v1568
        %1761 = vmatpush1.bf16.msra.mxu0 %v1567
        %1762 = vmatprep.subr.bf16.mxu0 %v1570
        %1763 = vmatpush1.bf16.msra.mxu0 %v1569
        %1764 = vmatprep.subr.bf16.mxu0 %v1572
        %1765 = vmatpush1.bf16.msra.mxu0 %v1571
        %1766 = vmatprep.subr.bf16.mxu0 %v1574
        %1767 = vmatpush1.bf16.msra.mxu0 %v1573
        %1768 = vmatprep.subr.bf16.mxu0 %v1576
        %1769 = vmatpush1.bf16.msra.mxu0 %v1575
        %1770 = vmatprep.subr.bf16.mxu0 %v1578
        %1771 = vmatpush1.bf16.msra.mxu0 %v1577
        %1772 = vmatprep.subr.bf16.mxu0 %v1580
        %1773 = vmatpush1.bf16.msra.mxu0 %v1579
        %1774 = vmatprep.subr.bf16.mxu0 %v1582
        %1775 = vmatpush1.bf16.msra.mxu0 %v1581
        %1776 = vmatprep.subr.bf16.mxu0 %v1584
        %1777 = vmatpush1.bf16.msra.mxu0 %v1583
        %1778 = vmatprep.subr.bf16.mxu0 %v1586
        %1779 = vmatpush1.bf16.msra.mxu0 %v1585
        %1780 = vmatprep.subr.bf16.mxu0 %v1588
        %1781 = vmatpush1.bf16.msra.mxu0 %v1587
        %1782 = vmatprep.subr.bf16.mxu0 %v1590
        %1783 = vmatpush1.bf16.msra.mxu0 %v1589
        %1784 = vmatprep.mubr.bf16.mxu0 %v1200
        %1785 = vmatmul.mubr.bf16.gmra.mrb[0].mxu0 %v1199
        %v1786 = vpop.f32.mrb[0].mxu0
        %v1787 = vadd.f32 0.0, %v1786
        %v1788 = vpop.f32.mrb[0].mxu0
        %v1789 = vadd.f32 0.0, %v1788
        %v1790 = vpop.f32.mrb[0].mxu0
        %v1791 = vadd.f32 0.0, %v1790
        %v1792 = vpop.f32.mrb[0].mxu0
        %v1793 = vadd.f32 0.0, %v1792
        %1794 = vmatprep.mubr.bf16.mxu0 %v1205
        %1795 = vmatmul.mubr.bf16.gmra.mrb[0].mxu0 %v1204
        %v1796 = vpop.f32.mrb[0].mxu0
        %v1797 = vadd.f32 0.0, %v1796
        %v1798 = vpop.f32.mrb[0].mxu0
        %v1799 = vadd.f32 0.0, %v1798
        %v1800 = vpop.f32.mrb[0].mxu0
        %v1801 = vadd.f32 0.0, %v1800
        %v1802 = vpop.f32.mrb[0].mxu0
        %v1803 = vadd.f32 0.0, %v1802
        %1804 = vmatprep.mubr.bf16.mxu0 %v1210
        %1805 = vmatmul.mubr.bf16.gmra.mrb[0].mxu0 %v1209
        %v1806 = vpop.f32.mrb[0].mxu0
        %v1807 = vadd.f32 0.0, %v1806
        %v1808 = vpop.f32.mrb[0].mxu0
        %v1809 = vadd.f32 0.0, %v1808
        %v1810 = vpop.f32.mrb[0].mxu0
        %v1811 = vadd.f32 0.0, %v1810
        %v1812 = vpop.f32.mrb[0].mxu0
        %v1813 = vadd.f32 0.0, %v1812
        %1814 = vmatprep.mubr.bf16.mxu0 %v1215
        %1815 = vmatmul.mubr.bf16.gmra.mrb[0].mxu0 %v1214
        %v1816 = vpop.f32.mrb[0].mxu0
        %v1817 = vadd.f32 0.0, %v1816
        %v1818 = vpop.f32.mrb[0].mxu0
        %v1819 = vadd.f32 0.0, %v1818
        %v1820 = vpop.f32.mrb[0].mxu0
        %v1821 = vadd.f32 0.0, %v1820
        %v1822 = vpop.f32.mrb[0].mxu0
        %v1823 = vadd.f32 0.0, %v1822
        %1824 = vmatprep.mubr.bf16.mxu0 %v1220
        %1825 = vmatmul.mubr.bf16.gmra.mrb[0].mxu0 %v1219
        %v1826 = vpop.f32.mrb[0].mxu0
        %v1827 = vadd.f32 0.0, %v1826
        %v1828 = vpop.f32.mrb[0].mxu0
        %v1829 = vadd.f32 0.0, %v1828
        %v1830 = vpop.f32.mrb[0].mxu0
        %v1831 = vadd.f32 0.0, %v1830
        %v1832 = vpop.f32.mrb[0].mxu0
        %v1833 = vadd.f32 0.0, %v1832
        %1834 = vmatprep.mubr.bf16.mxu0 %v1225
        %1835 = vmatmul.mubr.bf16.gmra.mrb[0].mxu0 %v1224
        %v1836 = vpop.f32.mrb[0].mxu0
        %v1837 = vadd.f32 0.0, %v1836
        %v1838 = vpop.f32.mrb[0].mxu0
        %v1839 = vadd.f32 0.0, %v1838
        %v1840 = vpop.f32.mrb[0].mxu0
        %v1841 = vadd.f32 0.0, %v1840
        %v1842 = vpop.f32.mrb[0].mxu0
        %v1843 = vadd.f32 0.0, %v1842
        %1844 = vmatprep.mubr.bf16.mxu0 %v1230
        %1845 = vmatmul.mubr.bf16.gmra.mrb[0].mxu0 %v1229
        %v1846 = vpop.f32.mrb[0].mxu0
        %v1847 = vadd.f32 0.0, %v1846
        %v1848 = vpop.f32.mrb[0].mxu0
        %v1849 = vadd.f32 0.0, %v1848
        %v1850 = vpop.f32.mrb[0].mxu0
        %v1851 = vadd.f32 0.0, %v1850
        %v1852 = vpop.f32.mrb[0].mxu0
        %v1853 = vadd.f32 0.0, %v1852
        %1854 = vmatprep.mubr.bf16.mxu0 %v1235
        %1855 = vmatmul.mubr.bf16.gmra.mrb[0].mxu0 %v1234
        %v1856 = vpop.f32.mrb[0].mxu0
        %v1857 = vadd.f32 0.0, %v1856
        %v1858 = vpop.f32.mrb[0].mxu0
        %v1859 = vadd.f32 0.0, %v1858
        %v1860 = vpop.f32.mrb[0].mxu0
        %v1861 = vadd.f32 0.0, %v1860
        %v1862 = vpop.f32.mrb[0].mxu0
        %v1863 = vadd.f32 0.0, %v1862
        %1864 = vmatprep.mubr.bf16.mxu0 %v1240
        %1865 = vmatmul.mubr.bf16.gmra.mrb[0].mxu0 %v1239
        %v1866 = vpop.f32.mrb[0].mxu0
        %v1867 = vadd.f32 0.0, %v1866
        %v1868 = vpop.f32.mrb[0].mxu0
        %v1869 = vadd.f32 0.0, %v1868
        %v1870 = vpop.f32.mrb[0].mxu0
        %v1871 = vadd.f32 0.0, %v1870
        %v1872 = vpop.f32.mrb[0].mxu0
        %v1873 = vadd.f32 0.0, %v1872
        %1874 = vmatprep.mubr.bf16.mxu0 %v1245
        %1875 = vmatmul.mubr.bf16.gmra.mrb[0].mxu0 %v1244
        %v1876 = vpop.f32.mrb[0].mxu0
        %v1877 = vadd.f32 0.0, %v1876
        %v1878 = vpop.f32.mrb[0].mxu0
        %v1879 = vadd.f32 0.0, %v1878
        %v1880 = vpop.f32.mrb[0].mxu0
        %v1881 = vadd.f32 0.0, %v1880
        %v1882 = vpop.f32.mrb[0].mxu0
        %v1883 = vadd.f32 0.0, %v1882
        %1884 = vmatprep.mubr.bf16.mxu0 %v1250
        %1885 = vmatmul.mubr.bf16.gmra.mrb[0].mxu0 %v1249
        %v1886 = vpop.f32.mrb[0].mxu0
        %v1887 = vadd.f32 0.0, %v1886
        %v1888 = vpop.f32.mrb[0].mxu0
        %v1889 = vadd.f32 0.0, %v1888
        %v1890 = vpop.f32.mrb[0].mxu0
        %v1891 = vadd.f32 0.0, %v1890
        %v1892 = vpop.f32.mrb[0].mxu0
        %v1893 = vadd.f32 0.0, %v1892
        %1894 = vmatprep.mubr.bf16.mxu0 %v1255
        %1895 = vmatmul.mubr.bf16.gmra.mrb[0].mxu0 %v1254
        %v1896 = vpop.f32.mrb[0].mxu0
        %v1897 = vadd.f32 0.0, %v1896
        %v1898 = vpop.f32.mrb[0].mxu0
        %v1899 = vadd.f32 0.0, %v1898
        %v1900 = vpop.f32.mrb[0].mxu0
        %v1901 = vadd.f32 0.0, %v1900
        %v1902 = vpop.f32.mrb[0].mxu0
        %v1903 = vadd.f32 0.0, %v1902
        %1904 = vmatprep.mubr.bf16.mxu0 %v1260
        %1905 = vmatmul.mubr.bf16.gmra.mrb[0].mxu0 %v1259
        %v1906 = vpop.f32.mrb[0].mxu0
        %v1907 = vadd.f32 0.0, %v1906
        %v1908 = vpop.f32.mrb[0].mxu0
        %v1909 = vadd.f32 0.0, %v1908
        %v1910 = vpop.f32.mrb[0].mxu0
        %v1911 = vadd.f32 0.0, %v1910
        %v1912 = vpop.f32.mrb[0].mxu0
        %v1913 = vadd.f32 0.0, %v1912
        %1914 = vmatprep.mubr.bf16.mxu0 %v1265
        %1915 = vmatmul.mubr.bf16.gmra.mrb[0].mxu0 %v1264
        %v1916 = vpop.f32.mrb[0].mxu0
        %v1917 = vadd.f32 0.0, %v1916
        %v1918 = vpop.f32.mrb[0].mxu0
        %v1919 = vadd.f32 0.0, %v1918
        %v1920 = vpop.f32.mrb[0].mxu0
        %v1921 = vadd.f32 0.0, %v1920
        %v1922 = vpop.f32.mrb[0].mxu0
        %v1923 = vadd.f32 0.0, %v1922
        %1924 = vmatprep.mubr.bf16.mxu0 %v1270
        %1925 = vmatmul.mubr.bf16.gmra.mrb[0].mxu0 %v1269
        %v1926 = vpop.f32.mrb[0].mxu0
        %v1927 = vadd.f32 0.0, %v1926
        %v1928 = vpop.f32.mrb[0].mxu0
        %v1929 = vadd.f32 0.0, %v1928
        %v1930 = vpop.f32.mrb[0].mxu0
        %v1931 = vadd.f32 0.0, %v1930
        %v1932 = vpop.f32.mrb[0].mxu0
        %v1933 = vadd.f32 0.0, %v1932
        %1934 = vmatprep.mubr.bf16.mxu0 %v1275
        %1935 = vmatmul.mubr.bf16.gmra.mrb[0].mxu0 %v1274
        %v1936 = vpop.f32.mrb[0].mxu0
        %v1937 = vadd.f32 0.0, %v1936
        %v1938 = vpop.f32.mrb[0].mxu0
        %v1939 = vadd.f32 0.0, %v1938
        %v1940 = vpop.f32.mrb[0].mxu0
        %v1941 = vadd.f32 0.0, %v1940
        %v1942 = vpop.f32.mrb[0].mxu0
        %v1943 = vadd.f32 0.0, %v1942
        %1944 = vdwg.mxu0
        %1945 = vmatprep.subr.bf16.mxu0 %v1592
        %1946 = vmatpush1.bf16.msra.mxu0 %v1591
        %1947 = vmatprep.subr.bf16.mxu0 %v1594
        %1948 = vmatpush1.bf16.msra.mxu0 %v1593
        %1949 = vmatprep.subr.bf16.mxu0 %v1596
        %1950 = vmatpush1.bf16.msra.mxu0 %v1595
        %1951 = vmatprep.subr.bf16.mxu0 %v1598
        %1952 = vmatpush1.bf16.msra.mxu0 %v1597
        %1953 = vmatprep.subr.bf16.mxu0 %v1600
        %1954 = vmatpush1.bf16.msra.mxu0 %v1599
        %1955 = vmatprep.subr.bf16.mxu0 %v1602
        %1956 = vmatpush1.bf16.msra.mxu0 %v1601
        %1957 = vmatprep.subr.bf16.mxu0 %v1604
        %1958 = vmatpush1.bf16.msra.mxu0 %v1603
        %1959 = vmatprep.subr.bf16.mxu0 %v1606
        %1960 = vmatpush1.bf16.msra.mxu0 %v1605
        %1961 = vmatprep.subr.bf16.mxu0 %v1608
        %1962 = vmatpush1.bf16.msra.mxu0 %v1607
        %1963 = vmatprep.subr.bf16.mxu0 %v1610
        %1964 = vmatpush1.bf16.msra.mxu0 %v1609
        %1965 = vmatprep.subr.bf16.mxu0 %v1612
        %1966 = vmatpush1.bf16.msra.mxu0 %v1611
        %1967 = vmatprep.subr.bf16.mxu0 %v1614
        %1968 = vmatpush1.bf16.msra.mxu0 %v1613
        %1969 = vmatprep.subr.bf16.mxu0 %v1616
        %1970 = vmatpush1.bf16.msra.mxu0 %v1615
        %1971 = vmatprep.subr.bf16.mxu0 %v1618
        %1972 = vmatpush1.bf16.msra.mxu0 %v1617
        %1973 = vmatprep.subr.bf16.mxu0 %v1620
        %1974 = vmatpush1.bf16.msra.mxu0 %v1619
        %1975 = vmatprep.subr.bf16.mxu0 %v1622
        %1976 = vmatpush1.bf16.msra.mxu0 %v1621
        %1977 = vmatprep.mubr.bf16.mxu0 %v1202
        %1978 = vmatmul.mubr.bf16.gmra.mrb[0].mxu0 %v1201
        %v1979 = vpop.f32.mrb[0].mxu0
        %v1980 = vadd.f32 %v1787, %v1979
        %v1981 = vpop.f32.mrb[0].mxu0
        %v1982 = vadd.f32 %v1789, %v1981
        %v1983 = vpop.f32.mrb[0].mxu0
        %v1984 = vadd.f32 %v1791, %v1983
        %v1985 = vpop.f32.mrb[0].mxu0
        %v1986 = vadd.f32 %v1793, %v1985
        %1987 = vmatprep.mubr.bf16.mxu0 %v1207
        %1988 = vmatmul.mubr.bf16.gmra.mrb[0].mxu0 %v1206
        %v1989 = vpop.f32.mrb[0].mxu0
        %v1990 = vadd.f32 %v1797, %v1989
        %v1991 = vpop.f32.mrb[0].mxu0
        %v1992 = vadd.f32 %v1799, %v1991
        %v1993 = vpop.f32.mrb[0].mxu0
        %v1994 = vadd.f32 %v1801, %v1993
        %v1995 = vpop.f32.mrb[0].mxu0
        %v1996 = vadd.f32 %v1803, %v1995
        %1997 = vmatprep.mubr.bf16.mxu0 %v1212
        %1998 = vmatmul.mubr.bf16.gmra.mrb[0].mxu0 %v1211
        %v1999 = vpop.f32.mrb[0].mxu0
        %v2000 = vadd.f32 %v1807, %v1999
        %v2001 = vpop.f32.mrb[0].mxu0
        %v2002 = vadd.f32 %v1809, %v2001
        %v2003 = vpop.f32.mrb[0].mxu0
        %v2004 = vadd.f32 %v1811, %v2003
        %v2005 = vpop.f32.mrb[0].mxu0
        %v2006 = vadd.f32 %v1813, %v2005
        %2007 = vmatprep.mubr.bf16.mxu0 %v1217
        %2008 = vmatmul.mubr.bf16.gmra.mrb[0].mxu0 %v1216
        %v2009 = vpop.f32.mrb[0].mxu0
        %v2010 = vadd.f32 %v1817, %v2009
        %v2011 = vpop.f32.mrb[0].mxu0
        %v2012 = vadd.f32 %v1819, %v2011
        %v2013 = vpop.f32.mrb[0].mxu0
        %v2014 = vadd.f32 %v1821, %v2013
        %v2015 = vpop.f32.mrb[0].mxu0
        %v2016 = vadd.f32 %v1823, %v2015
        %2017 = vmatprep.mubr.bf16.mxu0 %v1222
        %2018 = vmatmul.mubr.bf16.gmra.mrb[0].mxu0 %v1221
        %v2019 = vpop.f32.mrb[0].mxu0
        %v2020 = vadd.f32 %v1827, %v2019
        %v2021 = vpop.f32.mrb[0].mxu0
        %v2022 = vadd.f32 %v1829, %v2021
        %v2023 = vpop.f32.mrb[0].mxu0
        %v2024 = vadd.f32 %v1831, %v2023
        %v2025 = vpop.f32.mrb[0].mxu0
        %v2026 = vadd.f32 %v1833, %v2025
        %2027 = vmatprep.mubr.bf16.mxu0 %v1227
        %2028 = vmatmul.mubr.bf16.gmra.mrb[0].mxu0 %v1226
        %v2029 = vpop.f32.mrb[0].mxu0
        %v2030 = vadd.f32 %v1837, %v2029
        %v2031 = vpop.f32.mrb[0].mxu0
        %v2032 = vadd.f32 %v1839, %v2031
        %v2033 = vpop.f32.mrb[0].mxu0
        %v2034 = vadd.f32 %v1841, %v2033
        %v2035 = vpop.f32.mrb[0].mxu0
        %v2036 = vadd.f32 %v1843, %v2035
        %2037 = vmatprep.mubr.bf16.mxu0 %v1232
        %2038 = vmatmul.mubr.bf16.gmra.mrb[0].mxu0 %v1231
        %v2039 = vpop.f32.mrb[0].mxu0
        %v2040 = vadd.f32 %v1847, %v2039
        %v2041 = vpop.f32.mrb[0].mxu0
        %v2042 = vadd.f32 %v1849, %v2041
        %v2043 = vpop.f32.mrb[0].mxu0
        %v2044 = vadd.f32 %v1851, %v2043
        %v2045 = vpop.f32.mrb[0].mxu0
        %v2046 = vadd.f32 %v1853, %v2045
        %2047 = vmatprep.mubr.bf16.mxu0 %v1237
        %2048 = vmatmul.mubr.bf16.gmra.mrb[0].mxu0 %v1236
        %v2049 = vpop.f32.mrb[0].mxu0
        %v2050 = vadd.f32 %v1857, %v2049
        %v2051 = vpop.f32.mrb[0].mxu0
        %v2052 = vadd.f32 %v1859, %v2051
        %v2053 = vpop.f32.mrb[0].mxu0
        %v2054 = vadd.f32 %v1861, %v2053
        %v2055 = vpop.f32.mrb[0].mxu0
        %v2056 = vadd.f32 %v1863, %v2055
        %2057 = vmatprep.mubr.bf16.mxu0 %v1242
        %2058 = vmatmul.mubr.bf16.gmra.mrb[0].mxu0 %v1241
        %v2059 = vpop.f32.mrb[0].mxu0
        %v2060 = vadd.f32 %v1867, %v2059
        %v2061 = vpop.f32.mrb[0].mxu0
        %v2062 = vadd.f32 %v1869, %v2061
        %v2063 = vpop.f32.mrb[0].mxu0
        %v2064 = vadd.f32 %v1871, %v2063
        %v2065 = vpop.f32.mrb[0].mxu0
        %v2066 = vadd.f32 %v1873, %v2065
        %2067 = vmatprep.mubr.bf16.mxu0 %v1247
        %2068 = vmatmul.mubr.bf16.gmra.mrb[0].mxu0 %v1246
        %v2069 = vpop.f32.mrb[0].mxu0
        %v2070 = vadd.f32 %v1877, %v2069
        %v2071 = vpop.f32.mrb[0].mxu0
        %v2072 = vadd.f32 %v1879, %v2071
        %v2073 = vpop.f32.mrb[0].mxu0
        %v2074 = vadd.f32 %v1881, %v2073
        %v2075 = vpop.f32.mrb[0].mxu0
        %v2076 = vadd.f32 %v1883, %v2075
        %2077 = vmatprep.mubr.bf16.mxu0 %v1252
        %2078 = vmatmul.mubr.bf16.gmra.mrb[0].mxu0 %v1251
        %v2079 = vpop.f32.mrb[0].mxu0
        %v2080 = vadd.f32 %v1887, %v2079
        %v2081 = vpop.f32.mrb[0].mxu0
        %v2082 = vadd.f32 %v1889, %v2081
        %v2083 = vpop.f32.mrb[0].mxu0
        %v2084 = vadd.f32 %v1891, %v2083
        %v2085 = vpop.f32.mrb[0].mxu0
        %v2086 = vadd.f32 %v1893, %v2085
        %2087 = vmatprep.mubr.bf16.mxu0 %v1257
        %2088 = vmatmul.mubr.bf16.gmra.mrb[0].mxu0 %v1256
        %v2089 = vpop.f32.mrb[0].mxu0
        %v2090 = vadd.f32 %v1897, %v2089
        %v2091 = vpop.f32.mrb[0].mxu0
        %v2092 = vadd.f32 %v1899, %v2091
        %v2093 = vpop.f32.mrb[0].mxu0
        %v2094 = vadd.f32 %v1901, %v2093
        %v2095 = vpop.f32.mrb[0].mxu0
        %v2096 = vadd.f32 %v1903, %v2095
        %2097 = vmatprep.mubr.bf16.mxu0 %v1262
        %2098 = vmatmul.mubr.bf16.gmra.mrb[0].mxu0 %v1261
        %v2099 = vpop.f32.mrb[0].mxu0
        %v2100 = vadd.f32 %v1907, %v2099
        %v2101 = vpop.f32.mrb[0].mxu0
        %v2102 = vadd.f32 %v1909, %v2101
        %v2103 = vpop.f32.mrb[0].mxu0
        %v2104 = vadd.f32 %v1911, %v2103
        %v2105 = vpop.f32.mrb[0].mxu0
        %v2106 = vadd.f32 %v1913, %v2105
        %2107 = vmatprep.mubr.bf16.mxu0 %v1267
        %2108 = vmatmul.mubr.bf16.gmra.mrb[0].mxu0 %v1266
        %v2109 = vpop.f32.mrb[0].mxu0
        %v2110 = vadd.f32 %v1917, %v2109
        %v2111 = vpop.f32.mrb[0].mxu0
        %v2112 = vadd.f32 %v1919, %v2111
        %v2113 = vpop.f32.mrb[0].mxu0
        %v2114 = vadd.f32 %v1921, %v2113
        %v2115 = vpop.f32.mrb[0].mxu0
        %v2116 = vadd.f32 %v1923, %v2115
        %2117 = vmatprep.mubr.bf16.mxu0 %v1272
        %2118 = vmatmul.mubr.bf16.gmra.mrb[0].mxu0 %v1271
        %v2119 = vpop.f32.mrb[0].mxu0
        %v2120 = vadd.f32 %v1927, %v2119
        %v2121 = vpop.f32.mrb[0].mxu0
        %v2122 = vadd.f32 %v1929, %v2121
        %v2123 = vpop.f32.mrb[0].mxu0
        %v2124 = vadd.f32 %v1931, %v2123
        %v2125 = vpop.f32.mrb[0].mxu0
        %v2126 = vadd.f32 %v1933, %v2125
        %2127 = vmatprep.mubr.bf16.mxu0 %v1277
        %2128 = vmatmul.mubr.bf16.gmra.mrb[0].mxu0 %v1276
        %v2129 = vpop.f32.mrb[0].mxu0
        %v2130 = vadd.f32 %v1937, %v2129
        %v2131 = vpop.f32.mrb[0].mxu0
        %v2132 = vadd.f32 %v1939, %v2131
        %v2133 = vpop.f32.mrb[0].mxu0
        %v2134 = vadd.f32 %v1941, %v2133
        %v2135 = vpop.f32.mrb[0].mxu0
        %v2136 = vadd.f32 %v1943, %v2135
        %2137 = vdwg.mxu0
        %2138 = vmatprep.subr.bf16.mxu0 %v1624
        %2139 = vmatpush1.bf16.msra.mxu0 %v1623
        %2140 = vmatprep.subr.bf16.mxu0 %v1626
        %2141 = vmatpush1.bf16.msra.mxu0 %v1625
        %2142 = vmatprep.subr.bf16.mxu0 %v1628
        %2143 = vmatpush1.bf16.msra.mxu0 %v1627
        %2144 = vmatprep.subr.bf16.mxu0 %v1630
        %2145 = vmatpush1.bf16.msra.mxu0 %v1629
        %2146 = vmatprep.subr.bf16.mxu0 0
        %2147 = vmatpush1.bf16.msra.mxu0 0
        %2148 = vmatprep.subr.bf16.mxu0 0
        %2149 = vmatpush1.bf16.msra.mxu0 0
        %2150 = vmatprep.subr.bf16.mxu0 0
        %2151 = vmatpush1.bf16.msra.mxu0 0
        %2152 = vmatprep.subr.bf16.mxu0 0
        %2153 = vmatpush1.bf16.msra.mxu0 0
        %2154 = vmatprep.subr.bf16.mxu0 0
        %2155 = vmatpush1.bf16.msra.mxu0 0
        %2156 = vmatprep.subr.bf16.mxu0 0
        %2157 = vmatpush1.bf16.msra.mxu0 0
        %2158 = vmatprep.subr.bf16.mxu0 0
        %2159 = vmatpush1.bf16.msra.mxu0 0
        %2160 = vmatprep.subr.bf16.mxu0 0
        %2161 = vmatpush1.bf16.msra.mxu0 0
        %2162 = vmatprep.subr.bf16.mxu0 0
        %2163 = vmatpush1.bf16.msra.mxu0 0
        %2164 = vmatprep.subr.bf16.mxu0 0
        %2165 = vmatpush1.bf16.msra.mxu0 0
        %2166 = vmatprep.subr.bf16.mxu0 0
        %2167 = vmatpush1.bf16.msra.mxu0 0
        %2168 = vmatprep.subr.bf16.mxu0 0
        %2169 = vmatpush1.bf16.msra.mxu0 0
        %2170 = vmatprep.mubr.bf16.mxu0 0
        %2171 = vmatmul.mubr.bf16.gmra.mrb[0].mxu0 %v1705
        %v2172 = vpop.f32.mrb[0].mxu0
        %v2173 = vadd.f32 %v1980, %v2172
        %v2174 = vpop.f32.mrb[0].mxu0
        %v2175 = vadd.f32 %v1982, %v2174
        %v2176 = vpop.f32.mrb[0].mxu0
        %v2177 = vadd.f32 %v1984, %v2176
        %v2178 = vpop.f32.mrb[0].mxu0
        %v2179 = vadd.f32 %v1986, %v2178
        %2180 = vmatprep.mubr.bf16.mxu0 0
        %2181 = vmatmul.mubr.bf16.gmra.mrb[0].mxu0 %v1708
        %v2182 = vpop.f32.mrb[0].mxu0
        %v2183 = vadd.f32 %v1990, %v2182
        %v2184 = vpop.f32.mrb[0].mxu0
        %v2185 = vadd.f32 %v1992, %v2184
        %v2186 = vpop.f32.mrb[0].mxu0
        %v2187 = vadd.f32 %v1994, %v2186
        %v2188 = vpop.f32.mrb[0].mxu0
        %v2189 = vadd.f32 %v1996, %v2188
        %2190 = vmatprep.mubr.bf16.mxu0 0
        %2191 = vmatmul.mubr.bf16.gmra.mrb[0].mxu0 %v1711
        %v2192 = vpop.f32.mrb[0].mxu0
        %v2193 = vadd.f32 %v2000, %v2192
        %v2194 = vpop.f32.mrb[0].mxu0
        %v2195 = vadd.f32 %v2002, %v2194
        %v2196 = vpop.f32.mrb[0].mxu0
        %v2197 = vadd.f32 %v2004, %v2196
        %v2198 = vpop.f32.mrb[0].mxu0
        %v2199 = vadd.f32 %v2006, %v2198
        %2200 = vmatprep.mubr.bf16.mxu0 0
        %2201 = vmatmul.mubr.bf16.gmra.mrb[0].mxu0 %v1714
        %v2202 = vpop.f32.mrb[0].mxu0
        %v2203 = vadd.f32 %v2010, %v2202
        %v2204 = vpop.f32.mrb[0].mxu0
        %v2205 = vadd.f32 %v2012, %v2204
        %v2206 = vpop.f32.mrb[0].mxu0
        %v2207 = vadd.f32 %v2014, %v2206
        %v2208 = vpop.f32.mrb[0].mxu0
        %v2209 = vadd.f32 %v2016, %v2208
        %2210 = vmatprep.mubr.bf16.mxu0 0
        %2211 = vmatmul.mubr.bf16.gmra.mrb[0].mxu0 %v1717
        %v2212 = vpop.f32.mrb[0].mxu0
        %v2213 = vadd.f32 %v2020, %v2212
        %v2214 = vpop.f32.mrb[0].mxu0
        %v2215 = vadd.f32 %v2022, %v2214
        %v2216 = vpop.f32.mrb[0].mxu0
        %v2217 = vadd.f32 %v2024, %v2216
        %v2218 = vpop.f32.mrb[0].mxu0
        %v2219 = vadd.f32 %v2026, %v2218
        %2220 = vmatprep.mubr.bf16.mxu0 0
        %2221 = vmatmul.mubr.bf16.gmra.mrb[0].mxu0 %v1720
        %v2222 = vpop.f32.mrb[0].mxu0
        %v2223 = vadd.f32 %v2030, %v2222
        %v2224 = vpop.f32.mrb[0].mxu0
        %v2225 = vadd.f32 %v2032, %v2224
        %v2226 = vpop.f32.mrb[0].mxu0
        %v2227 = vadd.f32 %v2034, %v2226
        %v2228 = vpop.f32.mrb[0].mxu0
        %v2229 = vadd.f32 %v2036, %v2228
        %2230 = vmatprep.mubr.bf16.mxu0 0
        %2231 = vmatmul.mubr.bf16.gmra.mrb[0].mxu0 %v1723
        %v2232 = vpop.f32.mrb[0].mxu0
        %v2233 = vadd.f32 %v2040, %v2232
        %v2234 = vpop.f32.mrb[0].mxu0
        %v2235 = vadd.f32 %v2042, %v2234
        %v2236 = vpop.f32.mrb[0].mxu0
        %v2237 = vadd.f32 %v2044, %v2236
        %v2238 = vpop.f32.mrb[0].mxu0
        %v2239 = vadd.f32 %v2046, %v2238
        %2240 = vmatprep.mubr.bf16.mxu0 0
        %2241 = vmatmul.mubr.bf16.gmra.mrb[0].mxu0 %v1726
        %v2242 = vpop.f32.mrb[0].mxu0
        %v2243 = vadd.f32 %v2050, %v2242
        %v2244 = vpop.f32.mrb[0].mxu0
        %v2245 = vadd.f32 %v2052, %v2244
        %v2246 = vpop.f32.mrb[0].mxu0
        %v2247 = vadd.f32 %v2054, %v2246
        %v2248 = vpop.f32.mrb[0].mxu0
        %v2249 = vadd.f32 %v2056, %v2248
        %2250 = vmatprep.mubr.bf16.mxu0 0
        %2251 = vmatmul.mubr.bf16.gmra.mrb[0].mxu0 %v1729
        %v2252 = vpop.f32.mrb[0].mxu0
        %v2253 = vadd.f32 %v2060, %v2252
        %v2254 = vpop.f32.mrb[0].mxu0
        %v2255 = vadd.f32 %v2062, %v2254
        %v2256 = vpop.f32.mrb[0].mxu0
        %v2257 = vadd.f32 %v2064, %v2256
        %v2258 = vpop.f32.mrb[0].mxu0
        %v2259 = vadd.f32 %v2066, %v2258
        %2260 = vmatprep.mubr.bf16.mxu0 0
        %2261 = vmatmul.mubr.bf16.gmra.mrb[0].mxu0 %v1732
        %v2262 = vpop.f32.mrb[0].mxu0
        %v2263 = vadd.f32 %v2070, %v2262
        %v2264 = vpop.f32.mrb[0].mxu0
        %v2265 = vadd.f32 %v2072, %v2264
        %v2266 = vpop.f32.mrb[0].mxu0
        %v2267 = vadd.f32 %v2074, %v2266
        %v2268 = vpop.f32.mrb[0].mxu0
        %v2269 = vadd.f32 %v2076, %v2268
        %2270 = vmatprep.mubr.bf16.mxu0 0
        %2271 = vmatmul.mubr.bf16.gmra.mrb[0].mxu0 %v1735
        %v2272 = vpop.f32.mrb[0].mxu0
        %v2273 = vadd.f32 %v2080, %v2272
        %v2274 = vpop.f32.mrb[0].mxu0
        %v2275 = vadd.f32 %v2082, %v2274
        %v2276 = vpop.f32.mrb[0].mxu0
        %v2277 = vadd.f32 %v2084, %v2276
        %v2278 = vpop.f32.mrb[0].mxu0
        %v2279 = vadd.f32 %v2086, %v2278
        %2280 = vmatprep.mubr.bf16.mxu0 0
        %2281 = vmatmul.mubr.bf16.gmra.mrb[0].mxu0 %v1738
        %v2282 = vpop.f32.mrb[0].mxu0
        %v2283 = vadd.f32 %v2090, %v2282
        %v2284 = vpop.f32.mrb[0].mxu0
        %v2285 = vadd.f32 %v2092, %v2284
        %v2286 = vpop.f32.mrb[0].mxu0
        %v2287 = vadd.f32 %v2094, %v2286
        %v2288 = vpop.f32.mrb[0].mxu0
        %v2289 = vadd.f32 %v2096, %v2288
        %2290 = vmatprep.mubr.bf16.mxu0 0
        %2291 = vmatmul.mubr.bf16.gmra.mrb[0].mxu0 %v1741
        %v2292 = vpop.f32.mrb[0].mxu0
        %v2293 = vadd.f32 %v2100, %v2292
        %v2294 = vpop.f32.mrb[0].mxu0
        %v2295 = vadd.f32 %v2102, %v2294
        %v2296 = vpop.f32.mrb[0].mxu0
        %v2297 = vadd.f32 %v2104, %v2296
        %v2298 = vpop.f32.mrb[0].mxu0
        %v2299 = vadd.f32 %v2106, %v2298
        %2300 = vmatprep.mubr.bf16.mxu0 0
        %2301 = vmatmul.mubr.bf16.gmra.mrb[0].mxu0 %v1744
        %v2302 = vpop.f32.mrb[0].mxu0
        %v2303 = vadd.f32 %v2110, %v2302
        %v2304 = vpop.f32.mrb[0].mxu0
        %v2305 = vadd.f32 %v2112, %v2304
        %v2306 = vpop.f32.mrb[0].mxu0
        %v2307 = vadd.f32 %v2114, %v2306
        %v2308 = vpop.f32.mrb[0].mxu0
        %v2309 = vadd.f32 %v2116, %v2308
        %2310 = vmatprep.mubr.bf16.mxu0 0
        %2311 = vmatmul.mubr.bf16.gmra.mrb[0].mxu0 %v1747
        %v2312 = vpop.f32.mrb[0].mxu0
        %v2313 = vadd.f32 %v2120, %v2312
        %v2314 = vpop.f32.mrb[0].mxu0
        %v2315 = vadd.f32 %v2122, %v2314
        %v2316 = vpop.f32.mrb[0].mxu0
        %v2317 = vadd.f32 %v2124, %v2316
        %v2318 = vpop.f32.mrb[0].mxu0
        %v2319 = vadd.f32 %v2126, %v2318
        %2320 = vmatprep.mubr.bf16.mxu0 0
        %2321 = vmatmul.mubr.bf16.gmra.mrb[0].mxu0 %v1750
        %v2322 = vpop.f32.mrb[0].mxu0
        %v2323 = vadd.f32 %v2130, %v2322
        %v2324 = vpop.f32.mrb[0].mxu0
        %v2325 = vadd.f32 %v2132, %v2324
        %v2326 = vpop.f32.mrb[0].mxu0
        %v2327 = vadd.f32 %v2134, %v2326
        %v2328 = vpop.f32.mrb[0].mxu0
        %v2329 = vadd.f32 %v2136, %v2328
        %2330 = vdwg.mxu0
        %v2331 = vadd.f32 %v2173, %v2177
        %v2332 = vadd.f32 %v2331, %v2183
        %v2333 = vadd.f32 %v2332, %v2187
        %v2334 = vadd.f32 %v2333, %v2193
        %v2335 = vadd.f32 %v2334, %v2197
        %v2336 = vadd.f32 %v2335, %v2203
        %v2337 = vadd.f32 %v2336, %v2207
        %v2338 = vadd.f32 %v2337, %v2213
        %v2339 = vadd.f32 %v2338, %v2217
        %v2340 = vadd.f32 %v2339, %v2223
        %v2341 = vadd.f32 %v2340, %v2227
        %v2342 = vadd.f32 %v2341, %v2233
        %v2343 = vadd.f32 %v2342, %v2237
        %v2344 = vadd.f32 %v2343, %v2243
        %v2345 = vadd.f32 %v2344, %v2247
        %v2346 = vadd.f32 %v2345, %v2253
        %v2347 = vadd.f32 %v2346, %v2257
        %v2348 = vadd.f32 %v2347, %v2263
        %v2349 = vadd.f32 %v2348, %v2267
        %v2350 = vadd.f32 %v2349, %v2273
        %v2351 = vadd.f32 %v2350, %v2277
        %v2352 = vadd.f32 %v2351, %v2283
        %v2353 = vadd.f32 %v2352, %v2287
        %v2354 = vadd.f32 %v2353, %v2293
        %v2355 = vadd.f32 %v2354, %v2297
        %v2356 = vadd.f32 %v2355, %v2303
        %v2357 = vadd.f32 %v2356, %v2307
        %v2358 = vadd.f32 %v2357, %v2313
        %v2359 = vadd.f32 %v2358, %v2317
        %v2360 = vadd.f32 %v2359, %v2323
        %v2361 = vadd.f32 %v2360, %v2327
        %v2362 = vrot.slane %v2361, 4
        %v2363 = vadd.f32 %v2361, %v2362
        %v2364 = vrot.slane %v2363, 2
        %v2365 = vadd.f32 %v2363, %v2364
        %v2366 = vrot.slane %v2365, 1
        %v2367 = vadd.f32 %v2365, %v2366
        %v2368 = vadd.f32 %v2175, %v2179
        %v2369 = vadd.f32 %v2368, %v2185
        %v2370 = vadd.f32 %v2369, %v2189
        %v2371 = vadd.f32 %v2370, %v2195
        %v2372 = vadd.f32 %v2371, %v2199
        %v2373 = vadd.f32 %v2372, %v2205
        %v2374 = vadd.f32 %v2373, %v2209
        %v2375 = vadd.f32 %v2374, %v2215
        %v2376 = vadd.f32 %v2375, %v2219
        %v2377 = vadd.f32 %v2376, %v2225
        %v2378 = vadd.f32 %v2377, %v2229
        %v2379 = vadd.f32 %v2378, %v2235
        %v2380 = vadd.f32 %v2379, %v2239
        %v2381 = vadd.f32 %v2380, %v2245
        %v2382 = vadd.f32 %v2381, %v2249
        %v2383 = vadd.f32 %v2382, %v2255
        %v2384 = vadd.f32 %v2383, %v2259
        %v2385 = vadd.f32 %v2384, %v2265
        %v2386 = vadd.f32 %v2385, %v2269
        %v2387 = vadd.f32 %v2386, %v2275
        %v2388 = vadd.f32 %v2387, %v2279
        %v2389 = vadd.f32 %v2388, %v2285
        %v2390 = vadd.f32 %v2389, %v2289
        %v2391 = vadd.f32 %v2390, %v2295
        %v2392 = vadd.f32 %v2391, %v2299
        %v2393 = vadd.f32 %v2392, %v2305
        %v2394 = vadd.f32 %v2393, %v2309
        %v2395 = vadd.f32 %v2394, %v2315
        %v2396 = vadd.f32 %v2395, %v2319
        %v2397 = vadd.f32 %v2396, %v2325
        %v2398 = vadd.f32 %v2397, %v2329
        %v2399 = vrot.slane %v2398, 4
        %v2400 = vadd.f32 %v2398, %v2399
        %v2401 = vrot.slane %v2400, 2
        %v2402 = vadd.f32 %v2400, %v2401
        %v2403 = vrot.slane %v2402, 1
        %v2404 = vadd.f32 %v2402, %v2403
        %v2405 = vmul.f32 %v2367, 0.0051020407
        %v2406 = vmul.f32 %v2404, 0.0051020407
        %v2407 = vmul.f32 %v2173, %v2173
        %v2408 = vmul.f32 %v2175, %v2175
        %v2409 = vmul.f32 %v2177, %v2177
        %v2410 = vmul.f32 %v2179, %v2179
        %v2411 = vmul.f32 %v2183, %v2183
        %v2412 = vmul.f32 %v2185, %v2185
        %v2413 = vmul.f32 %v2187, %v2187
        %v2414 = vmul.f32 %v2189, %v2189
        %v2415 = vmul.f32 %v2193, %v2193
        %v2416 = vmul.f32 %v2195, %v2195
        %v2417 = vmul.f32 %v2197, %v2197
        %v2418 = vmul.f32 %v2199, %v2199
        %v2419 = vmul.f32 %v2203, %v2203
        %v2420 = vmul.f32 %v2205, %v2205
        %v2421 = vmul.f32 %v2207, %v2207
        %v2422 = vmul.f32 %v2209, %v2209
        %v2423 = vmul.f32 %v2213, %v2213
        %v2424 = vmul.f32 %v2215, %v2215
        %v2425 = vmul.f32 %v2217, %v2217
        %v2426 = vmul.f32 %v2219, %v2219
        %v2427 = vmul.f32 %v2223, %v2223
        %v2428 = vmul.f32 %v2225, %v2225
        %v2429 = vmul.f32 %v2227, %v2227
        %v2430 = vmul.f32 %v2229, %v2229
        %v2431 = vmul.f32 %v2233, %v2233
        %v2432 = vmul.f32 %v2235, %v2235
        %v2433 = vmul.f32 %v2237, %v2237
        %v2434 = vmul.f32 %v2239, %v2239
        %v2435 = vmul.f32 %v2243, %v2243
        %v2436 = vmul.f32 %v2245, %v2245
        %v2437 = vmul.f32 %v2247, %v2247
        %v2438 = vmul.f32 %v2249, %v2249
        %v2439 = vmul.f32 %v2253, %v2253
        %v2440 = vmul.f32 %v2255, %v2255
        %v2441 = vmul.f32 %v2257, %v2257
        %v2442 = vmul.f32 %v2259, %v2259
        %v2443 = vmul.f32 %v2263, %v2263
        %v2444 = vmul.f32 %v2265, %v2265
        %v2445 = vmul.f32 %v2267, %v2267
        %v2446 = vmul.f32 %v2269, %v2269
        %v2447 = vmul.f32 %v2273, %v2273
        %v2448 = vmul.f32 %v2275, %v2275
        %v2449 = vmul.f32 %v2277, %v2277
        %v2450 = vmul.f32 %v2279, %v2279
        %v2451 = vmul.f32 %v2283, %v2283
        %v2452 = vmul.f32 %v2285, %v2285
        %v2453 = vmul.f32 %v2287, %v2287
        %v2454 = vmul.f32 %v2289, %v2289
        %v2455 = vmul.f32 %v2293, %v2293
        %v2456 = vmul.f32 %v2295, %v2295
        %v2457 = vmul.f32 %v2297, %v2297
        %v2458 = vmul.f32 %v2299, %v2299
        %v2459 = vmul.f32 %v2303, %v2303
        %v2460 = vmul.f32 %v2305, %v2305
        %v2461 = vmul.f32 %v2307, %v2307
        %v2462 = vmul.f32 %v2309, %v2309
        %v2463 = vmul.f32 %v2313, %v2313
        %v2464 = vmul.f32 %v2315, %v2315
        %v2465 = vmul.f32 %v2317, %v2317
        %v2466 = vmul.f32 %v2319, %v2319
        %v2467 = vmul.f32 %v2323, %v2323
        %v2468 = vmul.f32 %v2325, %v2325
        %v2469 = vmul.f32 %v2327, %v2327
        %v2470 = vmul.f32 %v2329, %v2329
        %v2471 = vadd.f32 %v2407, %v2409
        %v2472 = vadd.f32 %v2471, %v2411
        %v2473 = vadd.f32 %v2472, %v2413
        %v2474 = vadd.f32 %v2473, %v2415
        %v2475 = vadd.f32 %v2474, %v2417
        %v2476 = vadd.f32 %v2475, %v2419
        %v2477 = vadd.f32 %v2476, %v2421
        %v2478 = vadd.f32 %v2477, %v2423
        %v2479 = vadd.f32 %v2478, %v2425
        %v2480 = vadd.f32 %v2479, %v2427
        %v2481 = vadd.f32 %v2480, %v2429
        %v2482 = vadd.f32 %v2481, %v2431
        %v2483 = vadd.f32 %v2482, %v2433
        %v2484 = vadd.f32 %v2483, %v2435
        %v2485 = vadd.f32 %v2484, %v2437
        %v2486 = vadd.f32 %v2485, %v2439
        %v2487 = vadd.f32 %v2486, %v2441
        %v2488 = vadd.f32 %v2487, %v2443
        %v2489 = vadd.f32 %v2488, %v2445
        %v2490 = vadd.f32 %v2489, %v2447
        %v2491 = vadd.f32 %v2490, %v2449
        %v2492 = vadd.f32 %v2491, %v2451
        %v2493 = vadd.f32 %v2492, %v2453
        %v2494 = vadd.f32 %v2493, %v2455
        %v2495 = vadd.f32 %v2494, %v2457
        %v2496 = vadd.f32 %v2495, %v2459
        %v2497 = vadd.f32 %v2496, %v2461
        %v2498 = vadd.f32 %v2497, %v2463
        %v2499 = vadd.f32 %v2498, %v2465
        %v2500 = vadd.f32 %v2499, %v2467
        %v2501 = vadd.f32 %v2500, %v2469
        %v2502 = vrot.slane %v2501, 4
        %v2503 = vadd.f32 %v2501, %v2502
        %v2504 = vrot.slane %v2503, 2
        %v2505 = vadd.f32 %v2503, %v2504
        %v2506 = vrot.slane %v2505, 1
        %v2507 = vadd.f32 %v2505, %v2506
        %v2508 = vadd.f32 %v2408, %v2410
        %v2509 = vadd.f32 %v2508, %v2412
        %v2510 = vadd.f32 %v2509, %v2414
        %v2511 = vadd.f32 %v2510, %v2416
        %v2512 = vadd.f32 %v2511, %v2418
        %v2513 = vadd.f32 %v2512, %v2420
        %v2514 = vadd.f32 %v2513, %v2422
        %v2515 = vadd.f32 %v2514, %v2424
        %v2516 = vadd.f32 %v2515, %v2426
        %v2517 = vadd.f32 %v2516, %v2428
        %v2518 = vadd.f32 %v2517, %v2430
        %v2519 = vadd.f32 %v2518, %v2432
        %v2520 = vadd.f32 %v2519, %v2434
        %v2521 = vadd.f32 %v2520, %v2436
        %v2522 = vadd.f32 %v2521, %v2438
        %v2523 = vadd.f32 %v2522, %v2440
        %v2524 = vadd.f32 %v2523, %v2442
        %v2525 = vadd.f32 %v2524, %v2444
        %v2526 = vadd.f32 %v2525, %v2446
        %v2527 = vadd.f32 %v2526, %v2448
        %v2528 = vadd.f32 %v2527, %v2450
        %v2529 = vadd.f32 %v2528, %v2452
        %v2530 = vadd.f32 %v2529, %v2454
        %v2531 = vadd.f32 %v2530, %v2456
        %v2532 = vadd.f32 %v2531, %v2458
        %v2533 = vadd.f32 %v2532, %v2460
        %v2534 = vadd.f32 %v2533, %v2462
        %v2535 = vadd.f32 %v2534, %v2464
        %v2536 = vadd.f32 %v2535, %v2466
        %v2537 = vadd.f32 %v2536, %v2468
        %v2538 = vadd.f32 %v2537, %v2470
        %v2539 = vrot.slane %v2538, 4
        %v2540 = vadd.f32 %v2538, %v2539
        %v2541 = vrot.slane %v2540, 2
        %v2542 = vadd.f32 %v2540, %v2541
        %v2543 = vrot.slane %v2542, 1
        %v2544 = vadd.f32 %v2542, %v2543
        %v2545 = vmul.f32 %v2507, 0.0051020407
        %v2546 = vmul.f32 %v2544, 0.0051020407
        %v2547 = vmul.f32 %v2405, %v2405
        %v2548 = vmul.f32 %v2406, %v2406
        %v2549 = vsub.f32 %v2545, %v2547
        %v2550 = vsub.f32 %v2546, %v2548
        %v2551 = vadd.f32 %v2549, 1e-05
        %v2552 = vadd.f32 %v2550, 1e-05
        %v2553 = vrsqrt.pop %v2551
        %v2554 = vrsqrt.pop %v2552
        %v2555 = vld [vmem:[%s742] sm:$0x3]
        %v2557 = vlaneseq
        %v2558 = vshrl.u32 %v2557, 7
        %v2559 = vsub.s32 0, %v2558
        %v2560 = vrot.slane %v2555, %v2559
        %v2561 = vlaneseq
        %v2562 = vshrl.u32 %v2561, 7
        %v2563 = vsub.s32 1, %v2562
        %v2564 = vrot.slane %v2555, %v2563
        %v2567 = vmul.f32 %v2553, %v2560
        %v2568 = vmul.f32 %v2554, %v2564
        %v2569 = vld [vmem:[%s747] sm:$0x3]
        %v2570 = vmul.f32 %v2405, %v2567
        %v2571 = vmul.f32 %v2406, %v2568
        %v2574 = vcombine.low %v2570, %v2571
        %v2576 = vunpack.c.l.s4 1966171168
        %v2577 = vunpack.c.0.s8 %v2576
        %v2578 = vlaneseq
        %v2579 = vshrl.u32 %v2578, 7
        %v2580 = vsub.s32 %v2577, %v2579
        %v2581 = vrot.slane %v2574, %v2580
        %v2583 = vunpack.c.l.s4 1966171168
        %v2584 = vunpack.c.0.s8 %v2583
        %v2585 = vlaneseq
        %v2586 = vshrl.u32 %v2585, 7
        %v2587 = vsub.s32 %v2584, %v2586
        %v2588 = vrot.slane %v2581, %v2587
        %v2590 = vsub.f32 %v2569, %v2588
        %v2591 = vlaneseq
        %v2592 = vshrl.u32 %v2591, 7
        %v2593 = vsub.s32 0, %v2592
        %v2594 = vrot.slane %v2567, %v2593
        %v2595 = vlaneseq
        %v2596 = vshrl.u32 %v2595, 7
        %v2597 = vsub.s32 0, %v2596
        %v2598 = vrot.slane %v2568, %v2597
        %v2599 = vmul.f32 %v2173, %v2594
        %v2600 = vmul.f32 %v2175, %v2598
        %v2601 = vmul.f32 %v2177, %v2594
        %v2602 = vmul.f32 %v2179, %v2598
        %v2603 = vmul.f32 %v2183, %v2594
        %v2604 = vmul.f32 %v2185, %v2598
        %v2605 = vmul.f32 %v2187, %v2594
        %v2606 = vmul.f32 %v2189, %v2598
        %v2607 = vmul.f32 %v2193, %v2594
        %v2608 = vmul.f32 %v2195, %v2598
        %v2609 = vmul.f32 %v2197, %v2594
        %v2610 = vmul.f32 %v2199, %v2598
        %v2611 = vmul.f32 %v2203, %v2594
        %v2612 = vmul.f32 %v2205, %v2598
        %v2613 = vmul.f32 %v2207, %v2594
        %v2614 = vmul.f32 %v2209, %v2598
        %v2615 = vmul.f32 %v2213, %v2594
        %v2616 = vmul.f32 %v2215, %v2598
        %v2617 = vmul.f32 %v2217, %v2594
        %v2618 = vmul.f32 %v2219, %v2598
        %v2619 = vmul.f32 %v2223, %v2594
        %v2620 = vmul.f32 %v2225, %v2598
        %v2621 = vmul.f32 %v2227, %v2594
        %v2622 = vmul.f32 %v2229, %v2598
        %v2623 = vmul.f32 %v2233, %v2594
        %v2624 = vmul.f32 %v2235, %v2598
        %v2625 = vmul.f32 %v2237, %v2594
        %v2626 = vmul.f32 %v2239, %v2598
        %v2627 = vmul.f32 %v2243, %v2594
        %v2628 = vmul.f32 %v2245, %v2598
        %v2629 = vmul.f32 %v2247, %v2594
        %v2630 = vmul.f32 %v2249, %v2598
        %v2631 = vmul.f32 %v2253, %v2594
        %v2632 = vmul.f32 %v2255, %v2598
        %v2633 = vmul.f32 %v2257, %v2594
        %v2634 = vmul.f32 %v2259, %v2598
        %v2635 = vmul.f32 %v2263, %v2594
        %v2636 = vmul.f32 %v2265, %v2598
        %v2637 = vmul.f32 %v2267, %v2594
        %v2638 = vmul.f32 %v2269, %v2598
        %v2639 = vmul.f32 %v2273, %v2594
        %v2640 = vmul.f32 %v2275, %v2598
        %v2641 = vmul.f32 %v2277, %v2594
        %v2642 = vmul.f32 %v2279, %v2598
        %v2643 = vmul.f32 %v2283, %v2594
        %v2644 = vmul.f32 %v2285, %v2598
        %v2645 = vmul.f32 %v2287, %v2594
        %v2646 = vmul.f32 %v2289, %v2598
        %v2647 = vmul.f32 %v2293, %v2594
        %v2648 = vmul.f32 %v2295, %v2598
        %v2649 = vmul.f32 %v2297, %v2594
        %v2650 = vmul.f32 %v2299, %v2598
        %v2651 = vmul.f32 %v2303, %v2594
        %v2652 = vmul.f32 %v2305, %v2598
        %v2653 = vmul.f32 %v2307, %v2594
        %v2654 = vmul.f32 %v2309, %v2598
        %v2655 = vmul.f32 %v2313, %v2594
        %v2656 = vmul.f32 %v2315, %v2598
        %v2657 = vmul.f32 %v2317, %v2594
        %v2658 = vmul.f32 %v2319, %v2598
        %v2659 = vmul.f32 %v2323, %v2594
        %v2660 = vmul.f32 %v2325, %v2598
        %v2661 = vmul.f32 %v2327, %v2594
        %v2662 = vmul.f32 %v2329, %v2598
        %v2664 = vlaneseq
        %v2665 = vshrl.u32 %v2664, 7
        %v2666 = vsub.s32 0, %v2665
        %v2667 = vrot.slane %v2590, %v2666
        %v2668 = vlaneseq
        %v2669 = vshrl.u32 %v2668, 7
        %v2670 = vsub.s32 1, %v2669
        %v2671 = vrot.slane %v2590, %v2670
        %v2674 = vadd.f32 %v2599, %v2667
        %v2675 = vadd.f32 %v2600, %v2671
        %v2676 = vadd.f32 %v2601, %v2667
        %v2677 = vadd.f32 %v2602, %v2671
        %v2678 = vadd.f32 %v2603, %v2667
        %v2679 = vadd.f32 %v2604, %v2671
        %v2680 = vadd.f32 %v2605, %v2667
        %v2681 = vadd.f32 %v2606, %v2671
        %v2682 = vadd.f32 %v2607, %v2667
        %v2683 = vadd.f32 %v2608, %v2671
        %v2684 = vadd.f32 %v2609, %v2667
        %v2685 = vadd.f32 %v2610, %v2671
        %v2686 = vadd.f32 %v2611, %v2667
        %v2687 = vadd.f32 %v2612, %v2671
        %v2688 = vadd.f32 %v2613, %v2667
        %v2689 = vadd.f32 %v2614, %v2671
        %v2690 = vadd.f32 %v2615, %v2667
        %v2691 = vadd.f32 %v2616, %v2671
        %v2692 = vadd.f32 %v2617, %v2667
        %v2693 = vadd.f32 %v2618, %v2671
        %v2694 = vadd.f32 %v2619, %v2667
        %v2695 = vadd.f32 %v2620, %v2671
        %v2696 = vadd.f32 %v2621, %v2667
        %v2697 = vadd.f32 %v2622, %v2671
        %v2698 = vadd.f32 %v2623, %v2667
        %v2699 = vadd.f32 %v2624, %v2671
        %v2700 = vadd.f32 %v2625, %v2667
        %v2701 = vadd.f32 %v2626, %v2671
        %v2702 = vadd.f32 %v2627, %v2667
        %v2703 = vadd.f32 %v2628, %v2671
        %v2704 = vadd.f32 %v2629, %v2667
        %v2705 = vadd.f32 %v2630, %v2671
        %v2706 = vadd.f32 %v2631, %v2667
        %v2707 = vadd.f32 %v2632, %v2671
        %v2708 = vadd.f32 %v2633, %v2667
        %v2709 = vadd.f32 %v2634, %v2671
        %v2710 = vadd.f32 %v2635, %v2667
        %v2711 = vadd.f32 %v2636, %v2671
        %v2712 = vadd.f32 %v2637, %v2667
        %v2713 = vadd.f32 %v2638, %v2671
        %v2714 = vadd.f32 %v2639, %v2667
        %v2715 = vadd.f32 %v2640, %v2671
        %v2716 = vadd.f32 %v2641, %v2667
        %v2717 = vadd.f32 %v2642, %v2671
        %v2718 = vadd.f32 %v2643, %v2667
        %v2719 = vadd.f32 %v2644, %v2671
        %v2720 = vadd.f32 %v2645, %v2667
        %v2721 = vadd.f32 %v2646, %v2671
        %v2722 = vadd.f32 %v2647, %v2667
        %v2723 = vadd.f32 %v2648, %v2671
        %v2724 = vadd.f32 %v2649, %v2667
        %v2725 = vadd.f32 %v2650, %v2671
        %v2726 = vadd.f32 %v2651, %v2667
        %v2727 = vadd.f32 %v2652, %v2671
        %v2728 = vadd.f32 %v2653, %v2667
        %v2729 = vadd.f32 %v2654, %v2671
        %v2730 = vadd.f32 %v2655, %v2667
        %v2731 = vadd.f32 %v2656, %v2671
        %v2732 = vadd.f32 %v2657, %v2667
        %v2733 = vadd.f32 %v2658, %v2671
        %v2734 = vadd.f32 %v2659, %v2667
        %v2735 = vadd.f32 %v2660, %v2671
        %v2736 = vadd.f32 %v2661, %v2667
        %v2737 = vadd.f32 %v2662, %v2671
        %v2738 = vmax.f32 %v2674, 0.0
        %v2739 = vmax.f32 %v2675, 0.0
        %v2740 = vmax.f32 %v2676, 0.0
        %v2741 = vmax.f32 %v2677, 0.0
        %v2742 = vmax.f32 %v2678, 0.0
        %v2743 = vmax.f32 %v2679, 0.0
        %v2744 = vmax.f32 %v2680, 0.0
        %v2745 = vmax.f32 %v2681, 0.0
        %v2746 = vmax.f32 %v2682, 0.0
        %v2747 = vmax.f32 %v2683, 0.0
        %v2748 = vmax.f32 %v2684, 0.0
        %v2749 = vmax.f32 %v2685, 0.0
        %v2750 = vmax.f32 %v2686, 0.0
        %v2751 = vmax.f32 %v2687, 0.0
        %v2752 = vmax.f32 %v2688, 0.0
        %v2753 = vmax.f32 %v2689, 0.0
        %v2754 = vmax.f32 %v2690, 0.0
        %v2755 = vmax.f32 %v2691, 0.0
        %v2756 = vmax.f32 %v2692, 0.0
        %v2757 = vmax.f32 %v2693, 0.0
        %v2758 = vmax.f32 %v2694, 0.0
        %v2759 = vmax.f32 %v2695, 0.0
        %v2760 = vmax.f32 %v2696, 0.0
        %v2761 = vmax.f32 %v2697, 0.0
        %v2762 = vmax.f32 %v2698, 0.0
        %v2763 = vmax.f32 %v2699, 0.0
        %v2764 = vmax.f32 %v2700, 0.0
        %v2765 = vmax.f32 %v2701, 0.0
        %v2766 = vmax.f32 %v2702, 0.0
        %v2767 = vmax.f32 %v2703, 0.0
        %v2768 = vmax.f32 %v2704, 0.0
        %v2769 = vmax.f32 %v2705, 0.0
        %v2770 = vmax.f32 %v2706, 0.0
        %v2771 = vmax.f32 %v2707, 0.0
        %v2772 = vmax.f32 %v2708, 0.0
        %v2773 = vmax.f32 %v2709, 0.0
        %v2774 = vmax.f32 %v2710, 0.0
        %v2775 = vmax.f32 %v2711, 0.0
        %v2776 = vmax.f32 %v2712, 0.0
        %v2777 = vmax.f32 %v2713, 0.0
        %v2778 = vmax.f32 %v2714, 0.0
        %v2779 = vmax.f32 %v2715, 0.0
        %v2780 = vmax.f32 %v2716, 0.0
        %v2781 = vmax.f32 %v2717, 0.0
        %v2782 = vmax.f32 %v2718, 0.0
        %v2783 = vmax.f32 %v2719, 0.0
        %v2784 = vmax.f32 %v2720, 0.0
        %v2785 = vmax.f32 %v2721, 0.0
        %v2786 = vmax.f32 %v2722, 0.0
        %v2787 = vmax.f32 %v2723, 0.0
        %v2788 = vmax.f32 %v2724, 0.0
        %v2789 = vmax.f32 %v2725, 0.0
        %v2790 = vmax.f32 %v2726, 0.0
        %v2791 = vmax.f32 %v2727, 0.0
        %v2792 = vmax.f32 %v2728, 0.0
        %v2793 = vmax.f32 %v2729, 0.0
        %v2794 = vmax.f32 %v2730, 0.0
        %v2795 = vmax.f32 %v2731, 0.0
        %v2796 = vmax.f32 %v2732, 0.0
        %v2797 = vmax.f32 %v2733, 0.0
        %v2798 = vmax.f32 %v2734, 0.0
        %v2799 = vmax.f32 %v2735, 0.0
        %v2800 = vmax.f32 %v2736, 0.0
        %v2801 = vmax.f32 %v2737, 0.0
        %v2802 = vld [vmem:[%s4] sm:$0xff]
        %v2803 = vld [vmem:[%s4 + $0x8] sm:$0xff]
        %v2804 = vld [vmem:[%s4 + $0x10] sm:$0xff]
        %v2805 = vld [vmem:[%s4 + $0x18] sm:$0xff]
        %v2806 = vld [vmem:[%s4 + $0x20] sm:$0xff]
        %v2807 = vld [vmem:[%s4 + $0x28] sm:$0xff]
        %v2808 = vld [vmem:[%s4 + $0x30] sm:$0xff]
        %v2809 = vld [vmem:[%s4 + $0x38] sm:$0xff]
        %v2810 = vld [vmem:[%s4 + $0x40] sm:$0xff]
        %v2811 = vld [vmem:[%s4 + $0x48] sm:$0xff]
        %v2812 = vld [vmem:[%s4 + $0x50] sm:$0xff]
        %v2813 = vld [vmem:[%s4 + $0x58] sm:$0xff]
        %v2814 = vld [vmem:[%s4 + $0x60] sm:$0xff]
        %v2815 = vld [vmem:[%s4 + $0x68] sm:$0xff]
        %v2816 = vld [vmem:[%s4 + $0x70] sm:$0xff]
        %v2817 = vld [vmem:[%s4 + $0x78] sm:$0xff]
        %v2818 = vld [vmem:[%s4 + $0x80] sm:$0xff]
        %v2819 = vld [vmem:[%s4 + $0x88] sm:$0xff]
        %v2820 = vld [vmem:[%s4 + $0x90] sm:$0xff]
        %v2821 = vld [vmem:[%s4 + $0x98] sm:$0xff]
        %v2822 = vld [vmem:[%s4 + $0xa0] sm:$0xff]
        %v2823 = vld [vmem:[%s4 + $0xa8] sm:$0xff]
        %v2824 = vld [vmem:[%s4 + $0xb0] sm:$0xff]
        %v2825 = vld [vmem:[%s4 + $0xb8] sm:$0xff]
        %v2826 = vld [vmem:[%s4 + $0xc0] sm:$0xff]
        %v2827 = vld [vmem:[%s4 + $0xc8] sm:$0xff]
        %v2828 = vld [vmem:[%s4 + $0xd0] sm:$0xff]
        %v2829 = vld [vmem:[%s4 + $0xd8] sm:$0xff]
        %v2830 = vld [vmem:[%s4 + $0xe0] sm:$0xff]
        %v2831 = vld [vmem:[%s4 + $0xe8] sm:$0xff]
        %v2832 = vld [vmem:[%s4 + $0xf0] sm:$0xff]
        %v2833 = vld [vmem:[%s4 + $0xf8] sm:$0xff]
        %2835 = vset.pattern.permute.xlu0 0
        %2836 = vperm.xlu0 %2835, %v2802
        %v2837 = vpop.permute.xlu0 %2836
        %2840 = vset.pattern.permute.xlu0 0
        %2841 = vperm.xlu0 %2840, %v2803
        %v2842 = vpop.permute.xlu0 %2841
        %2845 = vset.pattern.permute.xlu0 0
        %2846 = vperm.xlu0 %2845, %v2804
        %v2847 = vpop.permute.xlu0 %2846
        %2850 = vset.pattern.permute.xlu0 0
        %2851 = vperm.xlu0 %2850, %v2805
        %v2852 = vpop.permute.xlu0 %2851
        %2855 = vset.pattern.permute.xlu0 0
        %2856 = vperm.xlu0 %2855, %v2806
        %v2857 = vpop.permute.xlu0 %2856
        %2860 = vset.pattern.permute.xlu0 0
        %2861 = vperm.xlu0 %2860, %v2807
        %v2862 = vpop.permute.xlu0 %2861
        %2865 = vset.pattern.permute.xlu0 0
        %2866 = vperm.xlu0 %2865, %v2808
        %v2867 = vpop.permute.xlu0 %2866
        %2870 = vset.pattern.permute.xlu0 0
        %2871 = vperm.xlu0 %2870, %v2809
        %v2872 = vpop.permute.xlu0 %2871
        %2875 = vset.pattern.permute.xlu0 0
        %2876 = vperm.xlu0 %2875, %v2810
        %v2877 = vpop.permute.xlu0 %2876
        %2880 = vset.pattern.permute.xlu0 0
        %2881 = vperm.xlu0 %2880, %v2811
        %v2882 = vpop.permute.xlu0 %2881
        %2885 = vset.pattern.permute.xlu0 0
        %2886 = vperm.xlu0 %2885, %v2812
        %v2887 = vpop.permute.xlu0 %2886
        %2890 = vset.pattern.permute.xlu0 0
        %2891 = vperm.xlu0 %2890, %v2813
        %v2892 = vpop.permute.xlu0 %2891
        %2895 = vset.pattern.permute.xlu0 0
        %2896 = vperm.xlu0 %2895, %v2814
        %v2897 = vpop.permute.xlu0 %2896
        %2900 = vset.pattern.permute.xlu0 0
        %2901 = vperm.xlu0 %2900, %v2815
        %v2902 = vpop.permute.xlu0 %2901
        %2905 = vset.pattern.permute.xlu0 0
        %2906 = vperm.xlu0 %2905, %v2816
        %v2907 = vpop.permute.xlu0 %2906
        %2910 = vset.pattern.permute.xlu0 0
        %2911 = vperm.xlu0 %2910, %v2817
        %v2912 = vpop.permute.xlu0 %2911
        %2915 = vset.pattern.permute.xlu0 0
        %2916 = vperm.xlu0 %2915, %v2818
        %v2917 = vpop.permute.xlu0 %2916
        %2920 = vset.pattern.permute.xlu0 0
        %2921 = vperm.xlu0 %2920, %v2819
        %v2922 = vpop.permute.xlu0 %2921
        %2925 = vset.pattern.permute.xlu0 0
        %2926 = vperm.xlu0 %2925, %v2820
        %v2927 = vpop.permute.xlu0 %2926
        %2930 = vset.pattern.permute.xlu0 0
        %2931 = vperm.xlu0 %2930, %v2821
        %v2932 = vpop.permute.xlu0 %2931
        %2935 = vset.pattern.permute.xlu0 0
        %2936 = vperm.xlu0 %2935, %v2822
        %v2937 = vpop.permute.xlu0 %2936
        %2940 = vset.pattern.permute.xlu0 0
        %2941 = vperm.xlu0 %2940, %v2823
        %v2942 = vpop.permute.xlu0 %2941
        %2945 = vset.pattern.permute.xlu0 0
        %2946 = vperm.xlu0 %2945, %v2824
        %v2947 = vpop.permute.xlu0 %2946
        %2950 = vset.pattern.permute.xlu0 0
        %2951 = vperm.xlu0 %2950, %v2825
        %v2952 = vpop.permute.xlu0 %2951
        %2955 = vset.pattern.permute.xlu0 0
        %2956 = vperm.xlu0 %2955, %v2826
        %v2957 = vpop.permute.xlu0 %2956
        %2960 = vset.pattern.permute.xlu0 0
        %2961 = vperm.xlu0 %2960, %v2827
        %v2962 = vpop.permute.xlu0 %2961
        %2965 = vset.pattern.permute.xlu0 0
        %2966 = vperm.xlu0 %2965, %v2828
        %v2967 = vpop.permute.xlu0 %2966
        %2970 = vset.pattern.permute.xlu0 0
        %2971 = vperm.xlu0 %2970, %v2829
        %v2972 = vpop.permute.xlu0 %2971
        %2975 = vset.pattern.permute.xlu0 0
        %2976 = vperm.xlu0 %2975, %v2830
        %v2977 = vpop.permute.xlu0 %2976
        %2980 = vset.pattern.permute.xlu0 0
        %2981 = vperm.xlu0 %2980, %v2831
        %v2982 = vpop.permute.xlu0 %2981
        %2985 = vset.pattern.permute.xlu0 0
        %2986 = vperm.xlu0 %2985, %v2832
        %v2987 = vpop.permute.xlu0 %2986
        %2990 = vset.pattern.permute.xlu0 0
        %2991 = vperm.xlu0 %2990, %v2833
        %v2992 = vpop.permute.xlu0 %2991
        %v2994 = vmul.f32 %v2738, %v2837
        %v2995 = vmul.f32 %v2739, %v2837
        %v2996 = vmul.f32 %v2740, %v2842
        %v2997 = vmul.f32 %v2741, %v2842
        %v2998 = vmul.f32 %v2742, %v2847
        %v2999 = vmul.f32 %v2743, %v2847
        %v3000 = vmul.f32 %v2744, %v2852
        %v3001 = vmul.f32 %v2745, %v2852
        %v3002 = vmul.f32 %v2746, %v2857
        %v3003 = vmul.f32 %v2747, %v2857
        %v3004 = vmul.f32 %v2748, %v2862
        %v3005 = vmul.f32 %v2749, %v2862
        %v3006 = vmul.f32 %v2750, %v2867
        %v3007 = vmul.f32 %v2751, %v2867
        %v3008 = vmul.f32 %v2752, %v2872
        %v3009 = vmul.f32 %v2753, %v2872
        %v3010 = vmul.f32 %v2754, %v2877
        %v3011 = vmul.f32 %v2755, %v2877
        %v3012 = vmul.f32 %v2756, %v2882
        %v3013 = vmul.f32 %v2757, %v2882
        %v3014 = vmul.f32 %v2758, %v2887
        %v3015 = vmul.f32 %v2759, %v2887
        %v3016 = vmul.f32 %v2760, %v2892
        %v3017 = vmul.f32 %v2761, %v2892
        %v3018 = vmul.f32 %v2762, %v2897
        %v3019 = vmul.f32 %v2763, %v2897
        %v3020 = vmul.f32 %v2764, %v2902
        %v3021 = vmul.f32 %v2765, %v2902
        %v3022 = vmul.f32 %v2766, %v2907
        %v3023 = vmul.f32 %v2767, %v2907
        %v3024 = vmul.f32 %v2768, %v2912
        %v3025 = vmul.f32 %v2769, %v2912
        %v3026 = vmul.f32 %v2770, %v2917
        %v3027 = vmul.f32 %v2771, %v2917
        %v3028 = vmul.f32 %v2772, %v2922
        %v3029 = vmul.f32 %v2773, %v2922
        %v3030 = vmul.f32 %v2774, %v2927
        %v3031 = vmul.f32 %v2775, %v2927
        %v3032 = vmul.f32 %v2776, %v2932
        %v3033 = vmul.f32 %v2777, %v2932
        %v3034 = vmul.f32 %v2778, %v2937
        %v3035 = vmul.f32 %v2779, %v2937
        %v3036 = vmul.f32 %v2780, %v2942
        %v3037 = vmul.f32 %v2781, %v2942
        %v3038 = vmul.f32 %v2782, %v2947
        %v3039 = vmul.f32 %v2783, %v2947
        %v3040 = vmul.f32 %v2784, %v2952
        %v3041 = vmul.f32 %v2785, %v2952
        %v3042 = vmul.f32 %v2786, %v2957
        %v3043 = vmul.f32 %v2787, %v2957
        %v3044 = vmul.f32 %v2788, %v2962
        %v3045 = vmul.f32 %v2789, %v2962
        %v3046 = vmul.f32 %v2790, %v2967
        %v3047 = vmul.f32 %v2791, %v2967
        %v3048 = vmul.f32 %v2792, %v2972
        %v3049 = vmul.f32 %v2793, %v2972
        %v3050 = vmul.f32 %v2794, %v2977
        %v3051 = vmul.f32 %v2795, %v2977
        %v3052 = vmul.f32 %v2796, %v2982
        %v3053 = vmul.f32 %v2797, %v2982
        %v3054 = vmul.f32 %v2798, %v2987
        %v3055 = vmul.f32 %v2799, %v2987
        %v3056 = vmul.f32 %v2800, %v2992
        %v3057 = vmul.f32 %v2801, %v2992
        %3058 = vst [vmem:[#allocation2] sm:$0xff] %v2994
        %3059 = vst [vmem:[#allocation2 + $0x8] sm:$0xff] %v2995
        %3060 = vst [vmem:[#allocation2 + $0x10] sm:$0xff] %v2996
        %3061 = vst [vmem:[#allocation2 + $0x18] sm:$0xff] %v2997
        %3062 = vst [vmem:[#allocation2 + $0x20] sm:$0xff] %v2998
        %3063 = vst [vmem:[#allocation2 + $0x28] sm:$0xff] %v2999
        %3064 = vst [vmem:[#allocation2 + $0x30] sm:$0xff] %v3000
        %3065 = vst [vmem:[#allocation2 + $0x38] sm:$0xff] %v3001
        %3066 = vst [vmem:[#allocation2 + $0x40] sm:$0xff] %v3002
        %3067 = vst [vmem:[#allocation2 + $0x48] sm:$0xff] %v3003
        %3068 = vst [vmem:[#allocation2 + $0x50] sm:$0xff] %v3004
        %3069 = vst [vmem:[#allocation2 + $0x58] sm:$0xff] %v3005
        %3070 = vst [vmem:[#allocation2 + $0x60] sm:$0xff] %v3006
        %3071 = vst [vmem:[#allocation2 + $0x68] sm:$0xff] %v3007
        %3072 = vst [vmem:[#allocation2 + $0x70] sm:$0xff] %v3008
        %3073 = vst [vmem:[#allocation2 + $0x78] sm:$0xff] %v3009
        %3074 = vst [vmem:[#allocation2 + $0x80] sm:$0xff] %v3010
        %3075 = vst [vmem:[#allocation2 + $0x88] sm:$0xff] %v3011
        %3076 = vst [vmem:[#allocation2 + $0x90] sm:$0xff] %v3012
        %3077 = vst [vmem:[#allocation2 + $0x98] sm:$0xff] %v3013
        %3078 = vst [vmem:[#allocation2 + $0xa0] sm:$0xff] %v3014
        %3079 = vst [vmem:[#allocation2 + $0xa8] sm:$0xff] %v3015
        %3080 = vst [vmem:[#allocation2 + $0xb0] sm:$0xff] %v3016
        %3081 = vst [vmem:[#allocation2 + $0xb8] sm:$0xff] %v3017
        %3082 = vst [vmem:[#allocation2 + $0xc0] sm:$0xff] %v3018
        %3083 = vst [vmem:[#allocation2 + $0xc8] sm:$0xff] %v3019
        %3084 = vst [vmem:[#allocation2 + $0xd0] sm:$0xff] %v3020
        %3085 = vst [vmem:[#allocation2 + $0xd8] sm:$0xff] %v3021
        %3086 = vst [vmem:[#allocation2 + $0xe0] sm:$0xff] %v3022
        %3087 = vst [vmem:[#allocation2 + $0xe8] sm:$0xff] %v3023
        %3088 = vst [vmem:[#allocation2 + $0xf0] sm:$0xff] %v3024
        %3089 = vst [vmem:[#allocation2 + $0xf8] sm:$0xff] %v3025
        %3090 = vst [vmem:[#allocation2 + $0x100] sm:$0xff] %v3026
        %3091 = vst [vmem:[#allocation2 + $0x108] sm:$0xff] %v3027
        %3092 = vst [vmem:[#allocation2 + $0x110] sm:$0xff] %v3028
        %3093 = vst [vmem:[#allocation2 + $0x118] sm:$0xff] %v3029
        %3094 = vst [vmem:[#allocation2 + $0x120] sm:$0xff] %v3030
        %3095 = vst [vmem:[#allocation2 + $0x128] sm:$0xff] %v3031
        %3096 = vst [vmem:[#allocation2 + $0x130] sm:$0xff] %v3032
        %3097 = vst [vmem:[#allocation2 + $0x138] sm:$0xff] %v3033
        %3098 = vst [vmem:[#allocation2 + $0x140] sm:$0xff] %v3034
        %3099 = vst [vmem:[#allocation2 + $0x148] sm:$0xff] %v3035
        %3100 = vst [vmem:[#allocation2 + $0x150] sm:$0xff] %v3036
        %3101 = vst [vmem:[#allocation2 + $0x158] sm:$0xff] %v3037
        %3102 = vst [vmem:[#allocation2 + $0x160] sm:$0xff] %v3038
        %3103 = vst [vmem:[#allocation2 + $0x168] sm:$0xff] %v3039
        %3104 = vst [vmem:[#allocation2 + $0x170] sm:$0xff] %v3040
        %3105 = vst [vmem:[#allocation2 + $0x178] sm:$0xff] %v3041
        %3106 = vst [vmem:[#allocation2 + $0x180] sm:$0xff] %v3042
        %3107 = vst [vmem:[#allocation2 + $0x188] sm:$0xff] %v3043
        %3108 = vst [vmem:[#allocation2 + $0x190] sm:$0xff] %v3044
        %3109 = vst [vmem:[#allocation2 + $0x198] sm:$0xff] %v3045
        %3110 = vst [vmem:[#allocation2 + $0x1a0] sm:$0xff] %v3046
        %3111 = vst [vmem:[#allocation2 + $0x1a8] sm:$0xff] %v3047
        %3112 = vst [vmem:[#allocation2 + $0x1b0] sm:$0xff] %v3048
        %3113 = vst [vmem:[#allocation2 + $0x1b8] sm:$0xff] %v3049
        %3114 = vst [vmem:[#allocation2 + $0x1c0] sm:$0xff] %v3050
        %3115 = vst [vmem:[#allocation2 + $0x1c8] sm:$0xff] %v3051
        %3116 = vst [vmem:[#allocation2 + $0x1d0] sm:$0xff] %v3052
        %3117 = vst [vmem:[#allocation2 + $0x1d8] sm:$0xff] %v3053
        %3118 = vst [vmem:[#allocation2 + $0x1e0] sm:$0xff] %v3054
        %3119 = vst [vmem:[#allocation2 + $0x1e8] sm:$0xff] %v3055
        %3120 = vst [vmem:[#allocation2 + $0x1f0] sm:$0xff] %v3056
        %3121 = vst [vmem:[#allocation2 + $0x1f8] sm:$0xff] %v3057
        %v3122 = vld [vmem:[#allocation2] sm:$0xff]
        %v3123 = vld [vmem:[#allocation2 + $0x8] sm:$0xff]
        %v3124 = vld [vmem:[#allocation2 + $0x10] sm:$0xff]
        %v3125 = vld [vmem:[#allocation2 + $0x18] sm:$0xff]
        %v3126 = vld [vmem:[#allocation2 + $0x20] sm:$0xff]
        %v3127 = vld [vmem:[#allocation2 + $0x28] sm:$0xff]
        %v3128 = vld [vmem:[#allocation2 + $0x30] sm:$0xff]
        %v3129 = vld [vmem:[#allocation2 + $0x38] sm:$0xff]
        %v3130 = vld [vmem:[#allocation2 + $0x40] sm:$0xff]
        %v3131 = vld [vmem:[#allocation2 + $0x48] sm:$0xff]
        %v3132 = vld [vmem:[#allocation2 + $0x50] sm:$0xff]
        %v3133 = vld [vmem:[#allocation2 + $0x58] sm:$0xff]
        %v3134 = vld [vmem:[#allocation2 + $0x60] sm:$0xff]
        %v3135 = vld [vmem:[#allocation2 + $0x68] sm:$0xff]
        %v3136 = vld [vmem:[#allocation2 + $0x80] sm:$0xff]
        %v3137 = vld [vmem:[#allocation2 + $0x88] sm:$0xff]
        %v3138 = vld [vmem:[#allocation2 + $0x90] sm:$0xff]
        %v3139 = vld [vmem:[#allocation2 + $0x98] sm:$0xff]
        %v3140 = vld [vmem:[#allocation2 + $0xa0] sm:$0xff]
        %v3141 = vld [vmem:[#allocation2 + $0xa8] sm:$0xff]
        %v3142 = vld [vmem:[#allocation2 + $0xb0] sm:$0xff]
        %v3143 = vld [vmem:[#allocation2 + $0xb8] sm:$0xff]
        %v3144 = vld [vmem:[#allocation2 + $0xc0] sm:$0xff]
        %v3145 = vld [vmem:[#allocation2 + $0xc8] sm:$0xff]
        %v3146 = vld [vmem:[#allocation2 + $0xd0] sm:$0xff]
        %v3147 = vld [vmem:[#allocation2 + $0xd8] sm:$0xff]
        %v3148 = vld [vmem:[#allocation2 + $0xe0] sm:$0xff]
        %v3149 = vld [vmem:[#allocation2 + $0xe8] sm:$0xff]
        %v3150 = vld [vmem:[#allocation2 + $0x100] sm:$0xff]
        %v3151 = vld [vmem:[#allocation2 + $0x108] sm:$0xff]
        %v3152 = vld [vmem:[#allocation2 + $0x110] sm:$0xff]
        %v3153 = vld [vmem:[#allocation2 + $0x118] sm:$0xff]
        %v3154 = vld [vmem:[#allocation2 + $0x120] sm:$0xff]
        %v3155 = vld [vmem:[#allocation2 + $0x128] sm:$0xff]
        %v3156 = vld [vmem:[#allocation2 + $0x130] sm:$0xff]
        %v3157 = vld [vmem:[#allocation2 + $0x138] sm:$0xff]
        %v3158 = vld [vmem:[#allocation2 + $0x140] sm:$0xff]
        %v3159 = vld [vmem:[#allocation2 + $0x148] sm:$0xff]
        %v3160 = vld [vmem:[#allocation2 + $0x150] sm:$0xff]
        %v3161 = vld [vmem:[#allocation2 + $0x158] sm:$0xff]
        %v3162 = vld [vmem:[#allocation2 + $0x160] sm:$0xff]
        %v3163 = vld [vmem:[#allocation2 + $0x168] sm:$0xff]
        %v3164 = vld [vmem:[#allocation2 + $0x180] sm:$0xff]
        %v3165 = vld [vmem:[#allocation2 + $0x188] sm:$0xff]
        %v3166 = vld [vmem:[#allocation2 + $0x190] sm:$0xff]
        %v3167 = vld [vmem:[#allocation2 + $0x198] sm:$0xff]
        %v3168 = vld [vmem:[#allocation2 + $0x1a0] sm:$0xff]
        %v3169 = vld [vmem:[#allocation2 + $0x1a8] sm:$0xff]
        %v3170 = vld [vmem:[#allocation2 + $0x1b0] sm:$0xff]
        %v3171 = vld [vmem:[#allocation2 + $0x1b8] sm:$0xff]
        %v3172 = vld [vmem:[#allocation2 + $0x1c0] sm:$0xff]
        %v3173 = vld [vmem:[#allocation2 + $0x1c8] sm:$0xff]
        %v3174 = vld [vmem:[#allocation2 + $0x1d0] sm:$0xff]
        %v3175 = vld [vmem:[#allocation2 + $0x1d8] sm:$0xff]
        %v3176 = vld [vmem:[#allocation2 + $0x1e0] sm:$0xff]
        %v3177 = vld [vmem:[#allocation2 + $0x1e8] sm:$0xff]
        %v3178 = vld [vmem:[#allocation2 + $0x70] sm:$0xff]
        %v3179 = vld [vmem:[#allocation2 + $0x78] sm:$0xff]
        %v3180 = vld [vmem:[#allocation2 + $0xf0] sm:$0xff]
        %v3181 = vld [vmem:[#allocation2 + $0xf8] sm:$0xff]
        %v3182 = vpack.c.bf16 %v3124, %v3122
        %v3183 = vpack.c.bf16 %v3138, %v3136
        %v3184 = vpack.c.bf16 %v3152, %v3150
        %v3185 = vpack.c.bf16 %v3166, %v3164
        %v3186 = vpack.c.bf16 %v3126, %v3124
        %v3187 = vpack.c.bf16 %v3140, %v3138
        %v3188 = vpack.c.bf16 %v3128, %v3126
        %v3189 = vpack.c.bf16 %v3142, %v3140
        %v3190 = vpack.c.bf16 %v3156, %v3154
        %v3191 = vpack.c.bf16 %v3170, %v3168
        %v3192 = vpack.c.bf16 %v3130, %v3128
        %v3193 = vpack.c.bf16 %v3144, %v3142
        %v3194 = vpack.c.bf16 %v3132, %v3130
        %v3195 = vpack.c.bf16 %v3146, %v3144
        %v3196 = vpack.c.bf16 %v3160, %v3158
        %v3197 = vpack.c.bf16 %v3174, %v3172
        %v3198 = vpack.c.bf16 %v3134, %v3132
        %v3199 = vpack.c.bf16 %v3148, %v3146
        %v3200 = vpack.c.bf16 %v3134, %v3134
        %v3201 = vpack.c.bf16 %v3148, %v3148
        %v3202 = vpack.c.bf16 %v3162, %v3162
        %v3203 = vpack.c.bf16 %v3176, %v3176
        %v3204 = vpack.c.bf16 %v3178, %v3178
        %v3205 = vpack.c.bf16 %v3180, %v3180
        %v3206 = vld [vmem:[%s754] sm:$0xf]
        %v3207 = vld [vmem:[%s754 + $0x4] sm:$0xf]
        %v3208 = vld [vmem:[%s754 + $0x8] sm:$0xf]
        %v3209 = vld [vmem:[%s754 + $0xc] sm:$0xf]
        %v3210 = vld [vmem:[%s754 + $0x10] sm:$0xf]
        %v3211 = vld [vmem:[%s754 + $0x14] sm:$0xf]
        %v3212 = vld [vmem:[%s754 + $0x18] sm:$0xf]
        %v3213 = vld [vmem:[%s754 + $0x1c] sm:$0xf]
        %v3214 = vld [vmem:[%s754 + $0x20] sm:$0xf]
        %v3215 = vld [vmem:[%s754 + $0x24] sm:$0xf]
        %v3216 = vld [vmem:[%s754 + $0x28] sm:$0xf]
        %v3217 = vld [vmem:[%s754 + $0x2c] sm:$0xf]
        %v3218 = vld [vmem:[%s754 + $0x30] sm:$0xf]
        %v3219 = vld [vmem:[%s754 + $0x34] sm:$0xf]
        %v3220 = vld [vmem:[%s754 + $0x38] sm:$0xf]
        %v3221 = vld [vmem:[%s754 + $0x3c] sm:$0xf]
        %v3222 = vld [vmem:[%s754 + $0x40] sm:$0xf]
        %v3223 = vld [vmem:[%s754 + $0x44] sm:$0xf]
        %v3224 = vld [vmem:[%s754 + $0x48] sm:$0xf]
        %v3225 = vld [vmem:[%s754 + $0x4c] sm:$0xf]
        %v3226 = vld [vmem:[%s754 + $0x50] sm:$0xf]
        %v3227 = vld [vmem:[%s754 + $0x54] sm:$0xf]
        %v3228 = vld [vmem:[%s754 + $0x58] sm:$0xf]
        %v3229 = vld [vmem:[%s754 + $0x5c] sm:$0xf]
        %v3230 = vld [vmem:[%s754 + $0x60] sm:$0xf]
        %v3231 = vld [vmem:[%s754 + $0x64] sm:$0xf]
        %v3232 = vld [vmem:[%s754 + $0x68] sm:$0xf]
        %v3233 = vld [vmem:[%s754 + $0x6c] sm:$0xf]
        %v3234 = vld [vmem:[%s754 + $0x70] sm:$0xf]
        %v3235 = vld [vmem:[%s754 + $0x74] sm:$0xf]
        %v3236 = vld [vmem:[%s754 + $0x78] sm:$0xf]
        %v3237 = vld [vmem:[%s754 + $0x7c] sm:$0xf]
        %v3238 = vld [vmem:[%s754 + $0x80] sm:$0xf]
        %v3239 = vld [vmem:[%s754 + $0x84] sm:$0xf]
        %v3240 = vld [vmem:[%s754 + $0x88] sm:$0xf]
        %v3241 = vld [vmem:[%s754 + $0x8c] sm:$0xf]
        %v3242 = vld [vmem:[%s754 + $0x90] sm:$0xf]
        %v3243 = vld [vmem:[%s754 + $0x94] sm:$0xf]
        %v3244 = vld [vmem:[%s754 + $0x98] sm:$0xf]
        %v3245 = vld [vmem:[%s754 + $0x9c] sm:$0xf]
        %v3246 = vld [vmem:[%s754 + $0xa0] sm:$0xf]
        %v3247 = vld [vmem:[%s754 + $0xa4] sm:$0xf]
        %v3248 = vld [vmem:[%s754 + $0xa8] sm:$0xf]
        %v3249 = vld [vmem:[%s754 + $0xac] sm:$0xf]
        %v3250 = vld [vmem:[%s754 + $0xb0] sm:$0xf]
        %v3251 = vld [vmem:[%s754 + $0xb4] sm:$0xf]
        %v3252 = vld [vmem:[%s754 + $0xb8] sm:$0xf]
        %v3253 = vld [vmem:[%s754 + $0xbc] sm:$0xf]
        %v3254 = vld [vmem:[%s754 + $0xc0] sm:$0xf]
        %v3255 = vld [vmem:[%s754 + $0xc4] sm:$0xf]
        %v3256 = vld [vmem:[%s754 + $0xc8] sm:$0xf]
        %v3257 = vld [vmem:[%s754 + $0xcc] sm:$0xf]
        %v3258 = vld [vmem:[%s754 + $0xd0] sm:$0xf]
        %v3259 = vld [vmem:[%s754 + $0xd4] sm:$0xf]
        %v3260 = vld [vmem:[%s754 + $0xd8] sm:$0xf]
        %v3261 = vld [vmem:[%s754 + $0xdc] sm:$0xf]
        %v3262 = vld [vmem:[%s754 + $0xe0] sm:$0xf]
        %v3263 = vld [vmem:[%s754 + $0xe4] sm:$0xf]
        %v3264 = vld [vmem:[%s754 + $0xe8] sm:$0xf]
        %v3265 = vld [vmem:[%s754 + $0xec] sm:$0xf]
        %v3266 = vld [vmem:[%s754 + $0xf0] sm:$0xf]
        %v3267 = vld [vmem:[%s754 + $0xf4] sm:$0xf]
        %v3268 = vld [vmem:[%s754 + $0xf8] sm:$0xf]
        %v3269 = vld [vmem:[%s754 + $0xfc] sm:$0xf]
        %v3270 = vld [vmem:[%s754 + $0x100] sm:$0xf]
        %v3271 = vld [vmem:[%s754 + $0x104] sm:$0xf]
        %v3272 = vld [vmem:[%s754 + $0x108] sm:$0xf]
        %v3273 = vld [vmem:[%s754 + $0x10c] sm:$0xf]
        %v3274 = vld [vmem:[%s754 + $0x110] sm:$0xf]
        %v3275 = vld [vmem:[%s754 + $0x114] sm:$0xf]
        %v3276 = vld [vmem:[%s754 + $0x118] sm:$0xf]
        %v3277 = vld [vmem:[%s754 + $0x11c] sm:$0xf]
        %v3278 = vld [vmem:[%s754 + $0x120] sm:$0xf]
        %v3279 = vld [vmem:[%s754 + $0x124] sm:$0xf]
        %v3280 = vld [vmem:[%s754 + $0x128] sm:$0xf]
        %v3281 = vld [vmem:[%s754 + $0x12c] sm:$0xf]
        %v3282 = vld [vmem:[%s754 + $0x130] sm:$0xf]
        %v3283 = vld [vmem:[%s754 + $0x134] sm:$0xf]
        %v3284 = vld [vmem:[%s754 + $0x138] sm:$0xf]
        %v3285 = vld [vmem:[%s754 + $0x13c] sm:$0xf]
        %v3286 = vld [vmem:[%s754 + $0x140] sm:$0xf]
        %v3287 = vld [vmem:[%s754 + $0x144] sm:$0xf]
        %v3288 = vld [vmem:[%s754 + $0x148] sm:$0xf]
        %v3289 = vld [vmem:[%s754 + $0x14c] sm:$0xf]
        %v3290 = vld [vmem:[%s754 + $0x150] sm:$0xf]
        %v3291 = vld [vmem:[%s754 + $0x154] sm:$0xf]
        %v3292 = vld [vmem:[%s754 + $0x158] sm:$0xf]
        %v3293 = vld [vmem:[%s754 + $0x15c] sm:$0xf]
        %v3294 = vld [vmem:[%s754 + $0x160] sm:$0xf]
        %v3295 = vld [vmem:[%s754 + $0x164] sm:$0xf]
        %v3296 = vld [vmem:[%s754 + $0x168] sm:$0xf]
        %v3297 = vld [vmem:[%s754 + $0x16c] sm:$0xf]
        %v3298 = vld [vmem:[%s754 + $0x170] sm:$0xf]
        %v3299 = vld [vmem:[%s754 + $0x174] sm:$0xf]
        %v3300 = vld [vmem:[%s754 + $0x178] sm:$0xf]
        %v3301 = vld [vmem:[%s754 + $0x17c] sm:$0xf]
        %v3398 = vunpack.c.l.b16 %v3206
        %v3399 = vunpack.c.l.b16 %v3207
        %v3400 = vunpack.c.l.b16 %v3208
        %v3401 = vunpack.c.l.b16 %v3209
        %v3402 = vunpack.c.l.b16 %v3210
        %v3403 = vunpack.c.l.b16 %v3211
        %v3404 = vunpack.c.l.b16 %v3212
        %v3405 = vunpack.c.l.b16 %v3213
        %v3406 = vunpack.c.l.b16 %v3214
        %v3407 = vunpack.c.l.b16 %v3215
        %v3408 = vunpack.c.l.b16 %v3216
        %v3409 = vunpack.c.l.b16 %v3217
        %v3410 = vunpack.c.l.b16 %v3218
        %v3411 = vunpack.c.l.b16 %v3219
        %v3412 = vunpack.c.l.b16 %v3220
        %v3413 = vunpack.c.l.b16 %v3221
        %v3414 = vunpack.c.l.b16 %v3222
        %v3415 = vunpack.c.l.b16 %v3223
        %v3416 = vunpack.c.l.b16 %v3224
        %v3417 = vunpack.c.l.b16 %v3225
        %v3418 = vunpack.c.l.b16 %v3226
        %v3419 = vunpack.c.l.b16 %v3227
        %v3420 = vunpack.c.l.b16 %v3228
        %v3421 = vunpack.c.l.b16 %v3229
        %v3422 = vunpack.c.l.b16 %v3230
        %v3423 = vunpack.c.l.b16 %v3231
        %v3424 = vunpack.c.l.b16 %v3232
        %v3425 = vunpack.c.l.b16 %v3233
        %v3426 = vunpack.c.l.b16 %v3234
        %v3427 = vunpack.c.l.b16 %v3235
        %v3428 = vunpack.c.l.b16 %v3236
        %v3429 = vunpack.c.l.b16 %v3237
        %v3430 = vunpack.c.l.b16 %v3238
        %v3431 = vunpack.c.l.b16 %v3239
        %v3432 = vunpack.c.l.b16 %v3240
        %v3433 = vunpack.c.l.b16 %v3241
        %v3434 = vunpack.c.l.b16 %v3242
        %v3435 = vunpack.c.l.b16 %v3243
        %v3436 = vunpack.c.l.b16 %v3244
        %v3437 = vunpack.c.l.b16 %v3245
        %v3438 = vunpack.c.l.b16 %v3246
        %v3439 = vunpack.c.l.b16 %v3247
        %v3440 = vunpack.c.l.b16 %v3248
        %v3441 = vunpack.c.l.b16 %v3249
        %v3442 = vunpack.c.l.b16 %v3250
        %v3443 = vunpack.c.l.b16 %v3251
        %v3444 = vunpack.c.l.b16 %v3252
        %v3445 = vunpack.c.l.b16 %v3253
        %v3446 = vunpack.c.l.b16 %v3254
        %v3447 = vunpack.c.l.b16 %v3255
        %v3448 = vunpack.c.l.b16 %v3256
        %v3449 = vunpack.c.l.b16 %v3257
        %v3450 = vunpack.c.l.b16 %v3258
        %v3451 = vunpack.c.l.b16 %v3259
        %v3452 = vunpack.c.l.b16 %v3260
        %v3453 = vunpack.c.l.b16 %v3261
        %v3454 = vunpack.c.l.b16 %v3262
        %v3455 = vunpack.c.l.b16 %v3263
        %v3456 = vunpack.c.l.b16 %v3264
        %v3457 = vunpack.c.l.b16 %v3265
        %v3458 = vunpack.c.l.b16 %v3266
        %v3459 = vunpack.c.l.b16 %v3267
        %v3460 = vunpack.c.l.b16 %v3268
        %v3461 = vunpack.c.l.b16 %v3269
        %v3462 = vunpack.c.l.b16 %v3270
        %v3463 = vunpack.c.l.b16 %v3271
        %v3464 = vunpack.c.l.b16 %v3272
        %v3465 = vunpack.c.l.b16 %v3273
        %v3466 = vunpack.c.l.b16 %v3274
        %v3467 = vunpack.c.l.b16 %v3275
        %v3468 = vunpack.c.l.b16 %v3276
        %v3469 = vunpack.c.l.b16 %v3277
        %v3470 = vunpack.c.l.b16 %v3278
        %v3471 = vunpack.c.l.b16 %v3279
        %v3472 = vunpack.c.l.b16 %v3280
        %v3473 = vunpack.c.l.b16 %v3281
        %v3474 = vunpack.c.l.b16 %v3282
        %v3475 = vunpack.c.l.b16 %v3283
        %v3476 = vunpack.c.l.b16 %v3284
        %v3477 = vunpack.c.l.b16 %v3285
        %v3478 = vunpack.c.l.b16 %v3286
        %v3479 = vunpack.c.l.b16 %v3287
        %v3480 = vunpack.c.l.b16 %v3288
        %v3481 = vunpack.c.l.b16 %v3289
        %v3482 = vunpack.c.l.b16 %v3290
        %v3483 = vunpack.c.l.b16 %v3291
        %v3484 = vunpack.c.l.b16 %v3292
        %v3485 = vunpack.c.l.b16 %v3293
        %v3486 = vunpack.c.l.b16 %v3294
        %v3487 = vunpack.c.l.b16 %v3295
        %v3488 = vunpack.c.l.b16 %v3296
        %v3489 = vunpack.c.l.b16 %v3297
        %v3490 = vunpack.c.l.b16 %v3298
        %v3491 = vunpack.c.l.b16 %v3299
        %v3492 = vunpack.c.l.b16 %v3300
        %v3493 = vunpack.c.l.b16 %v3301
        %v3494 = vpack.c.b16 %v3399, %v3398
        %v3495 = vpack.c.b16 %v3401, %v3400
        %v3496 = vpack.c.b16 %v3403, %v3402
        %v3497 = vpack.c.b16 %v3405, %v3404
        %v3498 = vpack.c.b16 %v3407, %v3406
        %v3499 = vpack.c.b16 %v3409, %v3408
        %v3500 = vpack.c.b16 %v3411, %v3410
        %v3501 = vpack.c.b16 %v3413, %v3412
        %v3502 = vpack.c.b16 %v3415, %v3414
        %v3503 = vpack.c.b16 %v3417, %v3416
        %v3504 = vpack.c.b16 %v3419, %v3418
        %v3505 = vpack.c.b16 %v3421, %v3420
        %v3506 = vpack.c.b16 %v3423, %v3422
        %v3507 = vpack.c.b16 %v3425, %v3424
        %v3508 = vpack.c.b16 %v3427, %v3426
        %v3509 = vpack.c.b16 %v3429, %v3428
        %v3510 = vpack.c.b16 %v3431, %v3430
        %v3511 = vpack.c.b16 %v3433, %v3432
        %v3512 = vpack.c.b16 %v3435, %v3434
        %v3513 = vpack.c.b16 %v3437, %v3436
        %v3514 = vpack.c.b16 %v3439, %v3438
        %v3515 = vpack.c.b16 %v3441, %v3440
        %v3516 = vpack.c.b16 %v3443, %v3442
        %v3517 = vpack.c.b16 %v3445, %v3444
        %v3518 = vpack.c.b16 %v3447, %v3446
        %v3519 = vpack.c.b16 %v3449, %v3448
        %v3520 = vpack.c.b16 %v3451, %v3450
        %v3521 = vpack.c.b16 %v3453, %v3452
        %v3522 = vpack.c.b16 %v3455, %v3454
        %v3523 = vpack.c.b16 %v3457, %v3456
        %v3524 = vpack.c.b16 %v3459, %v3458
        %v3525 = vpack.c.b16 %v3461, %v3460
        %v3526 = vpack.c.b16 %v3463, %v3462
        %v3527 = vpack.c.b16 %v3465, %v3464
        %v3528 = vpack.c.b16 %v3467, %v3466
        %v3529 = vpack.c.b16 %v3469, %v3468
        %v3530 = vpack.c.b16 %v3471, %v3470
        %v3531 = vpack.c.b16 %v3473, %v3472
        %v3532 = vpack.c.b16 %v3475, %v3474
        %v3533 = vpack.c.b16 %v3477, %v3476
        %v3534 = vpack.c.b16 %v3479, %v3478
        %v3535 = vpack.c.b16 %v3481, %v3480
        %v3536 = vpack.c.b16 %v3483, %v3482
        %v3537 = vpack.c.b16 %v3485, %v3484
        %v3538 = vpack.c.b16 %v3487, %v3486
        %v3539 = vpack.c.b16 %v3489, %v3488
        %v3540 = vpack.c.b16 %v3491, %v3490
        %v3541 = vpack.c.b16 %v3493, %v3492
        %3590 = vmatprep.subr.bf16.mxu0 0
        %3591 = vmatpush1.bf16.msra.mxu0 %v3494
        %3592 = vmatprep.subr.bf16.mxu0 0
        %3593 = vmatpush1.bf16.msra.mxu0 %v3495
        %3594 = vmatprep.subr.bf16.mxu0 0
        %3595 = vmatpush1.bf16.msra.mxu0 %v3496
        %3596 = vmatprep.subr.bf16.mxu0 0
        %3597 = vmatpush1.bf16.msra.mxu0 %v3497
        %3598 = vmatprep.subr.bf16.mxu0 0
        %3599 = vmatpush1.bf16.msra.mxu0 %v3498
        %3600 = vmatprep.subr.bf16.mxu0 0
        %3601 = vmatpush1.bf16.msra.mxu0 %v3499
        %3602 = vmatprep.subr.bf16.mxu0 0
        %3603 = vmatpush1.bf16.msra.mxu0 %v3500
        %3604 = vmatprep.subr.bf16.mxu0 0
        %3605 = vmatpush1.bf16.msra.mxu0 %v3501
        %3606 = vmatprep.subr.bf16.mxu0 0
        %3607 = vmatpush1.bf16.msra.mxu0 %v3502
        %3608 = vmatprep.subr.bf16.mxu0 0
        %3609 = vmatpush1.bf16.msra.mxu0 %v3503
        %3610 = vmatprep.subr.bf16.mxu0 0
        %3611 = vmatpush1.bf16.msra.mxu0 %v3504
        %3612 = vmatprep.subr.bf16.mxu0 0
        %3613 = vmatpush1.bf16.msra.mxu0 %v3505
        %3614 = vmatprep.subr.bf16.mxu0 0
        %3615 = vmatpush1.bf16.msra.mxu0 %v3506
        %3616 = vmatprep.subr.bf16.mxu0 0
        %3617 = vmatpush1.bf16.msra.mxu0 %v3507
        %3618 = vmatprep.subr.bf16.mxu0 0
        %3619 = vmatpush1.bf16.msra.mxu0 %v3508
        %3620 = vmatprep.subr.bf16.mxu0 0
        %3621 = vmatpush1.bf16.msra.mxu0 %v3509
        %3622 = vmatprep.mubr.bf16.mxu0 %v3183
        %3623 = vmatmul.mubr.bf16.gmra.mrb[0].mxu0 %v3182
        %v3624 = vpop.f32.mrb[0].mxu0
        %v3625 = vadd.f32 0.0, %v3624
        %v3626 = vpop.f32.mrb[0].mxu0
        %v3627 = vpop.f32.mrb[0].mxu0
        %v3628 = vadd.f32 0.0, %v3627
        %v3629 = vpop.f32.mrb[0].mxu0
        %3630 = vmatprep.mubr.bf16.mxu0 %v3189
        %3631 = vmatmul.mubr.bf16.gmra.mrb[0].mxu0 %v3188
        %v3632 = vpop.f32.mrb[0].mxu0
        %v3633 = vadd.f32 0.0, %v3632
        %v3634 = vpop.f32.mrb[0].mxu0
        %v3635 = vpop.f32.mrb[0].mxu0
        %v3636 = vadd.f32 0.0, %v3635
        %v3637 = vpop.f32.mrb[0].mxu0
        %3638 = vmatprep.mubr.bf16.mxu0 %v3195
        %3639 = vmatmul.mubr.bf16.gmra.mrb[0].mxu0 %v3194
        %v3640 = vpop.f32.mrb[0].mxu0
        %v3641 = vadd.f32 0.0, %v3640
        %v3642 = vpop.f32.mrb[0].mxu0
        %v3643 = vpop.f32.mrb[0].mxu0
        %v3644 = vadd.f32 0.0, %v3643
        %v3645 = vpop.f32.mrb[0].mxu0
        %3646 = vmatprep.mubr.bf16.mxu0 %v3201
        %3647 = vmatmul.mubr.bf16.gmra.mrb[0].mxu0 %v3200
        %v3648 = vpop.f32.mrb[0].mxu0
        %v3649 = vadd.f32 0.0, %v3648
        %v3650 = vpop.f32.mrb[0].mxu0
        %v3651 = vpop.f32.mrb[0].mxu0
        %v3652 = vpop.f32.mrb[0].mxu0
        %3653 = vdwg.mxu0
        %3654 = vmatprep.subr.bf16.mxu0 0
        %3655 = vmatpush1.bf16.msra.mxu0 %v3510
        %3656 = vmatprep.subr.bf16.mxu0 0
        %3657 = vmatpush1.bf16.msra.mxu0 %v3511
        %3658 = vmatprep.subr.bf16.mxu0 0
        %3659 = vmatpush1.bf16.msra.mxu0 %v3512
        %3660 = vmatprep.subr.bf16.mxu0 0
        %3661 = vmatpush1.bf16.msra.mxu0 %v3513
        %3662 = vmatprep.subr.bf16.mxu0 0
        %3663 = vmatpush1.bf16.msra.mxu0 %v3514
        %3664 = vmatprep.subr.bf16.mxu0 0
        %3665 = vmatpush1.bf16.msra.mxu0 %v3515
        %3666 = vmatprep.subr.bf16.mxu0 0
        %3667 = vmatpush1.bf16.msra.mxu0 %v3516
        %3668 = vmatprep.subr.bf16.mxu0 0
        %3669 = vmatpush1.bf16.msra.mxu0 %v3517
        %3670 = vmatprep.subr.bf16.mxu0 0
        %3671 = vmatpush1.bf16.msra.mxu0 %v3518
        %3672 = vmatprep.subr.bf16.mxu0 0
        %3673 = vmatpush1.bf16.msra.mxu0 %v3519
        %3674 = vmatprep.subr.bf16.mxu0 0
        %3675 = vmatpush1.bf16.msra.mxu0 %v3520
        %3676 = vmatprep.subr.bf16.mxu0 0
        %3677 = vmatpush1.bf16.msra.mxu0 %v3521
        %3678 = vmatprep.subr.bf16.mxu0 0
        %3679 = vmatpush1.bf16.msra.mxu0 %v3522
        %3680 = vmatprep.subr.bf16.mxu0 0
        %3681 = vmatpush1.bf16.msra.mxu0 %v3523
        %3682 = vmatprep.subr.bf16.mxu0 0
        %3683 = vmatpush1.bf16.msra.mxu0 %v3524
        %3684 = vmatprep.subr.bf16.mxu0 0
        %3685 = vmatpush1.bf16.msra.mxu0 %v3525
        %3686 = vmatprep.mubr.bf16.mxu0 %v3185
        %3687 = vmatmul.mubr.bf16.gmra.mrb[0].mxu0 %v3184
        %v3688 = vpop.f32.mrb[0].mxu0
        %v3689 = vadd.f32 %v3625, %v3688
        %v3690 = vpop.f32.mrb[0].mxu0
        %v3691 = vpop.f32.mrb[0].mxu0
        %v3692 = vadd.f32 %v3628, %v3691
        %v3693 = vpop.f32.mrb[0].mxu0
        %3694 = vmatprep.mubr.bf16.mxu0 %v3191
        %3695 = vmatmul.mubr.bf16.gmra.mrb[0].mxu0 %v3190
        %v3696 = vpop.f32.mrb[0].mxu0
        %v3697 = vadd.f32 %v3633, %v3696
        %v3698 = vpop.f32.mrb[0].mxu0
        %v3699 = vpop.f32.mrb[0].mxu0
        %v3700 = vadd.f32 %v3636, %v3699
        %v3701 = vpop.f32.mrb[0].mxu0
        %3702 = vmatprep.mubr.bf16.mxu0 %v3197
        %3703 = vmatmul.mubr.bf16.gmra.mrb[0].mxu0 %v3196
        %v3704 = vpop.f32.mrb[0].mxu0
        %v3705 = vadd.f32 %v3641, %v3704
        %v3706 = vpop.f32.mrb[0].mxu0
        %v3707 = vpop.f32.mrb[0].mxu0
        %v3708 = vadd.f32 %v3644, %v3707
        %v3709 = vpop.f32.mrb[0].mxu0
        %3710 = vmatprep.mubr.bf16.mxu0 %v3203
        %3711 = vmatmul.mubr.bf16.gmra.mrb[0].mxu0 %v3202
        %v3712 = vpop.f32.mrb[0].mxu0
        %v3713 = vadd.f32 %v3649, %v3712
        %v3714 = vpop.f32.mrb[0].mxu0
        %v3715 = vpop.f32.mrb[0].mxu0
        %v3716 = vpop.f32.mrb[0].mxu0
        %3717 = vdwg.mxu0
        %3718 = vmatprep.subr.bf16.mxu0 0
        %3719 = vmatpush1.bf16.msra.mxu0 %v3526
        %3720 = vmatprep.subr.bf16.mxu0 0
        %3721 = vmatpush1.bf16.msra.mxu0 %v3527
        %3722 = vmatprep.subr.bf16.mxu0 0
        %3723 = vmatpush1.bf16.msra.mxu0 %v3528
        %3724 = vmatprep.subr.bf16.mxu0 0
        %3725 = vmatpush1.bf16.msra.mxu0 %v3529
        %3726 = vmatprep.subr.bf16.mxu0 0
        %3727 = vmatpush1.bf16.msra.mxu0 %v3530
        %3728 = vmatprep.subr.bf16.mxu0 0
        %3729 = vmatpush1.bf16.msra.mxu0 %v3531
        %3730 = vmatprep.subr.bf16.mxu0 0
        %3731 = vmatpush1.bf16.msra.mxu0 %v3532
        %3732 = vmatprep.subr.bf16.mxu0 0
        %3733 = vmatpush1.bf16.msra.mxu0 %v3533
        %3734 = vmatprep.subr.bf16.mxu0 0
        %3735 = vmatpush1.bf16.msra.mxu0 %v3534
        %3736 = vmatprep.subr.bf16.mxu0 0
        %3737 = vmatpush1.bf16.msra.mxu0 %v3535
        %3738 = vmatprep.subr.bf16.mxu0 0
        %3739 = vmatpush1.bf16.msra.mxu0 %v3536
        %3740 = vmatprep.subr.bf16.mxu0 0
        %3741 = vmatpush1.bf16.msra.mxu0 %v3537
        %3742 = vmatprep.subr.bf16.mxu0 0
        %3743 = vmatpush1.bf16.msra.mxu0 %v3538
        %3744 = vmatprep.subr.bf16.mxu0 0
        %3745 = vmatpush1.bf16.msra.mxu0 %v3539
        %3746 = vmatprep.subr.bf16.mxu0 0
        %3747 = vmatpush1.bf16.msra.mxu0 %v3540
        %3748 = vmatprep.subr.bf16.mxu0 0
        %3749 = vmatpush1.bf16.msra.mxu0 %v3541
        %3750 = vmatprep.mubr.bf16.mxu0 %v3187
        %3751 = vmatmul.mubr.bf16.gmra.mrb[0].mxu0 %v3186
        %v3752 = vpop.f32.mrb[0].mxu0
        %v3753 = vadd.f32 %v3689, %v3752
        %v3754 = vpop.f32.mrb[0].mxu0
        %v3755 = vpop.f32.mrb[0].mxu0
        %v3756 = vadd.f32 %v3692, %v3755
        %v3757 = vpop.f32.mrb[0].mxu0
        %3758 = vmatprep.mubr.bf16.mxu0 %v3193
        %3759 = vmatmul.mubr.bf16.gmra.mrb[0].mxu0 %v3192
        %v3760 = vpop.f32.mrb[0].mxu0
        %v3761 = vadd.f32 %v3697, %v3760
        %v3762 = vpop.f32.mrb[0].mxu0
        %v3763 = vpop.f32.mrb[0].mxu0
        %v3764 = vadd.f32 %v3700, %v3763
        %v3765 = vpop.f32.mrb[0].mxu0
        %3766 = vmatprep.mubr.bf16.mxu0 %v3199
        %3767 = vmatmul.mubr.bf16.gmra.mrb[0].mxu0 %v3198
        %v3768 = vpop.f32.mrb[0].mxu0
        %v3769 = vadd.f32 %v3705, %v3768
        %v3770 = vpop.f32.mrb[0].mxu0
        %v3771 = vpop.f32.mrb[0].mxu0
        %v3772 = vadd.f32 %v3708, %v3771
        %v3773 = vpop.f32.mrb[0].mxu0
        %3774 = vmatprep.mubr.bf16.mxu0 %v3205
        %3775 = vmatmul.mubr.bf16.gmra.mrb[0].mxu0 %v3204
        %v3776 = vpop.f32.mrb[0].mxu0
        %v3777 = vadd.f32 %v3713, %v3776
        %v3778 = vpop.f32.mrb[0].mxu0
        %v3779 = vpop.f32.mrb[0].mxu0
        %v3780 = vpop.f32.mrb[0].mxu0
        %3781 = vdwg.mxu0
        %v3782 = vld [vmem:[%s761] sm:$0xf]
        %v3783 = vld [vmem:[%s761 + $0x4] sm:$0xf]
        %v3784 = vld [vmem:[%s761 + $0x8] sm:$0xf]
        %v3785 = vld [vmem:[%s761 + $0xc] sm:$0xf]
        %v3786 = vld [vmem:[%s761 + $0x10] sm:$0xf]
        %v3787 = vld [vmem:[%s761 + $0x14] sm:$0xf]
        %v3788 = vld [vmem:[%s761 + $0x18] sm:$0xf]
        %v3789 = vld [vmem:[%s761 + $0x1c] sm:$0xf]
        %v3790 = vld [vmem:[%s761 + $0x20] sm:$0xf]
        %v3791 = vld [vmem:[%s761 + $0x24] sm:$0xf]
        %v3792 = vld [vmem:[%s761 + $0x28] sm:$0xf]
        %v3793 = vld [vmem:[%s761 + $0x2c] sm:$0xf]
        %v3794 = vld [vmem:[%s761 + $0x30] sm:$0xf]
        %v3795 = vld [vmem:[%s761 + $0x34] sm:$0xf]
        %v3796 = vld [vmem:[%s761 + $0x38] sm:$0xf]
        %v3797 = vld [vmem:[%s761 + $0x3c] sm:$0xf]
        %v3798 = vld [vmem:[%s761 + $0x40] sm:$0xf]
        %v3799 = vld [vmem:[%s761 + $0x44] sm:$0xf]
        %v3800 = vld [vmem:[%s761 + $0x48] sm:$0xf]
        %v3801 = vld [vmem:[%s761 + $0x4c] sm:$0xf]
        %v3802 = vld [vmem:[%s761 + $0x50] sm:$0xf]
        %v3803 = vld [vmem:[%s761 + $0x54] sm:$0xf]
        %v3804 = vld [vmem:[%s761 + $0x58] sm:$0xf]
        %v3805 = vld [vmem:[%s761 + $0x5c] sm:$0xf]
        %v3806 = vld [vmem:[%s761 + $0x60] sm:$0xf]
        %v3807 = vld [vmem:[%s761 + $0x64] sm:$0xf]
        %v3808 = vld [vmem:[%s761 + $0x68] sm:$0xf]
        %v3809 = vld [vmem:[%s761 + $0x6c] sm:$0xf]
        %v3810 = vld [vmem:[%s761 + $0x70] sm:$0xf]
        %v3811 = vld [vmem:[%s761 + $0x74] sm:$0xf]
        %v3812 = vld [vmem:[%s761 + $0x78] sm:$0xf]
        %v3813 = vld [vmem:[%s761 + $0x7c] sm:$0xf]
        %v3814 = vld [vmem:[%s761 + $0x80] sm:$0xf]
        %v3815 = vld [vmem:[%s761 + $0x84] sm:$0xf]
        %v3816 = vld [vmem:[%s761 + $0x88] sm:$0xf]
        %v3817 = vld [vmem:[%s761 + $0x8c] sm:$0xf]
        %v3818 = vld [vmem:[%s761 + $0x90] sm:$0xf]
        %v3819 = vld [vmem:[%s761 + $0x94] sm:$0xf]
        %v3820 = vld [vmem:[%s761 + $0x98] sm:$0xf]
        %v3821 = vld [vmem:[%s761 + $0x9c] sm:$0xf]
        %v3822 = vld [vmem:[%s761 + $0xa0] sm:$0xf]
        %v3823 = vld [vmem:[%s761 + $0xa4] sm:$0xf]
        %v3824 = vld [vmem:[%s761 + $0xa8] sm:$0xf]
        %v3825 = vld [vmem:[%s761 + $0xac] sm:$0xf]
        %v3826 = vld [vmem:[%s761 + $0xb0] sm:$0xf]
        %v3827 = vld [vmem:[%s761 + $0xb4] sm:$0xf]
        %v3828 = vld [vmem:[%s761 + $0xb8] sm:$0xf]
        %v3829 = vld [vmem:[%s761 + $0xbc] sm:$0xf]
        %v3878 = vunpack.c.l.b16 %v3782
        %v3879 = vunpack.c.l.b16 %v3783
        %v3880 = vunpack.c.l.b16 %v3784
        %v3881 = vunpack.c.l.b16 %v3785
        %v3882 = vunpack.c.l.b16 %v3786
        %v3883 = vunpack.c.l.b16 %v3787
        %v3884 = vunpack.c.l.b16 %v3788
        %v3885 = vunpack.c.l.b16 %v3789
        %v3886 = vunpack.c.l.b16 %v3790
        %v3887 = vunpack.c.l.b16 %v3791
        %v3888 = vunpack.c.l.b16 %v3792
        %v3889 = vunpack.c.l.b16 %v3793
        %v3890 = vunpack.c.l.b16 %v3794
        %v3891 = vunpack.c.l.b16 %v3795
        %v3892 = vunpack.c.l.b16 %v3796
        %v3893 = vunpack.c.l.b16 %v3797
        %v3894 = vunpack.c.l.b16 %v3798
        %v3895 = vunpack.c.l.b16 %v3799
        %v3896 = vunpack.c.l.b16 %v3800
        %v3897 = vunpack.c.l.b16 %v3801
        %v3898 = vunpack.c.l.b16 %v3802
        %v3899 = vunpack.c.l.b16 %v3803
        %v3900 = vunpack.c.l.b16 %v3804
        %v3901 = vunpack.c.l.b16 %v3805
        %v3902 = vunpack.c.l.b16 %v3806
        %v3903 = vunpack.c.l.b16 %v3807
        %v3904 = vunpack.c.l.b16 %v3808
        %v3905 = vunpack.c.l.b16 %v3809
        %v3906 = vunpack.c.l.b16 %v3810
        %v3907 = vunpack.c.l.b16 %v3811
        %v3908 = vunpack.c.l.b16 %v3812
        %v3909 = vunpack.c.l.b16 %v3813
        %v3910 = vunpack.c.l.b16 %v3814
        %v3911 = vunpack.c.l.b16 %v3815
        %v3912 = vunpack.c.l.b16 %v3816
        %v3913 = vunpack.c.l.b16 %v3817
        %v3914 = vunpack.c.l.b16 %v3818
        %v3915 = vunpack.c.l.b16 %v3819
        %v3916 = vunpack.c.l.b16 %v3820
        %v3917 = vunpack.c.l.b16 %v3821
        %v3918 = vunpack.c.l.b16 %v3822
        %v3919 = vunpack.c.l.b16 %v3823
        %v3920 = vunpack.c.l.b16 %v3824
        %v3921 = vunpack.c.l.b16 %v3825
        %v3922 = vunpack.c.l.b16 %v3826
        %v3923 = vunpack.c.l.b16 %v3827
        %v3924 = vunpack.c.l.b16 %v3828
        %v3925 = vunpack.c.l.b16 %v3829
        %v3926 = vpack.c.b16 %v3879, %v3878
        %v3927 = vpack.c.b16 %v3881, %v3880
        %v3928 = vpack.c.b16 %v3883, %v3882
        %v3929 = vpack.c.b16 %v3885, %v3884
        %v3930 = vpack.c.b16 %v3887, %v3886
        %v3931 = vpack.c.b16 %v3889, %v3888
        %v3932 = vpack.c.b16 %v3891, %v3890
        %v3933 = vpack.c.b16 %v3893, %v3892
        %v3934 = vpack.c.b16 %v3895, %v3894
        %v3935 = vpack.c.b16 %v3897, %v3896
        %v3936 = vpack.c.b16 %v3899, %v3898
        %v3937 = vpack.c.b16 %v3901, %v3900
        %v3938 = vpack.c.b16 %v3903, %v3902
        %v3939 = vpack.c.b16 %v3905, %v3904
        %v3940 = vpack.c.b16 %v3907, %v3906
        %v3941 = vpack.c.b16 %v3909, %v3908
        %v3942 = vpack.c.b16 %v3911, %v3910
        %v3943 = vpack.c.b16 %v3913, %v3912
        %v3944 = vpack.c.b16 %v3915, %v3914
        %v3945 = vpack.c.b16 %v3917, %v3916
        %v3946 = vpack.c.b16 %v3919, %v3918
        %v3947 = vpack.c.b16 %v3921, %v3920
        %v3948 = vpack.c.b16 %v3923, %v3922
        %v3949 = vpack.c.b16 %v3925, %v3924
        %3974 = vmatprep.subr.bf16.mxu0 0
        %3975 = vmatpush1.bf16.msra.mxu0 %v3926
        %3976 = vmatprep.subr.bf16.mxu0 0
        %3977 = vmatpush1.bf16.msra.mxu0 %v3927
        %3978 = vmatprep.subr.bf16.mxu0 0
        %3979 = vmatpush1.bf16.msra.mxu0 %v3928
        %3980 = vmatprep.subr.bf16.mxu0 0
        %3981 = vmatpush1.bf16.msra.mxu0 %v3929
        %3982 = vmatprep.subr.bf16.mxu0 0
        %3983 = vmatpush1.bf16.msra.mxu0 %v3930
        %3984 = vmatprep.subr.bf16.mxu0 0
        %3985 = vmatpush1.bf16.msra.mxu0 %v3931
        %3986 = vmatprep.subr.bf16.mxu0 0
        %3987 = vmatpush1.bf16.msra.mxu0 %v3932
        %3988 = vmatprep.subr.bf16.mxu0 0
        %3989 = vmatpush1.bf16.msra.mxu0 %v3933
        %3990 = vmatprep.subr.bf16.mxu0 0
        %3991 = vmatpush1.bf16.msra.mxu0 %v3934
        %3992 = vmatprep.subr.bf16.mxu0 0
        %3993 = vmatpush1.bf16.msra.mxu0 %v3935
        %3994 = vmatprep.subr.bf16.mxu0 0
        %3995 = vmatpush1.bf16.msra.mxu0 %v3936
        %3996 = vmatprep.subr.bf16.mxu0 0
        %3997 = vmatpush1.bf16.msra.mxu0 %v3937
        %3998 = vmatprep.subr.bf16.mxu0 0
        %3999 = vmatpush1.bf16.msra.mxu0 %v3938
        %4000 = vmatprep.subr.bf16.mxu0 0
        %4001 = vmatpush1.bf16.msra.mxu0 %v3939
        %4002 = vmatprep.subr.bf16.mxu0 0
        %4003 = vmatpush1.bf16.msra.mxu0 %v3940
        %4004 = vmatprep.subr.bf16.mxu0 0
        %4005 = vmatpush1.bf16.msra.mxu0 %v3941
        %4006 = vmatprep.mubr.bf16.mxu0 %v3184
        %4007 = vmatmul.mubr.bf16.gmra.mrb[0].mxu0 %v3182
        %v4008 = vpop.f32.mrb[0].mxu0
        %v4009 = vadd.f32 0.0, %v4008
        %v4010 = vpop.f32.mrb[0].mxu0
        %v4011 = vpop.f32.mrb[0].mxu0
        %v4012 = vadd.f32 0.0, %v4011
        %v4013 = vpop.f32.mrb[0].mxu0
        %4014 = vmatprep.mubr.bf16.mxu0 %v3190
        %4015 = vmatmul.mubr.bf16.gmra.mrb[0].mxu0 %v3188
        %v4016 = vpop.f32.mrb[0].mxu0
        %v4017 = vadd.f32 0.0, %v4016
        %v4018 = vpop.f32.mrb[0].mxu0
        %v4019 = vpop.f32.mrb[0].mxu0
        %v4020 = vadd.f32 0.0, %v4019
        %v4021 = vpop.f32.mrb[0].mxu0
        %4022 = vmatprep.mubr.bf16.mxu0 %v3196
        %4023 = vmatmul.mubr.bf16.gmra.mrb[0].mxu0 %v3194
        %v4024 = vpop.f32.mrb[0].mxu0
        %v4025 = vadd.f32 0.0, %v4024
        %v4026 = vpop.f32.mrb[0].mxu0
        %v4027 = vpop.f32.mrb[0].mxu0
        %v4028 = vadd.f32 0.0, %v4027
        %v4029 = vpop.f32.mrb[0].mxu0
        %4030 = vmatprep.mubr.bf16.mxu0 %v3202
        %4031 = vmatmul.mubr.bf16.gmra.mrb[0].mxu0 %v3200
        %v4032 = vpop.f32.mrb[0].mxu0
        %v4033 = vadd.f32 0.0, %v4032
        %v4034 = vpop.f32.mrb[0].mxu0
        %v4035 = vpop.f32.mrb[0].mxu0
        %v4036 = vpop.f32.mrb[0].mxu0
        %4037 = vdwg.mxu0
        %4038 = vmatprep.subr.bf16.mxu0 0
        %4039 = vmatpush1.bf16.msra.mxu0 %v3942
        %4040 = vmatprep.subr.bf16.mxu0 0
        %4041 = vmatpush1.bf16.msra.mxu0 %v3943
        %4042 = vmatprep.subr.bf16.mxu0 0
        %4043 = vmatpush1.bf16.msra.mxu0 %v3944
        %4044 = vmatprep.subr.bf16.mxu0 0
        %4045 = vmatpush1.bf16.msra.mxu0 %v3945
        %4046 = vmatprep.subr.bf16.mxu0 0
        %4047 = vmatpush1.bf16.msra.mxu0 %v3946
        %4048 = vmatprep.subr.bf16.mxu0 0
        %4049 = vmatpush1.bf16.msra.mxu0 %v3947
        %4050 = vmatprep.subr.bf16.mxu0 0
        %4051 = vmatpush1.bf16.msra.mxu0 %v3948
        %4052 = vmatprep.subr.bf16.mxu0 0
        %4053 = vmatpush1.bf16.msra.mxu0 %v3949
        %4054 = vmatprep.subr.bf16.mxu0 0
        %4055 = vmatpush1.bf16.msra.mxu0 0
        %4056 = vmatprep.subr.bf16.mxu0 0
        %4057 = vmatpush1.bf16.msra.mxu0 0
        %4058 = vmatprep.subr.bf16.mxu0 0
        %4059 = vmatpush1.bf16.msra.mxu0 0
        %4060 = vmatprep.subr.bf16.mxu0 0
        %4061 = vmatpush1.bf16.msra.mxu0 0
        %4062 = vmatprep.subr.bf16.mxu0 0
        %4063 = vmatpush1.bf16.msra.mxu0 0
        %4064 = vmatprep.subr.bf16.mxu0 0
        %4065 = vmatpush1.bf16.msra.mxu0 0
        %4066 = vmatprep.subr.bf16.mxu0 0
        %4067 = vmatpush1.bf16.msra.mxu0 0
        %4068 = vmatprep.subr.bf16.mxu0 0
        %4069 = vmatpush1.bf16.msra.mxu0 0
        %4070 = vmatprep.mubr.bf16.mxu0 0
        %4071 = vmatmul.mubr.bf16.gmra.mrb[0].mxu0 %v3186
        %v4072 = vpop.f32.mrb[0].mxu0
        %v4073 = vadd.f32 %v4009, %v4072
        %v4074 = vpop.f32.mrb[0].mxu0
        %v4075 = vpop.f32.mrb[0].mxu0
        %v4076 = vadd.f32 %v4012, %v4075
        %v4077 = vpop.f32.mrb[0].mxu0
        %4078 = vmatprep.mubr.bf16.mxu0 0
        %4079 = vmatmul.mubr.bf16.gmra.mrb[0].mxu0 %v3192
        %v4080 = vpop.f32.mrb[0].mxu0
        %v4081 = vadd.f32 %v4017, %v4080
        %v4082 = vpop.f32.mrb[0].mxu0
        %v4083 = vpop.f32.mrb[0].mxu0
        %v4084 = vadd.f32 %v4020, %v4083
        %v4085 = vpop.f32.mrb[0].mxu0
        %4086 = vmatprep.mubr.bf16.mxu0 0
        %4087 = vmatmul.mubr.bf16.gmra.mrb[0].mxu0 %v3198
        %v4088 = vpop.f32.mrb[0].mxu0
        %v4089 = vadd.f32 %v4025, %v4088
        %v4090 = vpop.f32.mrb[0].mxu0
        %v4091 = vpop.f32.mrb[0].mxu0
        %v4092 = vadd.f32 %v4028, %v4091
        %v4093 = vpop.f32.mrb[0].mxu0
        %4094 = vmatprep.mubr.bf16.mxu0 0
        %4095 = vmatmul.mubr.bf16.gmra.mrb[0].mxu0 %v3204
        %v4096 = vpop.f32.mrb[0].mxu0
        %v4097 = vadd.f32 %v4033, %v4096
        %v4098 = vpop.f32.mrb[0].mxu0
        %v4099 = vpop.f32.mrb[0].mxu0
        %v4100 = vpop.f32.mrb[0].mxu0
        %4101 = vdwg.mxu0
        %v4109 = vrot.slane %v4073, 1
        %v4110 = vrot.slane %v4076, 1
        %v4111 = vrot.slane %v4081, 1
        %v4112 = vrot.slane %v4084, 1
        %v4113 = vrot.slane %v4089, 1
        %v4114 = vrot.slane %v4092, 1
        %v4115 = vrot.slane %v4097, 1
        %v4123 = vadd.f32 %v3753, %v4109
        %v4124 = vadd.f32 %v3756, %v4110
        %v4125 = vadd.f32 %v3761, %v4111
        %v4126 = vadd.f32 %v3764, %v4112
        %v4127 = vadd.f32 %v3769, %v4113
        %v4128 = vadd.f32 %v3772, %v4114
        %v4129 = vadd.f32 %v3777, %v4115
        %vm4130 = vcmask 1046528
        %v4131 = vsel %vm4130, %v4123, 0.0
        %v4132 = vsel %vm4130, %v4124, 0.0
        %v4133 = vadd.f32 %v4131, %v4132
        %v4134 = vsel %vm4130, %v4125, 0.0
        %v4135 = vadd.f32 %v4133, %v4134
        %v4136 = vsel %vm4130, %v4126, 0.0
        %v4137 = vadd.f32 %v4135, %v4136
        %v4138 = vsel %vm4130, %v4127, 0.0
        %v4139 = vadd.f32 %v4137, %v4138
        %v4140 = vsel %vm4130, %v4128, 0.0
        %v4141 = vadd.f32 %v4139, %v4140
        %v4142 = vsel %vm4130, %v4129, 0.0
        %v4143 = vadd.f32 %v4141, %v4142
        %v4144 = vrot.slane %v4143, 4
        %v4145 = vadd.f32 %v4143, %v4144
        %v4146 = vrot.slane %v4145, 2
        %v4147 = vadd.f32 %v4145, %v4146
        %v4148 = vrot.slane %v4147, 1
        %v4149 = vadd.f32 %v4147, %v4148
        %v4150 = vmul.f32 %v4149, 0.020408163
        %v4151 = vmul.f32 %v4123, %v4123
        %v4152 = vmul.f32 %v4124, %v4124
        %v4153 = vmul.f32 %v4125, %v4125
        %v4154 = vmul.f32 %v4126, %v4126
        %v4155 = vmul.f32 %v4127, %v4127
        %v4156 = vmul.f32 %v4128, %v4128
        %v4157 = vmul.f32 %v4129, %v4129
        %v4158 = vsel %vm4130, %v4151, 0.0
        %v4159 = vsel %vm4130, %v4152, 0.0
        %v4160 = vadd.f32 %v4158, %v4159
        %v4161 = vsel %vm4130, %v4153, 0.0
        %v4162 = vadd.f32 %v4160, %v4161
        %v4163 = vsel %vm4130, %v4154, 0.0
        %v4164 = vadd.f32 %v4162, %v4163
        %v4165 = vsel %vm4130, %v4155, 0.0
        %v4166 = vadd.f32 %v4164, %v4165
        %v4167 = vsel %vm4130, %v4156, 0.0
        %v4168 = vadd.f32 %v4166, %v4167
        %v4169 = vsel %vm4130, %v4157, 0.0
        %v4170 = vadd.f32 %v4168, %v4169
        %v4171 = vrot.slane %v4170, 4
        %v4172 = vadd.f32 %v4170, %v4171
        %v4173 = vrot.slane %v4172, 2
        %v4174 = vadd.f32 %v4172, %v4173
        %v4175 = vrot.slane %v4174, 1
        %v4176 = vadd.f32 %v4174, %v4175
        %v4177 = vmul.f32 %v4176, 0.020408163
        %v4178 = vmul.f32 %v4150, %v4150
        %v4179 = vsub.f32 %v4177, %v4178
        %v4180 = vadd.f32 %v4179, 1e-05
        %v4181 = vrsqrt.pop %v4180
        %v4182 = vld [vmem:[%s766] sm:$0x1]
        %v4183 = vmul.f32 %v4181, %v4182
        %v4184 = vld [vmem:[%s771] sm:$0x1]
        %v4185 = vmul.f32 %v4150, %v4183
        %v4186 = vsub.f32 %v4184, %v4185
        %v4187 = vlaneseq
        %v4188 = vshrl.u32 %v4187, 7
        %v4189 = vsub.s32 0, %v4188
        %v4190 = vrot.slane %v4183, %v4189
        %v4191 = vmul.f32 %v4123, %v4190
        %v4192 = vmul.f32 %v4124, %v4190
        %v4193 = vmul.f32 %v4125, %v4190
        %v4194 = vmul.f32 %v4126, %v4190
        %v4195 = vmul.f32 %v4127, %v4190
        %v4196 = vmul.f32 %v4128, %v4190
        %v4197 = vmul.f32 %v4129, %v4190
        %v4199 = vlaneseq
        %v4200 = vshrl.u32 %v4199, 7
        %v4201 = vsub.s32 0, %v4200
        %v4202 = vrot.slane %v4186, %v4201
        %v4204 = vadd.f32 %v4191, %v4202
        %v4205 = vadd.f32 %v4192, %v4202
        %v4206 = vadd.f32 %v4193, %v4202
        %v4207 = vadd.f32 %v4194, %v4202
        %v4208 = vadd.f32 %v4195, %v4202
        %v4209 = vadd.f32 %v4196, %v4202
        %v4210 = vadd.f32 %v4197, %v4202
        %4211 = vst [vmem:[%s737] sm:$0x7f] %v4204
        %4212 = vst [vmem:[%s737 + $0x10] sm:$0x7f] %v4205
        %4213 = vst [vmem:[%s737 + $0x20] sm:$0x7f] %v4206
        %4214 = vst [vmem:[%s737 + $0x30] sm:$0x7f] %v4207
        %4215 = vst [vmem:[%s737 + $0x40] sm:$0x7f] %v4208
        %4216 = vst [vmem:[%s737 + $0x50] sm:$0x7f] %v4209
        %4217 = vst [vmem:[%s737 + $0x60] sm:$0x7f] %v4210
        %v4218 = vpack.c.bf16 %v3125, %v3123
        %v4219 = vpack.c.bf16 %v3139, %v3137
        %v4220 = vpack.c.bf16 %v3153, %v3151
        %v4221 = vpack.c.bf16 %v3167, %v3165
        %v4222 = vpack.c.bf16 %v3127, %v3125
        %v4223 = vpack.c.bf16 %v3141, %v3139
        %v4224 = vpack.c.bf16 %v3129, %v3127
        %v4225 = vpack.c.bf16 %v3143, %v3141
        %v4226 = vpack.c.bf16 %v3157, %v3155
        %v4227 = vpack.c.bf16 %v3171, %v3169
        %v4228 = vpack.c.bf16 %v3131, %v3129
        %v4229 = vpack.c.bf16 %v3145, %v3143
        %v4230 = vpack.c.bf16 %v3133, %v3131
        %v4231 = vpack.c.bf16 %v3147, %v3145
        %v4232 = vpack.c.bf16 %v3161, %v3159
        %v4233 = vpack.c.bf16 %v3175, %v3173
        %v4234 = vpack.c.bf16 %v3135, %v3133
        %v4235 = vpack.c.bf16 %v3149, %v3147
        %v4236 = vpack.c.bf16 %v3135, %v3135
        %v4237 = vpack.c.bf16 %v3149, %v3149
        %v4238 = vpack.c.bf16 %v3163, %v3163
        %v4239 = vpack.c.bf16 %v3177, %v3177
        %v4240 = vpack.c.bf16 %v3179, %v3179
        %v4241 = vpack.c.bf16 %v3181, %v3181
        %s4242 = scalar_lea.vmem %s754, 384
        %v4243 = vld [vmem:[%s4242] sm:$0xf]
        %v4244 = vld [vmem:[%s4242 + $0x4] sm:$0xf]
        %v4245 = vld [vmem:[%s4242 + $0x8] sm:$0xf]
        %v4246 = vld [vmem:[%s4242 + $0xc] sm:$0xf]
        %v4247 = vld [vmem:[%s4242 + $0x10] sm:$0xf]
        %v4248 = vld [vmem:[%s4242 + $0x14] sm:$0xf]
        %v4249 = vld [vmem:[%s4242 + $0x18] sm:$0xf]
        %v4250 = vld [vmem:[%s4242 + $0x1c] sm:$0xf]
        %v4251 = vld [vmem:[%s4242 + $0x20] sm:$0xf]
        %v4252 = vld [vmem:[%s4242 + $0x24] sm:$0xf]
        %v4253 = vld [vmem:[%s4242 + $0x28] sm:$0xf]
        %v4254 = vld [vmem:[%s4242 + $0x2c] sm:$0xf]
        %v4255 = vld [vmem:[%s4242 + $0x30] sm:$0xf]
        %v4256 = vld [vmem:[%s4242 + $0x34] sm:$0xf]
        %v4257 = vld [vmem:[%s4242 + $0x38] sm:$0xf]
        %v4258 = vld [vmem:[%s4242 + $0x3c] sm:$0xf]
        %v4259 = vld [vmem:[%s4242 + $0x40] sm:$0xf]
        %v4260 = vld [vmem:[%s4242 + $0x44] sm:$0xf]
        %v4261 = vld [vmem:[%s4242 + $0x48] sm:$0xf]
        %v4262 = vld [vmem:[%s4242 + $0x4c] sm:$0xf]
        %v4263 = vld [vmem:[%s4242 + $0x50] sm:$0xf]
        %v4264 = vld [vmem:[%s4242 + $0x54] sm:$0xf]
        %v4265 = vld [vmem:[%s4242 + $0x58] sm:$0xf]
        %v4266 = vld [vmem:[%s4242 + $0x5c] sm:$0xf]
        %v4267 = vld [vmem:[%s4242 + $0x60] sm:$0xf]
        %v4268 = vld [vmem:[%s4242 + $0x64] sm:$0xf]
        %v4269 = vld [vmem:[%s4242 + $0x68] sm:$0xf]
        %v4270 = vld [vmem:[%s4242 + $0x6c] sm:$0xf]
        %v4271 = vld [vmem:[%s4242 + $0x70] sm:$0xf]
        %v4272 = vld [vmem:[%s4242 + $0x74] sm:$0xf]
        %v4273 = vld [vmem:[%s4242 + $0x78] sm:$0xf]
        %v4274 = vld [vmem:[%s4242 + $0x7c] sm:$0xf]
        %v4275 = vld [vmem:[%s4242 + $0x80] sm:$0xf]
        %v4276 = vld [vmem:[%s4242 + $0x84] sm:$0xf]
        %v4277 = vld [vmem:[%s4242 + $0x88] sm:$0xf]
        %v4278 = vld [vmem:[%s4242 + $0x8c] sm:$0xf]
        %v4279 = vld [vmem:[%s4242 + $0x90] sm:$0xf]
        %v4280 = vld [vmem:[%s4242 + $0x94] sm:$0xf]
        %v4281 = vld [vmem:[%s4242 + $0x98] sm:$0xf]
        %v4282 = vld [vmem:[%s4242 + $0x9c] sm:$0xf]
        %v4283 = vld [vmem:[%s4242 + $0xa0] sm:$0xf]
        %v4284 = vld [vmem:[%s4242 + $0xa4] sm:$0xf]
        %v4285 = vld [vmem:[%s4242 + $0xa8] sm:$0xf]
        %v4286 = vld [vmem:[%s4242 + $0xac] sm:$0xf]
        %v4287 = vld [vmem:[%s4242 + $0xb0] sm:$0xf]
        %v4288 = vld [vmem:[%s4242 + $0xb4] sm:$0xf]
        %v4289 = vld [vmem:[%s4242 + $0xb8] sm:$0xf]
        %v4290 = vld [vmem:[%s4242 + $0xbc] sm:$0xf]
        %v4291 = vld [vmem:[%s4242 + $0xc0] sm:$0xf]
        %v4292 = vld [vmem:[%s4242 + $0xc4] sm:$0xf]
        %v4293 = vld [vmem:[%s4242 + $0xc8] sm:$0xf]
        %v4294 = vld [vmem:[%s4242 + $0xcc] sm:$0xf]
        %v4295 = vld [vmem:[%s4242 + $0xd0] sm:$0xf]
        %v4296 = vld [vmem:[%s4242 + $0xd4] sm:$0xf]
        %v4297 = vld [vmem:[%s4242 + $0xd8] sm:$0xf]
        %v4298 = vld [vmem:[%s4242 + $0xdc] sm:$0xf]
        %v4299 = vld [vmem:[%s4242 + $0xe0] sm:$0xf]
        %v4300 = vld [vmem:[%s4242 + $0xe4] sm:$0xf]
        %v4301 = vld [vmem:[%s4242 + $0xe8] sm:$0xf]
        %v4302 = vld [vmem:[%s4242 + $0xec] sm:$0xf]
        %v4303 = vld [vmem:[%s4242 + $0xf0] sm:$0xf]
        %v4304 = vld [vmem:[%s4242 + $0xf4] sm:$0xf]
        %v4305 = vld [vmem:[%s4242 + $0xf8] sm:$0xf]
        %v4306 = vld [vmem:[%s4242 + $0xfc] sm:$0xf]
        %v4307 = vld [vmem:[%s4242 + $0x100] sm:$0xf]
        %v4308 = vld [vmem:[%s4242 + $0x104] sm:$0xf]
        %v4309 = vld [vmem:[%s4242 + $0x108] sm:$0xf]
        %v4310 = vld [vmem:[%s4242 + $0x10c] sm:$0xf]
        %v4311 = vld [vmem:[%s4242 + $0x110] sm:$0xf]
        %v4312 = vld [vmem:[%s4242 + $0x114] sm:$0xf]
        %v4313 = vld [vmem:[%s4242 + $0x118] sm:$0xf]
        %v4314 = vld [vmem:[%s4242 + $0x11c] sm:$0xf]
        %v4315 = vld [vmem:[%s4242 + $0x120] sm:$0xf]
        %v4316 = vld [vmem:[%s4242 + $0x124] sm:$0xf]
        %v4317 = vld [vmem:[%s4242 + $0x128] sm:$0xf]
        %v4318 = vld [vmem:[%s4242 + $0x12c] sm:$0xf]
        %v4319 = vld [vmem:[%s4242 + $0x130] sm:$0xf]
        %v4320 = vld [vmem:[%s4242 + $0x134] sm:$0xf]
        %v4321 = vld [vmem:[%s4242 + $0x138] sm:$0xf]
        %v4322 = vld [vmem:[%s4242 + $0x13c] sm:$0xf]
        %v4323 = vld [vmem:[%s4242 + $0x140] sm:$0xf]
        %v4324 = vld [vmem:[%s4242 + $0x144] sm:$0xf]
        %v4325 = vld [vmem:[%s4242 + $0x148] sm:$0xf]
        %v4326 = vld [vmem:[%s4242 + $0x14c] sm:$0xf]
        %v4327 = vld [vmem:[%s4242 + $0x150] sm:$0xf]
        %v4328 = vld [vmem:[%s4242 + $0x154] sm:$0xf]
        %v4329 = vld [vmem:[%s4242 + $0x158] sm:$0xf]
        %v4330 = vld [vmem:[%s4242 + $0x15c] sm:$0xf]
        %v4331 = vld [vmem:[%s4242 + $0x160] sm:$0xf]
        %v4332 = vld [vmem:[%s4242 + $0x164] sm:$0xf]
        %v4333 = vld [vmem:[%s4242 + $0x168] sm:$0xf]
        %v4334 = vld [vmem:[%s4242 + $0x16c] sm:$0xf]
        %v4335 = vld [vmem:[%s4242 + $0x170] sm:$0xf]
        %v4336 = vld [vmem:[%s4242 + $0x174] sm:$0xf]
        %v4337 = vld [vmem:[%s4242 + $0x178] sm:$0xf]
        %v4338 = vld [vmem:[%s4242 + $0x17c] sm:$0xf]
        %v4435 = vunpack.c.l.b16 %v4243
        %v4436 = vunpack.c.l.b16 %v4244
        %v4437 = vunpack.c.l.b16 %v4245
        %v4438 = vunpack.c.l.b16 %v4246
        %v4439 = vunpack.c.l.b16 %v4247
        %v4440 = vunpack.c.l.b16 %v4248
        %v4441 = vunpack.c.l.b16 %v4249
        %v4442 = vunpack.c.l.b16 %v4250
        %v4443 = vunpack.c.l.b16 %v4251
        %v4444 = vunpack.c.l.b16 %v4252
        %v4445 = vunpack.c.l.b16 %v4253
        %v4446 = vunpack.c.l.b16 %v4254
        %v4447 = vunpack.c.l.b16 %v4255
        %v4448 = vunpack.c.l.b16 %v4256
        %v4449 = vunpack.c.l.b16 %v4257
        %v4450 = vunpack.c.l.b16 %v4258
        %v4451 = vunpack.c.l.b16 %v4259
        %v4452 = vunpack.c.l.b16 %v4260
        %v4453 = vunpack.c.l.b16 %v4261
        %v4454 = vunpack.c.l.b16 %v4262
        %v4455 = vunpack.c.l.b16 %v4263
        %v4456 = vunpack.c.l.b16 %v4264
        %v4457 = vunpack.c.l.b16 %v4265
        %v4458 = vunpack.c.l.b16 %v4266
        %v4459 = vunpack.c.l.b16 %v4267
        %v4460 = vunpack.c.l.b16 %v4268
        %v4461 = vunpack.c.l.b16 %v4269
        %v4462 = vunpack.c.l.b16 %v4270
        %v4463 = vunpack.c.l.b16 %v4271
        %v4464 = vunpack.c.l.b16 %v4272
        %v4465 = vunpack.c.l.b16 %v4273
        %v4466 = vunpack.c.l.b16 %v4274
        %v4467 = vunpack.c.l.b16 %v4275
        %v4468 = vunpack.c.l.b16 %v4276
        %v4469 = vunpack.c.l.b16 %v4277
        %v4470 = vunpack.c.l.b16 %v4278
        %v4471 = vunpack.c.l.b16 %v4279
        %v4472 = vunpack.c.l.b16 %v4280
        %v4473 = vunpack.c.l.b16 %v4281
        %v4474 = vunpack.c.l.b16 %v4282
        %v4475 = vunpack.c.l.b16 %v4283
        %v4476 = vunpack.c.l.b16 %v4284
        %v4477 = vunpack.c.l.b16 %v4285
        %v4478 = vunpack.c.l.b16 %v4286
        %v4479 = vunpack.c.l.b16 %v4287
        %v4480 = vunpack.c.l.b16 %v4288
        %v4481 = vunpack.c.l.b16 %v4289
        %v4482 = vunpack.c.l.b16 %v4290
        %v4483 = vunpack.c.l.b16 %v4291
        %v4484 = vunpack.c.l.b16 %v4292
        %v4485 = vunpack.c.l.b16 %v4293
        %v4486 = vunpack.c.l.b16 %v4294
        %v4487 = vunpack.c.l.b16 %v4295
        %v4488 = vunpack.c.l.b16 %v4296
        %v4489 = vunpack.c.l.b16 %v4297
        %v4490 = vunpack.c.l.b16 %v4298
        %v4491 = vunpack.c.l.b16 %v4299
        %v4492 = vunpack.c.l.b16 %v4300
        %v4493 = vunpack.c.l.b16 %v4301
        %v4494 = vunpack.c.l.b16 %v4302
        %v4495 = vunpack.c.l.b16 %v4303
        %v4496 = vunpack.c.l.b16 %v4304
        %v4497 = vunpack.c.l.b16 %v4305
        %v4498 = vunpack.c.l.b16 %v4306
        %v4499 = vunpack.c.l.b16 %v4307
        %v4500 = vunpack.c.l.b16 %v4308
        %v4501 = vunpack.c.l.b16 %v4309
        %v4502 = vunpack.c.l.b16 %v4310
        %v4503 = vunpack.c.l.b16 %v4311
        %v4504 = vunpack.c.l.b16 %v4312
        %v4505 = vunpack.c.l.b16 %v4313
        %v4506 = vunpack.c.l.b16 %v4314
        %v4507 = vunpack.c.l.b16 %v4315
        %v4508 = vunpack.c.l.b16 %v4316
        %v4509 = vunpack.c.l.b16 %v4317
        %v4510 = vunpack.c.l.b16 %v4318
        %v4511 = vunpack.c.l.b16 %v4319
        %v4512 = vunpack.c.l.b16 %v4320
        %v4513 = vunpack.c.l.b16 %v4321
        %v4514 = vunpack.c.l.b16 %v4322
        %v4515 = vunpack.c.l.b16 %v4323
        %v4516 = vunpack.c.l.b16 %v4324
        %v4517 = vunpack.c.l.b16 %v4325
        %v4518 = vunpack.c.l.b16 %v4326
        %v4519 = vunpack.c.l.b16 %v4327
        %v4520 = vunpack.c.l.b16 %v4328
        %v4521 = vunpack.c.l.b16 %v4329
        %v4522 = vunpack.c.l.b16 %v4330
        %v4523 = vunpack.c.l.b16 %v4331
        %v4524 = vunpack.c.l.b16 %v4332
        %v4525 = vunpack.c.l.b16 %v4333
        %v4526 = vunpack.c.l.b16 %v4334
        %v4527 = vunpack.c.l.b16 %v4335
        %v4528 = vunpack.c.l.b16 %v4336
        %v4529 = vunpack.c.l.b16 %v4337
        %v4530 = vunpack.c.l.b16 %v4338
        %v4531 = vpack.c.b16 %v4436, %v4435
        %v4532 = vpack.c.b16 %v4438, %v4437
        %v4533 = vpack.c.b16 %v4440, %v4439
        %v4534 = vpack.c.b16 %v4442, %v4441
        %v4535 = vpack.c.b16 %v4444, %v4443
        %v4536 = vpack.c.b16 %v4446, %v4445
        %v4537 = vpack.c.b16 %v4448, %v4447
        %v4538 = vpack.c.b16 %v4450, %v4449
        %v4539 = vpack.c.b16 %v4452, %v4451
        %v4540 = vpack.c.b16 %v4454, %v4453
        %v4541 = vpack.c.b16 %v4456, %v4455
        %v4542 = vpack.c.b16 %v4458, %v4457
        %v4543 = vpack.c.b16 %v4460, %v4459
        %v4544 = vpack.c.b16 %v4462, %v4461
        %v4545 = vpack.c.b16 %v4464, %v4463
        %v4546 = vpack.c.b16 %v4466, %v4465
        %v4547 = vpack.c.b16 %v4468, %v4467
        %v4548 = vpack.c.b16 %v4470, %v4469
        %v4549 = vpack.c.b16 %v4472, %v4471
        %v4550 = vpack.c.b16 %v4474, %v4473
        %v4551 = vpack.c.b16 %v4476, %v4475
        %v4552 = vpack.c.b16 %v4478, %v4477
        %v4553 = vpack.c.b16 %v4480, %v4479
        %v4554 = vpack.c.b16 %v4482, %v4481
        %v4555 = vpack.c.b16 %v4484, %v4483
        %v4556 = vpack.c.b16 %v4486, %v4485
        %v4557 = vpack.c.b16 %v4488, %v4487
        %v4558 = vpack.c.b16 %v4490, %v4489
        %v4559 = vpack.c.b16 %v4492, %v4491
        %v4560 = vpack.c.b16 %v4494, %v4493
        %v4561 = vpack.c.b16 %v4496, %v4495
        %v4562 = vpack.c.b16 %v4498, %v4497
        %v4563 = vpack.c.b16 %v4500, %v4499
        %v4564 = vpack.c.b16 %v4502, %v4501
        %v4565 = vpack.c.b16 %v4504, %v4503
        %v4566 = vpack.c.b16 %v4506, %v4505
        %v4567 = vpack.c.b16 %v4508, %v4507
        %v4568 = vpack.c.b16 %v4510, %v4509
        %v4569 = vpack.c.b16 %v4512, %v4511
        %v4570 = vpack.c.b16 %v4514, %v4513
        %v4571 = vpack.c.b16 %v4516, %v4515
        %v4572 = vpack.c.b16 %v4518, %v4517
        %v4573 = vpack.c.b16 %v4520, %v4519
        %v4574 = vpack.c.b16 %v4522, %v4521
        %v4575 = vpack.c.b16 %v4524, %v4523
        %v4576 = vpack.c.b16 %v4526, %v4525
        %v4577 = vpack.c.b16 %v4528, %v4527
        %v4578 = vpack.c.b16 %v4530, %v4529
        %4627 = vmatprep.subr.bf16.mxu0 0
        %4628 = vmatpush1.bf16.msra.mxu0 %v4531
        %4629 = vmatprep.subr.bf16.mxu0 0
        %4630 = vmatpush1.bf16.msra.mxu0 %v4532
        %4631 = vmatprep.subr.bf16.mxu0 0
        %4632 = vmatpush1.bf16.msra.mxu0 %v4533
        %4633 = vmatprep.subr.bf16.mxu0 0
        %4634 = vmatpush1.bf16.msra.mxu0 %v4534
        %4635 = vmatprep.subr.bf16.mxu0 0
        %4636 = vmatpush1.bf16.msra.mxu0 %v4535
        %4637 = vmatprep.subr.bf16.mxu0 0
        %4638 = vmatpush1.bf16.msra.mxu0 %v4536
        %4639 = vmatprep.subr.bf16.mxu0 0
        %4640 = vmatpush1.bf16.msra.mxu0 %v4537
        %4641 = vmatprep.subr.bf16.mxu0 0
        %4642 = vmatpush1.bf16.msra.mxu0 %v4538
        %4643 = vmatprep.subr.bf16.mxu0 0
        %4644 = vmatpush1.bf16.msra.mxu0 %v4539
        %4645 = vmatprep.subr.bf16.mxu0 0
        %4646 = vmatpush1.bf16.msra.mxu0 %v4540
        %4647 = vmatprep.subr.bf16.mxu0 0
        %4648 = vmatpush1.bf16.msra.mxu0 %v4541
        %4649 = vmatprep.subr.bf16.mxu0 0
        %4650 = vmatpush1.bf16.msra.mxu0 %v4542
        %4651 = vmatprep.subr.bf16.mxu0 0
        %4652 = vmatpush1.bf16.msra.mxu0 %v4543
        %4653 = vmatprep.subr.bf16.mxu0 0
        %4654 = vmatpush1.bf16.msra.mxu0 %v4544
        %4655 = vmatprep.subr.bf16.mxu0 0
        %4656 = vmatpush1.bf16.msra.mxu0 %v4545
        %4657 = vmatprep.subr.bf16.mxu0 0
        %4658 = vmatpush1.bf16.msra.mxu0 %v4546
        %4659 = vmatprep.mubr.bf16.mxu0 %v4219
        %4660 = vmatmul.mubr.bf16.gmra.mrb[0].mxu0 %v4218
        %v4661 = vpop.f32.mrb[0].mxu0
        %v4662 = vadd.f32 0.0, %v4661
        %v4663 = vpop.f32.mrb[0].mxu0
        %v4664 = vpop.f32.mrb[0].mxu0
        %v4665 = vadd.f32 0.0, %v4664
        %v4666 = vpop.f32.mrb[0].mxu0
        %4667 = vmatprep.mubr.bf16.mxu0 %v4225
        %4668 = vmatmul.mubr.bf16.gmra.mrb[0].mxu0 %v4224
        %v4669 = vpop.f32.mrb[0].mxu0
        %v4670 = vadd.f32 0.0, %v4669
        %v4671 = vpop.f32.mrb[0].mxu0
        %v4672 = vpop.f32.mrb[0].mxu0
        %v4673 = vadd.f32 0.0, %v4672
        %v4674 = vpop.f32.mrb[0].mxu0
        %4675 = vmatprep.mubr.bf16.mxu0 %v4231
        %4676 = vmatmul.mubr.bf16.gmra.mrb[0].mxu0 %v4230
        %v4677 = vpop.f32.mrb[0].mxu0
        %v4678 = vadd.f32 0.0, %v4677
        %v4679 = vpop.f32.mrb[0].mxu0
        %v4680 = vpop.f32.mrb[0].mxu0
        %v4681 = vadd.f32 0.0, %v4680
        %v4682 = vpop.f32.mrb[0].mxu0
        %4683 = vmatprep.mubr.bf16.mxu0 %v4237
        %4684 = vmatmul.mubr.bf16.gmra.mrb[0].mxu0 %v4236
        %v4685 = vpop.f32.mrb[0].mxu0
        %v4686 = vadd.f32 0.0, %v4685
        %v4687 = vpop.f32.mrb[0].mxu0
        %v4688 = vpop.f32.mrb[0].mxu0
        %v4689 = vpop.f32.mrb[0].mxu0
        %4690 = vdwg.mxu0
        %4691 = vmatprep.subr.bf16.mxu0 0
        %4692 = vmatpush1.bf16.msra.mxu0 %v4547
        %4693 = vmatprep.subr.bf16.mxu0 0
        %4694 = vmatpush1.bf16.msra.mxu0 %v4548
        %4695 = vmatprep.subr.bf16.mxu0 0
        %4696 = vmatpush1.bf16.msra.mxu0 %v4549
        %4697 = vmatprep.subr.bf16.mxu0 0
        %4698 = vmatpush1.bf16.msra.mxu0 %v4550
        %4699 = vmatprep.subr.bf16.mxu0 0
        %4700 = vmatpush1.bf16.msra.mxu0 %v4551
        %4701 = vmatprep.subr.bf16.mxu0 0
        %4702 = vmatpush1.bf16.msra.mxu0 %v4552
        %4703 = vmatprep.subr.bf16.mxu0 0
        %4704 = vmatpush1.bf16.msra.mxu0 %v4553
        %4705 = vmatprep.subr.bf16.mxu0 0
        %4706 = vmatpush1.bf16.msra.mxu0 %v4554
        %4707 = vmatprep.subr.bf16.mxu0 0
        %4708 = vmatpush1.bf16.msra.mxu0 %v4555
        %4709 = vmatprep.subr.bf16.mxu0 0
        %4710 = vmatpush1.bf16.msra.mxu0 %v4556
        %4711 = vmatprep.subr.bf16.mxu0 0
        %4712 = vmatpush1.bf16.msra.mxu0 %v4557
        %4713 = vmatprep.subr.bf16.mxu0 0
        %4714 = vmatpush1.bf16.msra.mxu0 %v4558
        %4715 = vmatprep.subr.bf16.mxu0 0
        %4716 = vmatpush1.bf16.msra.mxu0 %v4559
        %4717 = vmatprep.subr.bf16.mxu0 0
        %4718 = vmatpush1.bf16.msra.mxu0 %v4560
        %4719 = vmatprep.subr.bf16.mxu0 0
        %4720 = vmatpush1.bf16.msra.mxu0 %v4561
        %4721 = vmatprep.subr.bf16.mxu0 0
        %4722 = vmatpush1.bf16.msra.mxu0 %v4562
        %4723 = vmatprep.mubr.bf16.mxu0 %v4221
        %4724 = vmatmul.mubr.bf16.gmra.mrb[0].mxu0 %v4220
        %v4725 = vpop.f32.mrb[0].mxu0
        %v4726 = vadd.f32 %v4662, %v4725
        %v4727 = vpop.f32.mrb[0].mxu0
        %v4728 = vpop.f32.mrb[0].mxu0
        %v4729 = vadd.f32 %v4665, %v4728
        %v4730 = vpop.f32.mrb[0].mxu0
        %4731 = vmatprep.mubr.bf16.mxu0 %v4227
        %4732 = vmatmul.mubr.bf16.gmra.mrb[0].mxu0 %v4226
        %v4733 = vpop.f32.mrb[0].mxu0
        %v4734 = vadd.f32 %v4670, %v4733
        %v4735 = vpop.f32.mrb[0].mxu0
        %v4736 = vpop.f32.mrb[0].mxu0
        %v4737 = vadd.f32 %v4673, %v4736
        %v4738 = vpop.f32.mrb[0].mxu0
        %4739 = vmatprep.mubr.bf16.mxu0 %v4233
        %4740 = vmatmul.mubr.bf16.gmra.mrb[0].mxu0 %v4232
        %v4741 = vpop.f32.mrb[0].mxu0
        %v4742 = vadd.f32 %v4678, %v4741
        %v4743 = vpop.f32.mrb[0].mxu0
        %v4744 = vpop.f32.mrb[0].mxu0
        %v4745 = vadd.f32 %v4681, %v4744
        %v4746 = vpop.f32.mrb[0].mxu0
        %4747 = vmatprep.mubr.bf16.mxu0 %v4239
        %4748 = vmatmul.mubr.bf16.gmra.mrb[0].mxu0 %v4238
        %v4749 = vpop.f32.mrb[0].mxu0
        %v4750 = vadd.f32 %v4686, %v4749
        %v4751 = vpop.f32.mrb[0].mxu0
        %v4752 = vpop.f32.mrb[0].mxu0
        %v4753 = vpop.f32.mrb[0].mxu0
        %4754 = vdwg.mxu0
        %4755 = vmatprep.subr.bf16.mxu0 0
        %4756 = vmatpush1.bf16.msra.mxu0 %v4563
        %4757 = vmatprep.subr.bf16.mxu0 0
        %4758 = vmatpush1.bf16.msra.mxu0 %v4564
        %4759 = vmatprep.subr.bf16.mxu0 0
        %4760 = vmatpush1.bf16.msra.mxu0 %v4565
        %4761 = vmatprep.subr.bf16.mxu0 0
        %4762 = vmatpush1.bf16.msra.mxu0 %v4566
        %4763 = vmatprep.subr.bf16.mxu0 0
        %4764 = vmatpush1.bf16.msra.mxu0 %v4567
        %4765 = vmatprep.subr.bf16.mxu0 0
        %4766 = vmatpush1.bf16.msra.mxu0 %v4568
        %4767 = vmatprep.subr.bf16.mxu0 0
        %4768 = vmatpush1.bf16.msra.mxu0 %v4569
        %4769 = vmatprep.subr.bf16.mxu0 0
        %4770 = vmatpush1.bf16.msra.mxu0 %v4570
        %4771 = vmatprep.subr.bf16.mxu0 0
        %4772 = vmatpush1.bf16.msra.mxu0 %v4571
        %4773 = vmatprep.subr.bf16.mxu0 0
        %4774 = vmatpush1.bf16.msra.mxu0 %v4572
        %4775 = vmatprep.subr.bf16.mxu0 0
        %4776 = vmatpush1.bf16.msra.mxu0 %v4573
        %4777 = vmatprep.subr.bf16.mxu0 0
        %4778 = vmatpush1.bf16.msra.mxu0 %v4574
        %4779 = vmatprep.subr.bf16.mxu0 0
        %4780 = vmatpush1.bf16.msra.mxu0 %v4575
        %4781 = vmatprep.subr.bf16.mxu0 0
        %4782 = vmatpush1.bf16.msra.mxu0 %v4576
        %4783 = vmatprep.subr.bf16.mxu0 0
        %4784 = vmatpush1.bf16.msra.mxu0 %v4577
        %4785 = vmatprep.subr.bf16.mxu0 0
        %4786 = vmatpush1.bf16.msra.mxu0 %v4578
        %4787 = vmatprep.mubr.bf16.mxu0 %v4223
        %4788 = vmatmul.mubr.bf16.gmra.mrb[0].mxu0 %v4222
        %v4789 = vpop.f32.mrb[0].mxu0
        %v4790 = vadd.f32 %v4726, %v4789
        %v4791 = vpop.f32.mrb[0].mxu0
        %v4792 = vpop.f32.mrb[0].mxu0
        %v4793 = vadd.f32 %v4729, %v4792
        %v4794 = vpop.f32.mrb[0].mxu0
        %4795 = vmatprep.mubr.bf16.mxu0 %v4229
        %4796 = vmatmul.mubr.bf16.gmra.mrb[0].mxu0 %v4228
        %v4797 = vpop.f32.mrb[0].mxu0
        %v4798 = vadd.f32 %v4734, %v4797
        %v4799 = vpop.f32.mrb[0].mxu0
        %v4800 = vpop.f32.mrb[0].mxu0
        %v4801 = vadd.f32 %v4737, %v4800
        %v4802 = vpop.f32.mrb[0].mxu0
        %4803 = vmatprep.mubr.bf16.mxu0 %v4235
        %4804 = vmatmul.mubr.bf16.gmra.mrb[0].mxu0 %v4234
        %v4805 = vpop.f32.mrb[0].mxu0
        %v4806 = vadd.f32 %v4742, %v4805
        %v4807 = vpop.f32.mrb[0].mxu0
        %v4808 = vpop.f32.mrb[0].mxu0
        %v4809 = vadd.f32 %v4745, %v4808
        %v4810 = vpop.f32.mrb[0].mxu0
        %4811 = vmatprep.mubr.bf16.mxu0 %v4241
        %4812 = vmatmul.mubr.bf16.gmra.mrb[0].mxu0 %v4240
        %v4813 = vpop.f32.mrb[0].mxu0
        %v4814 = vadd.f32 %v4750, %v4813
        %v4815 = vpop.f32.mrb[0].mxu0
        %v4816 = vpop.f32.mrb[0].mxu0
        %v4817 = vpop.f32.mrb[0].mxu0
        %4818 = vdwg.mxu0
        %s4819 = scalar_lea.vmem %s761, 192
        %v4820 = vld [vmem:[%s4819] sm:$0xf]
        %v4821 = vld [vmem:[%s4819 + $0x4] sm:$0xf]
        %v4822 = vld [vmem:[%s4819 + $0x8] sm:$0xf]
        %v4823 = vld [vmem:[%s4819 + $0xc] sm:$0xf]
        %v4824 = vld [vmem:[%s4819 + $0x10] sm:$0xf]
        %v4825 = vld [vmem:[%s4819 + $0x14] sm:$0xf]
        %v4826 = vld [vmem:[%s4819 + $0x18] sm:$0xf]
        %v4827 = vld [vmem:[%s4819 + $0x1c] sm:$0xf]
        %v4828 = vld [vmem:[%s4819 + $0x20] sm:$0xf]
        %v4829 = vld [vmem:[%s4819 + $0x24] sm:$0xf]
        %v4830 = vld [vmem:[%s4819 + $0x28] sm:$0xf]
        %v4831 = vld [vmem:[%s4819 + $0x2c] sm:$0xf]
        %v4832 = vld [vmem:[%s4819 + $0x30] sm:$0xf]
        %v4833 = vld [vmem:[%s4819 + $0x34] sm:$0xf]
        %v4834 = vld [vmem:[%s4819 + $0x38] sm:$0xf]
        %v4835 = vld [vmem:[%s4819 + $0x3c] sm:$0xf]
        %v4836 = vld [vmem:[%s4819 + $0x40] sm:$0xf]
        %v4837 = vld [vmem:[%s4819 + $0x44] sm:$0xf]
        %v4838 = vld [vmem:[%s4819 + $0x48] sm:$0xf]
        %v4839 = vld [vmem:[%s4819 + $0x4c] sm:$0xf]
        %v4840 = vld [vmem:[%s4819 + $0x50] sm:$0xf]
        %v4841 = vld [vmem:[%s4819 + $0x54] sm:$0xf]
        %v4842 = vld [vmem:[%s4819 + $0x58] sm:$0xf]
        %v4843 = vld [vmem:[%s4819 + $0x5c] sm:$0xf]
        %v4844 = vld [vmem:[%s4819 + $0x60] sm:$0xf]
        %v4845 = vld [vmem:[%s4819 + $0x64] sm:$0xf]
        %v4846 = vld [vmem:[%s4819 + $0x68] sm:$0xf]
        %v4847 = vld [vmem:[%s4819 + $0x6c] sm:$0xf]
        %v4848 = vld [vmem:[%s4819 + $0x70] sm:$0xf]
        %v4849 = vld [vmem:[%s4819 + $0x74] sm:$0xf]
        %v4850 = vld [vmem:[%s4819 + $0x78] sm:$0xf]
        %v4851 = vld [vmem:[%s4819 + $0x7c] sm:$0xf]
        %v4852 = vld [vmem:[%s4819 + $0x80] sm:$0xf]
        %v4853 = vld [vmem:[%s4819 + $0x84] sm:$0xf]
        %v4854 = vld [vmem:[%s4819 + $0x88] sm:$0xf]
        %v4855 = vld [vmem:[%s4819 + $0x8c] sm:$0xf]
        %v4856 = vld [vmem:[%s4819 + $0x90] sm:$0xf]
        %v4857 = vld [vmem:[%s4819 + $0x94] sm:$0xf]
        %v4858 = vld [vmem:[%s4819 + $0x98] sm:$0xf]
        %v4859 = vld [vmem:[%s4819 + $0x9c] sm:$0xf]
        %v4860 = vld [vmem:[%s4819 + $0xa0] sm:$0xf]
        %v4861 = vld [vmem:[%s4819 + $0xa4] sm:$0xf]
        %v4862 = vld [vmem:[%s4819 + $0xa8] sm:$0xf]
        %v4863 = vld [vmem:[%s4819 + $0xac] sm:$0xf]
        %v4864 = vld [vmem:[%s4819 + $0xb0] sm:$0xf]
        %v4865 = vld [vmem:[%s4819 + $0xb4] sm:$0xf]
        %v4866 = vld [vmem:[%s4819 + $0xb8] sm:$0xf]
        %v4867 = vld [vmem:[%s4819 + $0xbc] sm:$0xf]
        %v4916 = vunpack.c.l.b16 %v4820
        %v4917 = vunpack.c.l.b16 %v4821
        %v4918 = vunpack.c.l.b16 %v4822
        %v4919 = vunpack.c.l.b16 %v4823
        %v4920 = vunpack.c.l.b16 %v4824
        %v4921 = vunpack.c.l.b16 %v4825
        %v4922 = vunpack.c.l.b16 %v4826
        %v4923 = vunpack.c.l.b16 %v4827
        %v4924 = vunpack.c.l.b16 %v4828
        %v4925 = vunpack.c.l.b16 %v4829
        %v4926 = vunpack.c.l.b16 %v4830
        %v4927 = vunpack.c.l.b16 %v4831
        %v4928 = vunpack.c.l.b16 %v4832
        %v4929 = vunpack.c.l.b16 %v4833
        %v4930 = vunpack.c.l.b16 %v4834
        %v4931 = vunpack.c.l.b16 %v4835
        %v4932 = vunpack.c.l.b16 %v4836
        %v4933 = vunpack.c.l.b16 %v4837
        %v4934 = vunpack.c.l.b16 %v4838
        %v4935 = vunpack.c.l.b16 %v4839
        %v4936 = vunpack.c.l.b16 %v4840
        %v4937 = vunpack.c.l.b16 %v4841
        %v4938 = vunpack.c.l.b16 %v4842
        %v4939 = vunpack.c.l.b16 %v4843
        %v4940 = vunpack.c.l.b16 %v4844
        %v4941 = vunpack.c.l.b16 %v4845
        %v4942 = vunpack.c.l.b16 %v4846
        %v4943 = vunpack.c.l.b16 %v4847
        %v4944 = vunpack.c.l.b16 %v4848
        %v4945 = vunpack.c.l.b16 %v4849
        %v4946 = vunpack.c.l.b16 %v4850
        %v4947 = vunpack.c.l.b16 %v4851
        %v4948 = vunpack.c.l.b16 %v4852
        %v4949 = vunpack.c.l.b16 %v4853
        %v4950 = vunpack.c.l.b16 %v4854
        %v4951 = vunpack.c.l.b16 %v4855
        %v4952 = vunpack.c.l.b16 %v4856
        %v4953 = vunpack.c.l.b16 %v4857
        %v4954 = vunpack.c.l.b16 %v4858
        %v4955 = vunpack.c.l.b16 %v4859
        %v4956 = vunpack.c.l.b16 %v4860
        %v4957 = vunpack.c.l.b16 %v4861
        %v4958 = vunpack.c.l.b16 %v4862
        %v4959 = vunpack.c.l.b16 %v4863
        %v4960 = vunpack.c.l.b16 %v4864
        %v4961 = vunpack.c.l.b16 %v4865
        %v4962 = vunpack.c.l.b16 %v4866
        %v4963 = vunpack.c.l.b16 %v4867
        %v4964 = vpack.c.b16 %v4917, %v4916
        %v4965 = vpack.c.b16 %v4919, %v4918
        %v4966 = vpack.c.b16 %v4921, %v4920
        %v4967 = vpack.c.b16 %v4923, %v4922
        %v4968 = vpack.c.b16 %v4925, %v4924
        %v4969 = vpack.c.b16 %v4927, %v4926
        %v4970 = vpack.c.b16 %v4929, %v4928
        %v4971 = vpack.c.b16 %v4931, %v4930
        %v4972 = vpack.c.b16 %v4933, %v4932
        %v4973 = vpack.c.b16 %v4935, %v4934
        %v4974 = vpack.c.b16 %v4937, %v4936
        %v4975 = vpack.c.b16 %v4939, %v4938
        %v4976 = vpack.c.b16 %v4941, %v4940
        %v4977 = vpack.c.b16 %v4943, %v4942
        %v4978 = vpack.c.b16 %v4945, %v4944
        %v4979 = vpack.c.b16 %v4947, %v4946
        %v4980 = vpack.c.b16 %v4949, %v4948
        %v4981 = vpack.c.b16 %v4951, %v4950
        %v4982 = vpack.c.b16 %v4953, %v4952
        %v4983 = vpack.c.b16 %v4955, %v4954
        %v4984 = vpack.c.b16 %v4957, %v4956
        %v4985 = vpack.c.b16 %v4959, %v4958
        %v4986 = vpack.c.b16 %v4961, %v4960
        %v4987 = vpack.c.b16 %v4963, %v4962
        %5012 = vmatprep.subr.bf16.mxu0 0
        %5013 = vmatpush1.bf16.msra.mxu0 %v4964
        %5014 = vmatprep.subr.bf16.mxu0 0
        %5015 = vmatpush1.bf16.msra.mxu0 %v4965
        %5016 = vmatprep.subr.bf16.mxu0 0
        %5017 = vmatpush1.bf16.msra.mxu0 %v4966
        %5018 = vmatprep.subr.bf16.mxu0 0
        %5019 = vmatpush1.bf16.msra.mxu0 %v4967
        %5020 = vmatprep.subr.bf16.mxu0 0
        %5021 = vmatpush1.bf16.msra.mxu0 %v4968
        %5022 = vmatprep.subr.bf16.mxu0 0
        %5023 = vmatpush1.bf16.msra.mxu0 %v4969
        %5024 = vmatprep.subr.bf16.mxu0 0
        %5025 = vmatpush1.bf16.msra.mxu0 %v4970
        %5026 = vmatprep.subr.bf16.mxu0 0
        %5027 = vmatpush1.bf16.msra.mxu0 %v4971
        %5028 = vmatprep.subr.bf16.mxu0 0
        %5029 = vmatpush1.bf16.msra.mxu0 %v4972
        %5030 = vmatprep.subr.bf16.mxu0 0
        %5031 = vmatpush1.bf16.msra.mxu0 %v4973
        %5032 = vmatprep.subr.bf16.mxu0 0
        %5033 = vmatpush1.bf16.msra.mxu0 %v4974
        %5034 = vmatprep.subr.bf16.mxu0 0
        %5035 = vmatpush1.bf16.msra.mxu0 %v4975
        %5036 = vmatprep.subr.bf16.mxu0 0
        %5037 = vmatpush1.bf16.msra.mxu0 %v4976
        %5038 = vmatprep.subr.bf16.mxu0 0
        %5039 = vmatpush1.bf16.msra.mxu0 %v4977
        %5040 = vmatprep.subr.bf16.mxu0 0
        %5041 = vmatpush1.bf16.msra.mxu0 %v4978
        %5042 = vmatprep.subr.bf16.mxu0 0
        %5043 = vmatpush1.bf16.msra.mxu0 %v4979
        %5044 = vmatprep.mubr.bf16.mxu0 %v4220
        %5045 = vmatmul.mubr.bf16.gmra.mrb[0].mxu0 %v4218
        %v5046 = vpop.f32.mrb[0].mxu0
        %v5047 = vadd.f32 0.0, %v5046
        %v5048 = vpop.f32.mrb[0].mxu0
        %v5049 = vpop.f32.mrb[0].mxu0
        %v5050 = vadd.f32 0.0, %v5049
        %v5051 = vpop.f32.mrb[0].mxu0
        %5052 = vmatprep.mubr.bf16.mxu0 %v4226
        %5053 = vmatmul.mubr.bf16.gmra.mrb[0].mxu0 %v4224
        %v5054 = vpop.f32.mrb[0].mxu0
        %v5055 = vadd.f32 0.0, %v5054
        %v5056 = vpop.f32.mrb[0].mxu0
        %v5057 = vpop.f32.mrb[0].mxu0
        %v5058 = vadd.f32 0.0, %v5057
        %v5059 = vpop.f32.mrb[0].mxu0
        %5060 = vmatprep.mubr.bf16.mxu0 %v4232
        %5061 = vmatmul.mubr.bf16.gmra.mrb[0].mxu0 %v4230
        %v5062 = vpop.f32.mrb[0].mxu0
        %v5063 = vadd.f32 0.0, %v5062
        %v5064 = vpop.f32.mrb[0].mxu0
        %v5065 = vpop.f32.mrb[0].mxu0
        %v5066 = vadd.f32 0.0, %v5065
        %v5067 = vpop.f32.mrb[0].mxu0
        %5068 = vmatprep.mubr.bf16.mxu0 %v4238
        %5069 = vmatmul.mubr.bf16.gmra.mrb[0].mxu0 %v4236
        %v5070 = vpop.f32.mrb[0].mxu0
        %v5071 = vadd.f32 0.0, %v5070
        %v5072 = vpop.f32.mrb[0].mxu0
        %v5073 = vpop.f32.mrb[0].mxu0
        %v5074 = vpop.f32.mrb[0].mxu0
        %5075 = vdwg.mxu0
        %5076 = vmatprep.subr.bf16.mxu0 0
        %5077 = vmatpush1.bf16.msra.mxu0 %v4980
        %5078 = vmatprep.subr.bf16.mxu0 0
        %5079 = vmatpush1.bf16.msra.mxu0 %v4981
        %5080 = vmatprep.subr.bf16.mxu0 0
        %5081 = vmatpush1.bf16.msra.mxu0 %v4982
        %5082 = vmatprep.subr.bf16.mxu0 0
        %5083 = vmatpush1.bf16.msra.mxu0 %v4983
        %5084 = vmatprep.subr.bf16.mxu0 0
        %5085 = vmatpush1.bf16.msra.mxu0 %v4984
        %5086 = vmatprep.subr.bf16.mxu0 0
        %5087 = vmatpush1.bf16.msra.mxu0 %v4985
        %5088 = vmatprep.subr.bf16.mxu0 0
        %5089 = vmatpush1.bf16.msra.mxu0 %v4986
        %5090 = vmatprep.subr.bf16.mxu0 0
        %5091 = vmatpush1.bf16.msra.mxu0 %v4987
        %5092 = vmatprep.subr.bf16.mxu0 0
        %5093 = vmatpush1.bf16.msra.mxu0 0
        %5094 = vmatprep.subr.bf16.mxu0 0
        %5095 = vmatpush1.bf16.msra.mxu0 0
        %5096 = vmatprep.subr.bf16.mxu0 0
        %5097 = vmatpush1.bf16.msra.mxu0 0
        %5098 = vmatprep.subr.bf16.mxu0 0
        %5099 = vmatpush1.bf16.msra.mxu0 0
        %5100 = vmatprep.subr.bf16.mxu0 0
        %5101 = vmatpush1.bf16.msra.mxu0 0
        %5102 = vmatprep.subr.bf16.mxu0 0
        %5103 = vmatpush1.bf16.msra.mxu0 0
        %5104 = vmatprep.subr.bf16.mxu0 0
        %5105 = vmatpush1.bf16.msra.mxu0 0
        %5106 = vmatprep.subr.bf16.mxu0 0
        %5107 = vmatpush1.bf16.msra.mxu0 0
        %5108 = vmatprep.mubr.bf16.mxu0 0
        %5109 = vmatmul.mubr.bf16.gmra.mrb[0].mxu0 %v4222
        %v5110 = vpop.f32.mrb[0].mxu0
        %v5111 = vadd.f32 %v5047, %v5110
        %v5112 = vpop.f32.mrb[0].mxu0
        %v5113 = vpop.f32.mrb[0].mxu0
        %v5114 = vadd.f32 %v5050, %v5113
        %v5115 = vpop.f32.mrb[0].mxu0
        %5116 = vmatprep.mubr.bf16.mxu0 0
        %5117 = vmatmul.mubr.bf16.gmra.mrb[0].mxu0 %v4228
        %v5118 = vpop.f32.mrb[0].mxu0
        %v5119 = vadd.f32 %v5055, %v5118
        %v5120 = vpop.f32.mrb[0].mxu0
        %v5121 = vpop.f32.mrb[0].mxu0
        %v5122 = vadd.f32 %v5058, %v5121
        %v5123 = vpop.f32.mrb[0].mxu0
        %5124 = vmatprep.mubr.bf16.mxu0 0
        %5125 = vmatmul.mubr.bf16.gmra.mrb[0].mxu0 %v4234
        %v5126 = vpop.f32.mrb[0].mxu0
        %v5127 = vadd.f32 %v5063, %v5126
        %v5128 = vpop.f32.mrb[0].mxu0
        %v5129 = vpop.f32.mrb[0].mxu0
        %v5130 = vadd.f32 %v5066, %v5129
        %v5131 = vpop.f32.mrb[0].mxu0
        %5132 = vmatprep.mubr.bf16.mxu0 0
        %5133 = vmatmul.mubr.bf16.gmra.mrb[0].mxu0 %v4240
        %v5134 = vpop.f32.mrb[0].mxu0
        %v5135 = vadd.f32 %v5071, %v5134
        %v5136 = vpop.f32.mrb[0].mxu0
        %v5137 = vpop.f32.mrb[0].mxu0
        %v5138 = vpop.f32.mrb[0].mxu0
        %5139 = vdwg.mxu0
        %v5147 = vrot.slane %v5111, 1
        %v5148 = vrot.slane %v5114, 1
        %v5149 = vrot.slane %v5119, 1
        %v5150 = vrot.slane %v5122, 1
        %v5151 = vrot.slane %v5127, 1
        %v5152 = vrot.slane %v5130, 1
        %v5153 = vrot.slane %v5135, 1
        %v5161 = vadd.f32 %v4790, %v5147
        %v5162 = vadd.f32 %v4793, %v5148
        %v5163 = vadd.f32 %v4798, %v5149
        %v5164 = vadd.f32 %v4801, %v5150
        %v5165 = vadd.f32 %v4806, %v5151
        %v5166 = vadd.f32 %v4809, %v5152
        %v5167 = vadd.f32 %v4814, %v5153
        %v5168 = vsel %vm4130, %v5161, 0.0
        %v5169 = vsel %vm4130, %v5162, 0.0
        %v5170 = vadd.f32 %v5168, %v5169
        %v5171 = vsel %vm4130, %v5163, 0.0
        %v5172 = vadd.f32 %v5170, %v5171
        %v5173 = vsel %vm4130, %v5164, 0.0
        %v5174 = vadd.f32 %v5172, %v5173
        %v5175 = vsel %vm4130, %v5165, 0.0
        %v5176 = vadd.f32 %v5174, %v5175
        %v5177 = vsel %vm4130, %v5166, 0.0
        %v5178 = vadd.f32 %v5176, %v5177
        %v5179 = vsel %vm4130, %v5167, 0.0
        %v5180 = vadd.f32 %v5178, %v5179
        %v5181 = vrot.slane %v5180, 4
        %v5182 = vadd.f32 %v5180, %v5181
        %v5183 = vrot.slane %v5182, 2
        %v5184 = vadd.f32 %v5182, %v5183
        %v5185 = vrot.slane %v5184, 1
        %v5186 = vadd.f32 %v5184, %v5185
        %v5187 = vmul.f32 %v5186, 0.020408163
        %v5188 = vmul.f32 %v5161, %v5161
        %v5189 = vmul.f32 %v5162, %v5162
        %v5190 = vmul.f32 %v5163, %v5163
        %v5191 = vmul.f32 %v5164, %v5164
        %v5192 = vmul.f32 %v5165, %v5165
        %v5193 = vmul.f32 %v5166, %v5166
        %v5194 = vmul.f32 %v5167, %v5167
        %v5195 = vsel %vm4130, %v5188, 0.0
        %v5196 = vsel %vm4130, %v5189, 0.0
        %v5197 = vadd.f32 %v5195, %v5196
        %v5198 = vsel %vm4130, %v5190, 0.0
        %v5199 = vadd.f32 %v5197, %v5198
        %v5200 = vsel %vm4130, %v5191, 0.0
        %v5201 = vadd.f32 %v5199, %v5200
        %v5202 = vsel %vm4130, %v5192, 0.0
        %v5203 = vadd.f32 %v5201, %v5202
        %v5204 = vsel %vm4130, %v5193, 0.0
        %v5205 = vadd.f32 %v5203, %v5204
        %v5206 = vsel %vm4130, %v5194, 0.0
        %v5207 = vadd.f32 %v5205, %v5206
        %v5208 = vrot.slane %v5207, 4
        %v5209 = vadd.f32 %v5207, %v5208
        %v5210 = vrot.slane %v5209, 2
        %v5211 = vadd.f32 %v5209, %v5210
        %v5212 = vrot.slane %v5211, 1
        %v5213 = vadd.f32 %v5211, %v5212
        %v5214 = vmul.f32 %v5213, 0.020408163
        %v5215 = vmul.f32 %v5187, %v5187
        %v5216 = vsub.f32 %v5214, %v5215
        %v5217 = vadd.f32 %v5216, 1e-05
        %v5218 = vrsqrt.pop %v5217
        %v5219 = vld [vmem:[%s766 + $0x1] sm:$0x1]
        %v5220 = vmul.f32 %v5218, %v5219
        %v5221 = vld [vmem:[%s771 + $0x1] sm:$0x1]
        %v5222 = vmul.f32 %v5187, %v5220
        %v5223 = vsub.f32 %v5221, %v5222
        %v5224 = vlaneseq
        %v5225 = vshrl.u32 %v5224, 7
        %v5226 = vsub.s32 0, %v5225
        %v5227 = vrot.slane %v5220, %v5226
        %v5228 = vmul.f32 %v5161, %v5227
        %v5229 = vmul.f32 %v5162, %v5227
        %v5230 = vmul.f32 %v5163, %v5227
        %v5231 = vmul.f32 %v5164, %v5227
        %v5232 = vmul.f32 %v5165, %v5227
        %v5233 = vmul.f32 %v5166, %v5227
        %v5234 = vmul.f32 %v5167, %v5227
        %v5236 = vlaneseq
        %v5237 = vshrl.u32 %v5236, 7
        %v5238 = vsub.s32 0, %v5237
        %v5239 = vrot.slane %v5223, %v5238
        %v5241 = vadd.f32 %v5228, %v5239
        %v5242 = vadd.f32 %v5229, %v5239
        %v5243 = vadd.f32 %v5230, %v5239
        %v5244 = vadd.f32 %v5231, %v5239
        %v5245 = vadd.f32 %v5232, %v5239
        %v5246 = vadd.f32 %v5233, %v5239
        %v5247 = vadd.f32 %v5234, %v5239
        %5248 = vst [vmem:[%s737 + $0x8] sm:$0x7f] %v5241
        %5249 = vst [vmem:[%s737 + $0x18] sm:$0x7f] %v5242
        %5250 = vst [vmem:[%s737 + $0x28] sm:$0x7f] %v5243
        %5251 = vst [vmem:[%s737 + $0x38] sm:$0x7f] %v5244
        %5252 = vst [vmem:[%s737 + $0x48] sm:$0x7f] %v5245
        %5253 = vst [vmem:[%s737 + $0x58] sm:$0x7f] %v5246
        %5254 = vst [vmem:[%s737 + $0x68] sm:$0x7f] %v5247
        %s5255 = sand.u32 %s252, 1
        %s5256 = sand.u32 %s252, 1
        %s5257 = smul.addr %s5256, 112
        %s5258 = scalar_lea.vmem [#allocation4], %s5257
        // Predicated region
        $region95: #{forward.1} parent=89 // pred_check
          %p5259 = pneg %p262
        $region96: #{forward.1} parent=89 // pred_check_branch
          %5261 = sbr.rel (%p5259) target = $region98
        $region97: #{forward.1} parent=89 // pred_region
          %s5262 = smul.u32 2, %s20
          %s5263 = smul.addr %s5262, 8
          %s5264 = scalar_lea.vmem %s9, %s5263
          // Predicated region
          $region99: #{forward.1} parent=97 // pred_check
            _
          $region100: #{forward.1} parent=97 // pred_check_branch
            %5266 = sbr.rel (0) target = $region102
          $region101: #{forward.1} parent=97 // pred_region
            // Predicated region
            $region103: #{forward.1} parent=101 // pred_check
              _
            $region104: #{forward.1} parent=101 // pred_check_branch
              %5268 = sbr.rel (0) target = $region106
            $region105: #{forward.1} parent=101 // pred_region
              loop: start=0, step=1, limit=1
              $region107: #{forward.1} parent=105 // loop_pre_header
                _
              $region108: #{forward.1} parent=105 // loop_header
                %s5270 = sphi 0, %s5274
                %p5271 = scmp.ge.s32.totalorder %s5270, 1
                %s5275 = sphi %s5258, %s5258
                %s5276 = sphi %s5264, %s5264
              $region109: #{forward.1} parent=105 // loop_header_branch
                %5273 = sbr.rel (%p5271) target = $region113
              $region110: #{forward.1} parent=105 // loop_body
                %v5277 = vld [vmem:[%s5275] sm:$0xff]
                %5278 = vst [vmem:[%s5276] sm:$0xff] %v5277
                %v5279 = vld [vmem:[%s5275 + $0x8] sm:$0xff]
                %5280 = vst [vmem:[%s5276 + $0x8] sm:$0xff] %v5279
                %v5281 = vld [vmem:[%s5275 + $0x10] sm:$0xff]
                %5282 = vst [vmem:[%s5276 + $0x80] sm:$0xff] %v5281
                %v5283 = vld [vmem:[%s5275 + $0x18] sm:$0xff]
                %5284 = vst [vmem:[%s5276 + $0x88] sm:$0xff] %v5283
                %v5285 = vld [vmem:[%s5275 + $0x20] sm:$0xff]
                %5286 = vst [vmem:[%s5276 + $0x100] sm:$0xff] %v5285
                %v5287 = vld [vmem:[%s5275 + $0x28] sm:$0xff]
                %5288 = vst [vmem:[%s5276 + $0x108] sm:$0xff] %v5287
                %v5289 = vld [vmem:[%s5275 + $0x30] sm:$0xff]
                %5290 = vst [vmem:[%s5276 + $0x180] sm:$0xff] %v5289
                %v5291 = vld [vmem:[%s5275 + $0x38] sm:$0xff]
                %5292 = vst [vmem:[%s5276 + $0x188] sm:$0xff] %v5291
                %v5293 = vld [vmem:[%s5275 + $0x40] sm:$0xff]
                %5294 = vst [vmem:[%s5276 + $0x200] sm:$0xff] %v5293
                %v5295 = vld [vmem:[%s5275 + $0x48] sm:$0xff]
                %5296 = vst [vmem:[%s5276 + $0x208] sm:$0xff] %v5295
                %v5297 = vld [vmem:[%s5275 + $0x50] sm:$0xff]
                %5298 = vst [vmem:[%s5276 + $0x280] sm:$0xff] %v5297
                %v5299 = vld [vmem:[%s5275 + $0x58] sm:$0xff]
                %5300 = vst [vmem:[%s5276 + $0x288] sm:$0xff] %v5299
                %v5301 = vld [vmem:[%s5275 + $0x60] sm:$0xff]
                %5302 = vst [vmem:[%s5276 + $0x300] sm:$0xff] %v5301
                %v5303 = vld [vmem:[%s5275 + $0x68] sm:$0xff]
                %5304 = vst [vmem:[%s5276 + $0x308] sm:$0xff] %v5303
              $region111: #{forward.1} parent=105 // loop_footer
                %s5274 = sadd.s32 1, %s5270
              $region112: #{forward.1} parent=105 // loop_footer_branch
                %5269 = sbr.rel target = $region108
              $region113: #{forward.1} parent=105 // loop_exit
                _
            $region106: #{forward.1} parent=101 // pred_fallthru
              _
            // Predicated region
            $region114: #{forward.1} parent=101 // pred_check
              _
            $region115: #{forward.1} parent=101 // pred_check_branch
              %5306 = sbr.rel target = $region117
            $region116: #{forward.1} parent=101 // pred_region
              _
            $region117: #{forward.1} parent=101 // pred_fallthru
              _
          $region102: #{forward.1} parent=97 // pred_fallthru
            _
          %5307 = vnop
        $region98: #{forward.1} parent=89 // pred_fallthru
          _
      $region90: #{forward.1} parent=5 // pred_fallthru
        _
      %p5308 = scmp.le.s32.totalorder 2, %s15
      // Predicated region
      $region118: #{forward.1} parent=5 // pred_check
        %p5309 = pneg %p5308
      $region119: #{forward.1} parent=5 // pred_check_branch
        %5311 = sbr.rel (%p5309) target = $region121
      $region120: #{forward.1} parent=5 // pred_region
        %s5312 = ssub.s32 %s15, 2
        // Predicated region
        $region122: #{forward.1} parent=120 // pred_check
          %p5313 = pneg %p268
        $region123: #{forward.1} parent=120 // pred_check_branch
          %5315 = sbr.rel (%p5313) target = $region125
        $region124: #{forward.1} parent=120 // pred_region
          %s5316 = sand.u32 %s253, 1
          %s5317 = sand.u32 %s253, 1
          %s5318 = smul.addr %s5317, 112
          %s5319 = scalar_lea.vmem [#allocation4], %s5318
        $region125: #{forward.1} parent=120 // pred_fallthru
          _
      $region121: #{forward.1} parent=5 // pred_fallthru
        _
    $region6: #{forward.1} parent=1 // loop_footer
      %s19 = sadd.s32 1, %s15
    $region7: #{forward.1} parent=1 // loop_footer_branch
      %14 = sbr.rel target = $region3
    $region8: #{forward.1} parent=1 // loop_exit
      _

</llo_original>
